<compile_context>
chip_gen: v5e
topology: v5e:2x2
jax: 0.10.0
libtpu: 0.0.40
codegen_flags: <defaults>
</compile_context>

<pallas_src>
import functools

import jax
import jax.numpy as jnp
from jax.experimental import pallas as pl
from jax.experimental.pallas import tpu as pltpu

_LANE = 128


def _vmem_capacity_bytes():
    """Physical VMEM of this TPU generation (fallback 64 MiB = v7x-safe)."""
    try:
        cap = int(pltpu.get_tpu_info().vmem_capacity_bytes)
        if cap > 0:
            return cap
    except Exception:
        pass
    return 64 * 1024 * 1024


def _pad_channels(c):
    """Smallest C' >= C that divides 128 (C < 128) or is a multiple of 128."""
    if c >= _LANE:
        return ((c + _LANE - 1) // _LANE) * _LANE
    c_pad = 1
    while c_pad < c:
        c_pad *= 2
    return c_pad


def _resident_spec(block_shape, index_map):
    """Constant-index (fetch-once) input; single-buffered when supported."""
    try:
        return pl.BlockSpec(block_shape, index_map, pipeline_mode=pl.Buffered(1))
    except TypeError:  # older BlockSpec without pipeline_mode
        return pl.BlockSpec(block_shape, index_map)


def _vq_kernel(x_ref, w_ref, w2_ref, sel_ref, q_ref, sse_ref, *,
               groups, n_valid_elems):
    i = pl.program_id(0)

    xp = x_ref[...].astype(jnp.float32)      # (pr, L)  lane-dense packed rows
    w = w_ref[...]                           # (Kp, Cp) f32 codebook (padded)
    w2 = w2_ref[...]                         # (1, Kp)  |w|^2; padded rows = 1e30
    pr, lanes = xp.shape
    kp = w.shape[0]

    iota_k = jax.lax.broadcasted_iota(jnp.int32, (pr, kp), 1)   # hoisted

    qp = None
    for j in range(groups):                  # static unroll over packed groups
        if groups == 1:
            x_j = xp                                            # (pr, Cp)
            sel = None
        else:
            sel = sel_ref[j]                                    # (Cp, L) 0/1
            # Unpack the logical rows of group j (lanes [j*Cp, (j+1)*Cp)) via
            # an exact selection matmul — avoids lane-splitting reshapes.
            x_j = jax.lax.dot_general(
                xp, sel, dimension_numbers=(((1,), (1,)), ((), ())),
                preferred_element_type=jnp.float32)             # (pr, Cp)

        # argmin_k |x - w_k|^2 == argmin_k (|w_k|^2 - 2 x.w_k)   (|x|^2 dropped)
        xw = jax.lax.dot_general(
            x_j, w, dimension_numbers=(((1,), (1,)), ((), ())),
            preferred_element_type=jnp.float32)                 # (pr, Kp)
        dist = w2 - 2.0 * xw
        idx = jnp.argmin(dist, axis=1)       # first-occurrence ties, like torch
        onehot = (iota_k == idx[:, None]).astype(jnp.float32)   # (pr, Kp)
        # TODO(synk): K-chunk + gather instead of this one-hot matmul for
        # codebooks with K >~ 2048 (bounds the (pr, K) intermediates).
        q_j = jnp.dot(onehot, w, preferred_element_type=jnp.float32)  # (pr, Cp)

        if groups == 1:
            qp = q_j
        else:
            placed = jax.lax.dot_general(     # place group j back at its lanes
                q_j, sel, dimension_numbers=(((1,), (0,)), ((), ())),
                preferred_element_type=jnp.float32)             # (pr, L)
            qp = placed if qp is None else qp + placed

    q_ref[...] = qp.astype(q_ref.dtype)      # lane-dense store

    # Per-tile partial SSE, zero-padded tail rows masked out.  Reduced to an
    # (8, L) slab so the output block stays (8, 128)-aligned; the final
    # cross-tile reduction happens in the wrapper (keeps the grid "parallel").
    row_id = jax.lax.broadcasted_iota(jnp.int32, (pr, lanes), 0)
    lane_id = jax.lax.broadcasted_iota(jnp.int32, (pr, lanes), 1)
    flat_elem = (i * pr + row_id) * lanes + lane_id    # global packed element id
    valid = (flat_elem < n_valid_elems).astype(jnp.float32)
    diff = (qp - xp) * valid
    sq = diff * diff
    sse_ref[...] = jnp.sum(sq.reshape(pr // 8, 8, lanes), axis=0)   # (8, L)


def vqvae_quantize_flat(flat_x, codebook, commitment_cost, *,
                        target_tile_bytes=2 * 1024 * 1024):
    """Quantize flattened rows. flat_x: (N, C). codebook: (K, C)."""
    n, c = flat_x.shape
    k, c2 = codebook.shape
    assert c == c2, "latent dim mismatch"

    c_pad = _pad_channels(c)
    lanes = max(_LANE, c_pad)
    groups = lanes // c_pad                   # logical rows per packed 128-lane row
    kp = ((k + _LANE - 1) // _LANE) * _LANE   # lane-dense codebook width
    # (256-multiples would marginally better match the 2x256 MXU of v6e/v7x.)

    # ---- wrapper-side prep: channel / codebook padding, norms, selectors ----
    x_p = flat_x if c_pad == c else jnp.pad(flat_x, ((0, 0), (0, c_pad - c)))
    w32 = codebook.astype(jnp.float32)
    if c_pad != c:
        w32 = jnp.pad(w32, ((0, 0), (0, c_pad - c)))
    w2 = jnp.sum(w32 * w32, axis=1)           # computed once, not per grid step
    if kp != k:
        w32 = jnp.pad(w32, ((0, kp - k), (0, 0)))
        w2 = jnp.concatenate([w2, jnp.full((kp - k,), 1e30, jnp.float32)])
    w2 = w2.reshape(1, kp)

    eye = jnp.eye(c_pad, dtype=jnp.float32)   # 0/1 unpack / placement selectors
    sel_mats = jnp.stack(
        [jnp.pad(eye, ((0, 0), (j * c_pad, lanes - (j + 1) * c_pad)))
         for j in range(groups)], axis=0)     # (R, Cp, L)

    # ---- generation-aware row-tile / VMEM sizing -----------------------------
    itemsize = flat_x.dtype.itemsize
    align = 8 * groups                        # keeps packed blocks (8k, 128)-aligned
    vmem_budget = (_vmem_capacity_bytes() * 3) // 4   # ~48 MiB v7x, ~96 MiB v5e/v6e
    fixed_bytes = (kp * c_pad + kp + groups * c_pad * lanes) * 4 + (2 << 20)
    per_row_bytes = (4 * c_pad * itemsize     # x & q packed tiles, double-buffered
                     + 12 * c_pad             # qp / diff / mask working set (f32)
                     + (16 * kp) // groups)   # (pr, Kp) per-group intermediates
    rows_vmem = max((vmem_budget - fixed_bytes) // max(per_row_bytes, 1), align)
    rows_target = max(target_tile_bytes // max(c_pad * itemsize, 1), align)
    rows_needed = ((n + align - 1) // align) * align
    tn = max(align, (min(rows_vmem, rows_target, rows_needed) // align) * align)
    num_tiles = (n + tn - 1) // tn            # cdiv; ragged tail rows are masked
    n_pad = num_tiles * tn

    if n_pad != n:
        x_p = jnp.pad(x_p, ((0, n_pad - n), (0, 0)))
    x_packed = x_p.reshape(n_pad // groups, lanes)   # free row-major repack

    pr = tn // groups                         # packed rows per grid step
    vmem_est = (fixed_bytes
                + 4 * pr * lanes * itemsize   # double-buffered x & q blocks
                + 4 * pr * kp * 4             # xw / dist / onehot / iota
                + 3 * pr * lanes * 4)         # qp / diff / valid
    vmem_limit = int(min(vmem_budget, max(vmem_est * 5 // 4, 16 << 20)))

    kernel = functools.partial(_vq_kernel, groups=groups,
                               n_valid_elems=n * c_pad)

    q_packed, sse_tiles = pl.pallas_call(
        kernel,
        out_shape=(
            jax.ShapeDtypeStruct(x_packed.shape, flat_x.dtype),
            jax.ShapeDtypeStruct((num_tiles * 8, lanes), jnp.float32),
        ),
        grid_spec=pltpu.PrefetchScalarGridSpec(
            num_scalar_prefetch=0,
            grid=(num_tiles,),
            in_specs=[
                pl.BlockSpec((pr, lanes), lambda i: (i, 0)),         # packed x tile
                _resident_spec((kp, c_pad), lambda i: (0, 0)),       # codebook (once)
                _resident_spec((1, kp), lambda i: (0, 0)),           # |w|^2 (once)
                _resident_spec((groups, c_pad, lanes),
                               lambda i: (0, 0, 0)),                 # selectors (once)
            ],
            out_specs=[
                pl.BlockSpec((pr, lanes), lambda i: (i, 0)),         # packed q tile
                pl.BlockSpec((8, lanes), lambda i: (i, 0)),          # per-tile SSE slab
            ],
        ),
        compiler_params=pltpu.CompilerParams(
            # All outputs are grid-indexed (no cross-step accumulator), so the
            # grid axis can be "parallel" -> v7x megacore sharding.
            dimension_semantics=("parallel",),
            vmem_limit_bytes=vmem_limit,
        ),
    )(x_packed, w32, w2, sel_mats)

    q_flat = q_packed.reshape(n_pad, c_pad)[:n, :c]
    sse = jnp.sum(sse_tiles)                  # cross-tile reduction in the wrapper
    loss = (1.0 + commitment_cost) * sse / jnp.float32(n * c)
    return q_flat, loss


def vqvae_quantize(x, codebook, commitment_cost, *,
                   target_tile_bytes=2 * 1024 * 1024):
    """x: (B, C, H, W) NCHW as in the PyTorch module. codebook: (K, C)."""
    b, c, h, w = x.shape
    # Layout glue kept out of the kernel; NHWC / pre-flattened callers should
    # use vqvae_quantize_flat directly and skip these two transposes.
    flat_x = jnp.transpose(x, (0, 2, 3, 1)).reshape(b * h * w, c)
    q_flat, loss = vqvae_quantize_flat(flat_x, codebook, commitment_cost,
                                       target_tile_bytes=target_tile_bytes)
    quantized = jnp.transpose(q_flat.reshape(b, h, w, c), (0, 3, 1, 2))
    return quantized, loss


def _check(x_nchw, codebook, commitment_cost, quantized, loss):
    """Pure-JAX forward-semantics checks against the PyTorch definition."""
    b, c, h, w = x_nchw.shape
    flat = jnp.transpose(x_nchw, (0, 2, 3, 1)).reshape(-1, c)
    q_rows = jnp.transpose(quantized, (0, 2, 3, 1)).reshape(-1, c)
    d_ref = (jnp.sum(flat ** 2, axis=1, keepdims=True)
             + jnp.sum(codebook ** 2, axis=1)[None, :]
             - 2.0 * flat @ codebook.T)
    # 1) every quantized row is a codebook row
    sel = jnp.argmin(
        jnp.sum((q_rows[:, None, :] - codebook[None, :, :]) ** 2, axis=-1), axis=1)
    assert jnp.allclose(q_rows, codebook[sel], atol=1e-5)
    # 2) the selected row is a nearest code (up to f32 rounding on ties)
    d_sel = jnp.take_along_axis(d_ref, sel[:, None], axis=1)[:, 0]
    assert bool(jnp.all(d_sel <= jnp.min(d_ref, axis=1) + 1e-4))
    # 3) loss matches its forward-value definition
    loss_ref = (1.0 + commitment_cost) * jnp.mean((q_rows - flat) ** 2)
    assert jnp.allclose(loss, loss_ref, rtol=1e-4, atol=1e-6)


if __name__ == "__main__":
    codebook_size = 32
    latent_dim = 8
    commitment_cost = 0.25

    key = jax.random.PRNGKey(0)
    kx, kw, kx2 = jax.random.split(key, 3)

    # Embedding init: uniform(-1/K, 1/K), shape (K, latent_dim).
    codebook = jax.random.uniform(
        kw, (codebook_size, latent_dim), dtype=jnp.float32,
        minval=-1.0 / codebook_size, maxval=1.0 / codebook_size)

    # Case 1: nominal NCHW latents (B=4, C=8, H=W=16) -> 1024 rows, one tile.
    x1 = jax.random.normal(kx, (4, latent_dim, 16, 16), dtype=jnp.float32)
    q1, loss1 = vqvae_quantize(x1, codebook, commitment_cost)
    jax.block_until_ready((q1, loss1))
    _check(x1, codebook, commitment_cost, q1, loss1)

    # Case 2: ragged row count (B=3, H=W=15 -> 675 rows) with a small tile
    # target to exercise the multi-tile "parallel" grid and the masked,
    # zero-padded tail rows.
    x2 = jax.random.normal(kx2, (3, latent_dim, 15, 15), dtype=jnp.float32)
    q2, loss2 = vqvae_quantize(x2, codebook, commitment_cost,
                               target_tile_bytes=8 * 1024)
    jax.block_until_ready((q2, loss2))
    _check(x2, codebook, commitment_cost, q2, loss2)

    print("KERNEL_OK")
</pallas_src>

<mosaic_0001>
module attributes {stable_mosaic.version = 11 : i64} {
  func.func @_vq_kernel(%arg0: i32, %arg1: memref<64x128xf32, #tpu.memory_space<vmem>>, %arg2: memref<128x8xf32, #tpu.memory_space<vmem>>, %arg3: memref<1x128xf32, #tpu.memory_space<vmem>>, %arg4: memref<16x8x128xf32, #tpu.memory_space<vmem>>, %arg5: memref<64x128xf32, #tpu.memory_space<vmem>>, %arg6: memref<8x128xf32, #tpu.memory_space<vmem>>) attributes {dimension_semantics = [#tpu.dimension_semantics<parallel>], iteration_bounds = array<i64: 1>, scalar_prefetch = 0 : i64, scratch_operands = 0 : i64, tpu.core_type = #tpu.core_type<tc>, window_params = [{transform_indices = @transform_0, window_bounds = array<i64: 64, 128>}, {pipeline_mode = #tpu.pipeline_mode<synchronous>, transform_indices = @transform_1, window_bounds = array<i64: 128, 8>}, {pipeline_mode = #tpu.pipeline_mode<synchronous>, transform_indices = @transform_2, window_bounds = array<i64: 1, 128>}, {pipeline_mode = #tpu.pipeline_mode<synchronous>, transform_indices = @transform_3, window_bounds = array<i64: 16, 8, 128>}, {transform_indices = @transform_4, window_bounds = array<i64: 64, 128>}, {transform_indices = @transform_5, window_bounds = array<i64: 8, 128>}]} {
    %c0 = arith.constant 0 : index
    %c0_0 = arith.constant 0 : index
    %0 = vector.load %arg1[%c0, %c0_0] : memref<64x128xf32, #tpu.memory_space<vmem>>, vector<64x128xf32>
    %c0_1 = arith.constant 0 : index
    %c0_2 = arith.constant 0 : index
    %1 = vector.load %arg2[%c0_1, %c0_2] : memref<128x8xf32, #tpu.memory_space<vmem>>, vector<128x8xf32>
    %c0_3 = arith.constant 0 : index
    %c0_4 = arith.constant 0 : index
    %2 = vector.load %arg3[%c0_3, %c0_4] : memref<1x128xf32, #tpu.memory_space<vmem>>, vector<1x128xf32>
    %3 = tpu.iota {dimensions = array<i32: 1>} : vector<64x128xi32>
    %c0_5 = arith.constant 0 : index
    %c0_6 = arith.constant 0 : index
    %c0_7 = arith.constant 0 : index
    %4 = vector.load %arg4[%c0_5, %c0_6, %c0_7] : memref<16x8x128xf32, #tpu.memory_space<vmem>>, vector<1x8x128xf32>
    %5 = vector.shape_cast %4 : vector<1x8x128xf32> to vector<8x128xf32>
    %cst = arith.constant dense<0.000000e+00> : vector<64x8xf32>
    %6 = tpu.matmul %0, %5, %cst {dimension_numbers = #tpu.dot_dimension_numbers<[1], [1], [0], [0], [0, 0, 1, 0], [], []>} : vector<64x128xf32>, vector<8x128xf32>, vector<64x8xf32> -> vector<64x8xf32>
    %cst_8 = arith.constant dense<0.000000e+00> : vector<64x128xf32>
    %7 = tpu.matmul %6, %1, %cst_8 {dimension_numbers = #tpu.dot_dimension_numbers<[1], [1], [0], [0], [0, 0, 1, 0], [], []>} : vector<64x8xf32>, vector<128x8xf32>, vector<64x128xf32> -> vector<64x128xf32>
    %cst_9 = arith.constant 2.000000e+00 : f32
    %8 = vector.broadcast %cst_9 : f32 to vector<64x128xf32>
    %9 = arith.mulf %8, %7 : vector<64x128xf32>
    %10 = vector.broadcast %2 : vector<1x128xf32> to vector<64x128xf32>
    %11 = arith.subf %10, %9 : vector<64x128xf32>
    %12 = tpu.reduce_index %11 {axis = 1 : i32, kind = #tpu.reduction_kind<arg_min>} : vector<64x128xf32> -> vector<64xi32>
    %13 = vector.shape_cast %12 : vector<64xi32> to vector<64x1xi32>
    %14 = vector.broadcast %13 : vector<64x1xi32> to vector<64x128xi32>
    %15 = arith.cmpi eq, %3, %14 : vector<64x128xi32>
    %16 = arith.extui %15 : vector<64x128xi1> to vector<64x128xi32>
    %17 = arith.sitofp %16 : vector<64x128xi32> to vector<64x128xf32>
    %cst_10 = arith.constant dense<0.000000e+00> : vector<64x8xf32>
    %18 = tpu.matmul %17, %1, %cst_10 {dimension_numbers = #tpu.dot_dimension_numbers<[1], [0], [0], [1], [0, 0, 1, 1], [], []>} : vector<64x128xf32>, vector<128x8xf32>, vector<64x8xf32> -> vector<64x8xf32>
    %cst_11 = arith.constant dense<0.000000e+00> : vector<64x128xf32>
    %19 = tpu.matmul %18, %5, %cst_11 {dimension_numbers = #tpu.dot_dimension_numbers<[1], [0], [0], [1], [0, 0, 1, 1], [], []>} : vector<64x8xf32>, vector<8x128xf32>, vector<64x128xf32> -> vector<64x128xf32>
    %c1 = arith.constant 1 : index
    %c0_12 = arith.constant 0 : index
    %c0_13 = arith.constant 0 : index
    %20 = vector.load %arg4[%c1, %c0_12, %c0_13] : memref<16x8x128xf32, #tpu.memory_space<vmem>>, vector<1x8x128xf32>
    %21 = vector.shape_cast %20 : vector<1x8x128xf32> to vector<8x128xf32>
    %cst_14 = arith.constant dense<0.000000e+00> : vector<64x8xf32>
    %22 = tpu.matmul %0, %21, %cst_14 {dimension_numbers = #tpu.dot_dimension_numbers<[1], [1], [0], [0], [0, 0, 1, 0], [], []>} : vector<64x128xf32>, vector<8x128xf32>, vector<64x8xf32> -> vector<64x8xf32>
    %cst_15 = arith.constant dense<0.000000e+00> : vector<64x128xf32>
    %23 = tpu.matmul %22, %1, %cst_15 {dimension_numbers = #tpu.dot_dimension_numbers<[1], [1], [0], [0], [0, 0, 1, 0], [], []>} : vector<64x8xf32>, vector<128x8xf32>, vector<64x128xf32> -> vector<64x128xf32>
    %cst_16 = arith.constant 2.000000e+00 : f32
    %24 = vector.broadcast %cst_16 : f32 to vector<64x128xf32>
    %25 = arith.mulf %24, %23 : vector<64x128xf32>
    %26 = vector.broadcast %2 : vector<1x128xf32> to vector<64x128xf32>
    %27 = arith.subf %26, %25 : vector<64x128xf32>
    %28 = tpu.reduce_index %27 {axis = 1 : i32, kind = #tpu.reduction_kind<arg_min>} : vector<64x128xf32> -> vector<64xi32>
    %29 = vector.shape_cast %28 : vector<64xi32> to vector<64x1xi32>
    %30 = vector.broadcast %29 : vector<64x1xi32> to vector<64x128xi32>
    %31 = arith.cmpi eq, %3, %30 : vector<64x128xi32>
    %32 = arith.extui %31 : vector<64x128xi1> to vector<64x128xi32>
    %33 = arith.sitofp %32 : vector<64x128xi32> to vector<64x128xf32>
    %cst_17 = arith.constant dense<0.000000e+00> : vector<64x8xf32>
    %34 = tpu.matmul %33, %1, %cst_17 {dimension_numbers = #tpu.dot_dimension_numbers<[1], [0], [0], [1], [0, 0, 1, 1], [], []>} : vector<64x128xf32>, vector<128x8xf32>, vector<64x8xf32> -> vector<64x8xf32>
    %cst_18 = arith.constant dense<0.000000e+00> : vector<64x128xf32>
    %35 = tpu.matmul %34, %21, %cst_18 {dimension_numbers = #tpu.dot_dimension_numbers<[1], [0], [0], [1], [0, 0, 1, 1], [], []>} : vector<64x8xf32>, vector<8x128xf32>, vector<64x128xf32> -> vector<64x128xf32>
    %36 = arith.addf %19, %35 : vector<64x128xf32>
    %c2 = arith.constant 2 : index
    %c0_19 = arith.constant 0 : index
    %c0_20 = arith.constant 0 : index
    %37 = vector.load %arg4[%c2, %c0_19, %c0_20] : memref<16x8x128xf32, #tpu.memory_space<vmem>>, vector<1x8x128xf32>
    %38 = vector.shape_cast %37 : vector<1x8x128xf32> to vector<8x128xf32>
    %cst_21 = arith.constant dense<0.000000e+00> : vector<64x8xf32>
    %39 = tpu.matmul %0, %38, %cst_21 {dimension_numbers = #tpu.dot_dimension_numbers<[1], [1], [0], [0], [0, 0, 1, 0], [], []>} : vector<64x128xf32>, vector<8x128xf32>, vector<64x8xf32> -> vector<64x8xf32>
    %cst_22 = arith.constant dense<0.000000e+00> : vector<64x128xf32>
    %40 = tpu.matmul %39, %1, %cst_22 {dimension_numbers = #tpu.dot_dimension_numbers<[1], [1], [0], [0], [0, 0, 1, 0], [], []>} : vector<64x8xf32>, vector<128x8xf32>, vector<64x128xf32> -> vector<64x128xf32>
    %cst_23 = arith.constant 2.000000e+00 : f32
    %41 = vector.broadcast %cst_23 : f32 to vector<64x128xf32>
    %42 = arith.mulf %41, %40 : vector<64x128xf32>
    %43 = vector.broadcast %2 : vector<1x128xf32> to vector<64x128xf32>
    %44 = arith.subf %43, %42 : vector<64x128xf32>
    %45 = tpu.reduce_index %44 {axis = 1 : i32, kind = #tpu.reduction_kind<arg_min>} : vector<64x128xf32> -> vector<64xi32>
    %46 = vector.shape_cast %45 : vector<64xi32> to vector<64x1xi32>
    %47 = vector.broadcast %46 : vector<64x1xi32> to vector<64x128xi32>
    %48 = arith.cmpi eq, %3, %47 : vector<64x128xi32>
    %49 = arith.extui %48 : vector<64x128xi1> to vector<64x128xi32>
    %50 = arith.sitofp %49 : vector<64x128xi32> to vector<64x128xf32>
    %cst_24 = arith.constant dense<0.000000e+00> : vector<64x8xf32>
    %51 = tpu.matmul %50, %1, %cst_24 {dimension_numbers = #tpu.dot_dimension_numbers<[1], [0], [0], [1], [0, 0, 1, 1], [], []>} : vector<64x128xf32>, vector<128x8xf32>, vector<64x8xf32> -> vector<64x8xf32>
    %cst_25 = arith.constant dense<0.000000e+00> : vector<64x128xf32>
    %52 = tpu.matmul %51, %38, %cst_25 {dimension_numbers = #tpu.dot_dimension_numbers<[1], [0], [0], [1], [0, 0, 1, 1], [], []>} : vector<64x8xf32>, vector<8x128xf32>, vector<64x128xf32> -> vector<64x128xf32>
    %53 = arith.addf %36, %52 : vector<64x128xf32>
    %c3 = arith.constant 3 : index
    %c0_26 = arith.constant 0 : index
    %c0_27 = arith.constant 0 : index
    %54 = vector.load %arg4[%c3, %c0_26, %c0_27] : memref<16x8x128xf32, #tpu.memory_space<vmem>>, vector<1x8x128xf32>
    %55 = vector.shape_cast %54 : vector<1x8x128xf32> to vector<8x128xf32>
    %cst_28 = arith.constant dense<0.000000e+00> : vector<64x8xf32>
    %56 = tpu.matmul %0, %55, %cst_28 {dimension_numbers = #tpu.dot_dimension_numbers<[1], [1], [0], [0], [0, 0, 1, 0], [], []>} : vector<64x128xf32>, vector<8x128xf32>, vector<64x8xf32> -> vector<64x8xf32>
    %cst_29 = arith.constant dense<0.000000e+00> : vector<64x128xf32>
    %57 = tpu.matmul %56, %1, %cst_29 {dimension_numbers = #tpu.dot_dimension_numbers<[1], [1], [0], [0], [0, 0, 1, 0], [], []>} : vector<64x8xf32>, vector<128x8xf32>, vector<64x128xf32> -> vector<64x128xf32>
    %cst_30 = arith.constant 2.000000e+00 : f32
    %58 = vector.broadcast %cst_30 : f32 to vector<64x128xf32>
    %59 = arith.mulf %58, %57 : vector<64x128xf32>
    %60 = vector.broadcast %2 : vector<1x128xf32> to vector<64x128xf32>
    %61 = arith.subf %60, %59 : vector<64x128xf32>
    %62 = tpu.reduce_index %61 {axis = 1 : i32, kind = #tpu.reduction_kind<arg_min>} : vector<64x128xf32> -> vector<64xi32>
    %63 = vector.shape_cast %62 : vector<64xi32> to vector<64x1xi32>
    %64 = vector.broadcast %63 : vector<64x1xi32> to vector<64x128xi32>
    %65 = arith.cmpi eq, %3, %64 : vector<64x128xi32>
    %66 = arith.extui %65 : vector<64x128xi1> to vector<64x128xi32>
    %67 = arith.sitofp %66 : vector<64x128xi32> to vector<64x128xf32>
    %cst_31 = arith.constant dense<0.000000e+00> : vector<64x8xf32>
    %68 = tpu.matmul %67, %1, %cst_31 {dimension_numbers = #tpu.dot_dimension_numbers<[1], [0], [0], [1], [0, 0, 1, 1], [], []>} : vector<64x128xf32>, vector<128x8xf32>, vector<64x8xf32> -> vector<64x8xf32>
    %cst_32 = arith.constant dense<0.000000e+00> : vector<64x128xf32>
    %69 = tpu.matmul %68, %55, %cst_32 {dimension_numbers = #tpu.dot_dimension_numbers<[1], [0], [0], [1], [0, 0, 1, 1], [], []>} : vector<64x8xf32>, vector<8x128xf32>, vector<64x128xf32> -> vector<64x128xf32>
    %70 = arith.addf %53, %69 : vector<64x128xf32>
    %c4 = arith.constant 4 : index
    %c0_33 = arith.constant 0 : index
    %c0_34 = arith.constant 0 : index
    %71 = vector.load %arg4[%c4, %c0_33, %c0_34] : memref<16x8x128xf32, #tpu.memory_space<vmem>>, vector<1x8x128xf32>
    %72 = vector.shape_cast %71 : vector<1x8x128xf32> to vector<8x128xf32>
    %cst_35 = arith.constant dense<0.000000e+00> : vector<64x8xf32>
    %73 = tpu.matmul %0, %72, %cst_35 {dimension_numbers = #tpu.dot_dimension_numbers<[1], [1], [0], [0], [0, 0, 1, 0], [], []>} : vector<64x128xf32>, vector<8x128xf32>, vector<64x8xf32> -> vector<64x8xf32>
    %cst_36 = arith.constant dense<0.000000e+00> : vector<64x128xf32>
    %74 = tpu.matmul %73, %1, %cst_36 {dimension_numbers = #tpu.dot_dimension_numbers<[1], [1], [0], [0], [0, 0, 1, 0], [], []>} : vector<64x8xf32>, vector<128x8xf32>, vector<64x128xf32> -> vector<64x128xf32>
    %cst_37 = arith.constant 2.000000e+00 : f32
    %75 = vector.broadcast %cst_37 : f32 to vector<64x128xf32>
    %76 = arith.mulf %75, %74 : vector<64x128xf32>
    %77 = vector.broadcast %2 : vector<1x128xf32> to vector<64x128xf32>
    %78 = arith.subf %77, %76 : vector<64x128xf32>
    %79 = tpu.reduce_index %78 {axis = 1 : i32, kind = #tpu.reduction_kind<arg_min>} : vector<64x128xf32> -> vector<64xi32>
    %80 = vector.shape_cast %79 : vector<64xi32> to vector<64x1xi32>
    %81 = vector.broadcast %80 : vector<64x1xi32> to vector<64x128xi32>
    %82 = arith.cmpi eq, %3, %81 : vector<64x128xi32>
    %83 = arith.extui %82 : vector<64x128xi1> to vector<64x128xi32>
    %84 = arith.sitofp %83 : vector<64x128xi32> to vector<64x128xf32>
    %cst_38 = arith.constant dense<0.000000e+00> : vector<64x8xf32>
    %85 = tpu.matmul %84, %1, %cst_38 {dimension_numbers = #tpu.dot_dimension_numbers<[1], [0], [0], [1], [0, 0, 1, 1], [], []>} : vector<64x128xf32>, vector<128x8xf32>, vector<64x8xf32> -> vector<64x8xf32>
    %cst_39 = arith.constant dense<0.000000e+00> : vector<64x128xf32>
    %86 = tpu.matmul %85, %72, %cst_39 {dimension_numbers = #tpu.dot_dimension_numbers<[1], [0], [0], [1], [0, 0, 1, 1], [], []>} : vector<64x8xf32>, vector<8x128xf32>, vector<64x128xf32> -> vector<64x128xf32>
    %87 = arith.addf %70, %86 : vector<64x128xf32>
    %c5 = arith.constant 5 : index
    %c0_40 = arith.constant 0 : index
    %c0_41 = arith.constant 0 : index
    %88 = vector.load %arg4[%c5, %c0_40, %c0_41] : memref<16x8x128xf32, #tpu.memory_space<vmem>>, vector<1x8x128xf32>
    %89 = vector.shape_cast %88 : vector<1x8x128xf32> to vector<8x128xf32>
    %cst_42 = arith.constant dense<0.000000e+00> : vector<64x8xf32>
    %90 = tpu.matmul %0, %89, %cst_42 {dimension_numbers = #tpu.dot_dimension_numbers<[1], [1], [0], [0], [0, 0, 1, 0], [], []>} : vector<64x128xf32>, vector<8x128xf32>, vector<64x8xf32> -> vector<64x8xf32>
    %cst_43 = arith.constant dense<0.000000e+00> : vector<64x128xf32>
    %91 = tpu.matmul %90, %1, %cst_43 {dimension_numbers = #tpu.dot_dimension_numbers<[1], [1], [0], [0], [0, 0, 1, 0], [], []>} : vector<64x8xf32>, vector<128x8xf32>, vector<64x128xf32> -> vector<64x128xf32>
    %cst_44 = arith.constant 2.000000e+00 : f32
    %92 = vector.broadcast %cst_44 : f32 to vector<64x128xf32>
    %93 = arith.mulf %92, %91 : vector<64x128xf32>
    %94 = vector.broadcast %2 : vector<1x128xf32> to vector<64x128xf32>
    %95 = arith.subf %94, %93 : vector<64x128xf32>
    %96 = tpu.reduce_index %95 {axis = 1 : i32, kind = #tpu.reduction_kind<arg_min>} : vector<64x128xf32> -> vector<64xi32>
    %97 = vector.shape_cast %96 : vector<64xi32> to vector<64x1xi32>
    %98 = vector.broadcast %97 : vector<64x1xi32> to vector<64x128xi32>
    %99 = arith.cmpi eq, %3, %98 : vector<64x128xi32>
    %100 = arith.extui %99 : vector<64x128xi1> to vector<64x128xi32>
    %101 = arith.sitofp %100 : vector<64x128xi32> to vector<64x128xf32>
    %cst_45 = arith.constant dense<0.000000e+00> : vector<64x8xf32>
    %102 = tpu.matmul %101, %1, %cst_45 {dimension_numbers = #tpu.dot_dimension_numbers<[1], [0], [0], [1], [0, 0, 1, 1], [], []>} : vector<64x128xf32>, vector<128x8xf32>, vector<64x8xf32> -> vector<64x8xf32>
    %cst_46 = arith.constant dense<0.000000e+00> : vector<64x128xf32>
    %103 = tpu.matmul %102, %89, %cst_46 {dimension_numbers = #tpu.dot_dimension_numbers<[1], [0], [0], [1], [0, 0, 1, 1], [], []>} : vector<64x8xf32>, vector<8x128xf32>, vector<64x128xf32> -> vector<64x128xf32>
    %104 = arith.addf %87, %103 : vector<64x128xf32>
    %c6 = arith.constant 6 : index
    %c0_47 = arith.constant 0 : index
    %c0_48 = arith.constant 0 : index
    %105 = vector.load %arg4[%c6, %c0_47, %c0_48] : memref<16x8x128xf32, #tpu.memory_space<vmem>>, vector<1x8x128xf32>
    %106 = vector.shape_cast %105 : vector<1x8x128xf32> to vector<8x128xf32>
    %cst_49 = arith.constant dense<0.000000e+00> : vector<64x8xf32>
    %107 = tpu.matmul %0, %106, %cst_49 {dimension_numbers = #tpu.dot_dimension_numbers<[1], [1], [0], [0], [0, 0, 1, 0], [], []>} : vector<64x128xf32>, vector<8x128xf32>, vector<64x8xf32> -> vector<64x8xf32>
    %cst_50 = arith.constant dense<0.000000e+00> : vector<64x128xf32>
    %108 = tpu.matmul %107, %1, %cst_50 {dimension_numbers = #tpu.dot_dimension_numbers<[1], [1], [0], [0], [0, 0, 1, 0], [], []>} : vector<64x8xf32>, vector<128x8xf32>, vector<64x128xf32> -> vector<64x128xf32>
    %cst_51 = arith.constant 2.000000e+00 : f32
    %109 = vector.broadcast %cst_51 : f32 to vector<64x128xf32>
    %110 = arith.mulf %109, %108 : vector<64x128xf32>
    %111 = vector.broadcast %2 : vector<1x128xf32> to vector<64x128xf32>
    %112 = arith.subf %111, %110 : vector<64x128xf32>
    %113 = tpu.reduce_index %112 {axis = 1 : i32, kind = #tpu.reduction_kind<arg_min>} : vector<64x128xf32> -> vector<64xi32>
    %114 = vector.shape_cast %113 : vector<64xi32> to vector<64x1xi32>
    %115 = vector.broadcast %114 : vector<64x1xi32> to vector<64x128xi32>
    %116 = arith.cmpi eq, %3, %115 : vector<64x128xi32>
    %117 = arith.extui %116 : vector<64x128xi1> to vector<64x128xi32>
    %118 = arith.sitofp %117 : vector<64x128xi32> to vector<64x128xf32>
    %cst_52 = arith.constant dense<0.000000e+00> : vector<64x8xf32>
    %119 = tpu.matmul %118, %1, %cst_52 {dimension_numbers = #tpu.dot_dimension_numbers<[1], [0], [0], [1], [0, 0, 1, 1], [], []>} : vector<64x128xf32>, vector<128x8xf32>, vector<64x8xf32> -> vector<64x8xf32>
    %cst_53 = arith.constant dense<0.000000e+00> : vector<64x128xf32>
    %120 = tpu.matmul %119, %106, %cst_53 {dimension_numbers = #tpu.dot_dimension_numbers<[1], [0], [0], [1], [0, 0, 1, 1], [], []>} : vector<64x8xf32>, vector<8x128xf32>, vector<64x128xf32> -> vector<64x128xf32>
    %121 = arith.addf %104, %120 : vector<64x128xf32>
    %c7 = arith.constant 7 : index
    %c0_54 = arith.constant 0 : index
    %c0_55 = arith.constant 0 : index
    %122 = vector.load %arg4[%c7, %c0_54, %c0_55] : memref<16x8x128xf32, #tpu.memory_space<vmem>>, vector<1x8x128xf32>
    %123 = vector.shape_cast %122 : vector<1x8x128xf32> to vector<8x128xf32>
    %cst_56 = arith.constant dense<0.000000e+00> : vector<64x8xf32>
    %124 = tpu.matmul %0, %123, %cst_56 {dimension_numbers = #tpu.dot_dimension_numbers<[1], [1], [0], [0], [0, 0, 1, 0], [], []>} : vector<64x128xf32>, vector<8x128xf32>, vector<64x8xf32> -> vector<64x8xf32>
    %cst_57 = arith.constant dense<0.000000e+00> : vector<64x128xf32>
    %125 = tpu.matmul %124, %1, %cst_57 {dimension_numbers = #tpu.dot_dimension_numbers<[1], [1], [0], [0], [0, 0, 1, 0], [], []>} : vector<64x8xf32>, vector<128x8xf32>, vector<64x128xf32> -> vector<64x128xf32>
    %cst_58 = arith.constant 2.000000e+00 : f32
    %126 = vector.broadcast %cst_58 : f32 to vector<64x128xf32>
    %127 = arith.mulf %126, %125 : vector<64x128xf32>
    %128 = vector.broadcast %2 : vector<1x128xf32> to vector<64x128xf32>
    %129 = arith.subf %128, %127 : vector<64x128xf32>
    %130 = tpu.reduce_index %129 {axis = 1 : i32, kind = #tpu.reduction_kind<arg_min>} : vector<64x128xf32> -> vector<64xi32>
    %131 = vector.shape_cast %130 : vector<64xi32> to vector<64x1xi32>
    %132 = vector.broadcast %131 : vector<64x1xi32> to vector<64x128xi32>
    %133 = arith.cmpi eq, %3, %132 : vector<64x128xi32>
    %134 = arith.extui %133 : vector<64x128xi1> to vector<64x128xi32>
    %135 = arith.sitofp %134 : vector<64x128xi32> to vector<64x128xf32>
    %cst_59 = arith.constant dense<0.000000e+00> : vector<64x8xf32>
    %136 = tpu.matmul %135, %1, %cst_59 {dimension_numbers = #tpu.dot_dimension_numbers<[1], [0], [0], [1], [0, 0, 1, 1], [], []>} : vector<64x128xf32>, vector<128x8xf32>, vector<64x8xf32> -> vector<64x8xf32>
    %cst_60 = arith.constant dense<0.000000e+00> : vector<64x128xf32>
    %137 = tpu.matmul %136, %123, %cst_60 {dimension_numbers = #tpu.dot_dimension_numbers<[1], [0], [0], [1], [0, 0, 1, 1], [], []>} : vector<64x8xf32>, vector<8x128xf32>, vector<64x128xf32> -> vector<64x128xf32>
    %138 = arith.addf %121, %137 : vector<64x128xf32>
    %c8 = arith.constant 8 : index
    %c0_61 = arith.constant 0 : index
    %c0_62 = arith.constant 0 : index
    %139 = vector.load %arg4[%c8, %c0_61, %c0_62] : memref<16x8x128xf32, #tpu.memory_space<vmem>>, vector<1x8x128xf32>
    %140 = vector.shape_cast %139 : vector<1x8x128xf32> to vector<8x128xf32>
    %cst_63 = arith.constant dense<0.000000e+00> : vector<64x8xf32>
    %141 = tpu.matmul %0, %140, %cst_63 {dimension_numbers = #tpu.dot_dimension_numbers<[1], [1], [0], [0], [0, 0, 1, 0], [], []>} : vector<64x128xf32>, vector<8x128xf32>, vector<64x8xf32> -> vector<64x8xf32>
    %cst_64 = arith.constant dense<0.000000e+00> : vector<64x128xf32>
    %142 = tpu.matmul %141, %1, %cst_64 {dimension_numbers = #tpu.dot_dimension_numbers<[1], [1], [0], [0], [0, 0, 1, 0], [], []>} : vector<64x8xf32>, vector<128x8xf32>, vector<64x128xf32> -> vector<64x128xf32>
    %cst_65 = arith.constant 2.000000e+00 : f32
    %143 = vector.broadcast %cst_65 : f32 to vector<64x128xf32>
    %144 = arith.mulf %143, %142 : vector<64x128xf32>
    %145 = vector.broadcast %2 : vector<1x128xf32> to vector<64x128xf32>
    %146 = arith.subf %145, %144 : vector<64x128xf32>
    %147 = tpu.reduce_index %146 {axis = 1 : i32, kind = #tpu.reduction_kind<arg_min>} : vector<64x128xf32> -> vector<64xi32>
    %148 = vector.shape_cast %147 : vector<64xi32> to vector<64x1xi32>
    %149 = vector.broadcast %148 : vector<64x1xi32> to vector<64x128xi32>
    %150 = arith.cmpi eq, %3, %149 : vector<64x128xi32>
    %151 = arith.extui %150 : vector<64x128xi1> to vector<64x128xi32>
    %152 = arith.sitofp %151 : vector<64x128xi32> to vector<64x128xf32>
    %cst_66 = arith.constant dense<0.000000e+00> : vector<64x8xf32>
    %153 = tpu.matmul %152, %1, %cst_66 {dimension_numbers = #tpu.dot_dimension_numbers<[1], [0], [0], [1], [0, 0, 1, 1], [], []>} : vector<64x128xf32>, vector<128x8xf32>, vector<64x8xf32> -> vector<64x8xf32>
    %cst_67 = arith.constant dense<0.000000e+00> : vector<64x128xf32>
    %154 = tpu.matmul %153, %140, %cst_67 {dimension_numbers = #tpu.dot_dimension_numbers<[1], [0], [0], [1], [0, 0, 1, 1], [], []>} : vector<64x8xf32>, vector<8x128xf32>, vector<64x128xf32> -> vector<64x128xf32>
    %155 = arith.addf %138, %154 : vector<64x128xf32>
    %c9 = arith.constant 9 : index
    %c0_68 = arith.constant 0 : index
    %c0_69 = arith.constant 0 : index
    %156 = vector.load %arg4[%c9, %c0_68, %c0_69] : memref<16x8x128xf32, #tpu.memory_space<vmem>>, vector<1x8x128xf32>
    %157 = vector.shape_cast %156 : vector<1x8x128xf32> to vector<8x128xf32>
    %cst_70 = arith.constant dense<0.000000e+00> : vector<64x8xf32>
    %158 = tpu.matmul %0, %157, %cst_70 {dimension_numbers = #tpu.dot_dimension_numbers<[1], [1], [0], [0], [0, 0, 1, 0], [], []>} : vector<64x128xf32>, vector<8x128xf32>, vector<64x8xf32> -> vector<64x8xf32>
    %cst_71 = arith.constant dense<0.000000e+00> : vector<64x128xf32>
    %159 = tpu.matmul %158, %1, %cst_71 {dimension_numbers = #tpu.dot_dimension_numbers<[1], [1], [0], [0], [0, 0, 1, 0], [], []>} : vector<64x8xf32>, vector<128x8xf32>, vector<64x128xf32> -> vector<64x128xf32>
    %cst_72 = arith.constant 2.000000e+00 : f32
    %160 = vector.broadcast %cst_72 : f32 to vector<64x128xf32>
    %161 = arith.mulf %160, %159 : vector<64x128xf32>
    %162 = vector.broadcast %2 : vector<1x128xf32> to vector<64x128xf32>
    %163 = arith.subf %162, %161 : vector<64x128xf32>
    %164 = tpu.reduce_index %163 {axis = 1 : i32, kind = #tpu.reduction_kind<arg_min>} : vector<64x128xf32> -> vector<64xi32>
    %165 = vector.shape_cast %164 : vector<64xi32> to vector<64x1xi32>
    %166 = vector.broadcast %165 : vector<64x1xi32> to vector<64x128xi32>
    %167 = arith.cmpi eq, %3, %166 : vector<64x128xi32>
    %168 = arith.extui %167 : vector<64x128xi1> to vector<64x128xi32>
    %169 = arith.sitofp %168 : vector<64x128xi32> to vector<64x128xf32>
    %cst_73 = arith.constant dense<0.000000e+00> : vector<64x8xf32>
    %170 = tpu.matmul %169, %1, %cst_73 {dimension_numbers = #tpu.dot_dimension_numbers<[1], [0], [0], [1], [0, 0, 1, 1], [], []>} : vector<64x128xf32>, vector<128x8xf32>, vector<64x8xf32> -> vector<64x8xf32>
    %cst_74 = arith.constant dense<0.000000e+00> : vector<64x128xf32>
    %171 = tpu.matmul %170, %157, %cst_74 {dimension_numbers = #tpu.dot_dimension_numbers<[1], [0], [0], [1], [0, 0, 1, 1], [], []>} : vector<64x8xf32>, vector<8x128xf32>, vector<64x128xf32> -> vector<64x128xf32>
    %172 = arith.addf %155, %171 : vector<64x128xf32>
    %c10 = arith.constant 10 : index
    %c0_75 = arith.constant 0 : index
    %c0_76 = arith.constant 0 : index
    %173 = vector.load %arg4[%c10, %c0_75, %c0_76] : memref<16x8x128xf32, #tpu.memory_space<vmem>>, vector<1x8x128xf32>
    %174 = vector.shape_cast %173 : vector<1x8x128xf32> to vector<8x128xf32>
    %cst_77 = arith.constant dense<0.000000e+00> : vector<64x8xf32>
    %175 = tpu.matmul %0, %174, %cst_77 {dimension_numbers = #tpu.dot_dimension_numbers<[1], [1], [0], [0], [0, 0, 1, 0], [], []>} : vector<64x128xf32>, vector<8x128xf32>, vector<64x8xf32> -> vector<64x8xf32>
    %cst_78 = arith.constant dense<0.000000e+00> : vector<64x128xf32>
    %176 = tpu.matmul %175, %1, %cst_78 {dimension_numbers = #tpu.dot_dimension_numbers<[1], [1], [0], [0], [0, 0, 1, 0], [], []>} : vector<64x8xf32>, vector<128x8xf32>, vector<64x128xf32> -> vector<64x128xf32>
    %cst_79 = arith.constant 2.000000e+00 : f32
    %177 = vector.broadcast %cst_79 : f32 to vector<64x128xf32>
    %178 = arith.mulf %177, %176 : vector<64x128xf32>
    %179 = vector.broadcast %2 : vector<1x128xf32> to vector<64x128xf32>
    %180 = arith.subf %179, %178 : vector<64x128xf32>
    %181 = tpu.reduce_index %180 {axis = 1 : i32, kind = #tpu.reduction_kind<arg_min>} : vector<64x128xf32> -> vector<64xi32>
    %182 = vector.shape_cast %181 : vector<64xi32> to vector<64x1xi32>
    %183 = vector.broadcast %182 : vector<64x1xi32> to vector<64x128xi32>
    %184 = arith.cmpi eq, %3, %183 : vector<64x128xi32>
    %185 = arith.extui %184 : vector<64x128xi1> to vector<64x128xi32>
    %186 = arith.sitofp %185 : vector<64x128xi32> to vector<64x128xf32>
    %cst_80 = arith.constant dense<0.000000e+00> : vector<64x8xf32>
    %187 = tpu.matmul %186, %1, %cst_80 {dimension_numbers = #tpu.dot_dimension_numbers<[1], [0], [0], [1], [0, 0, 1, 1], [], []>} : vector<64x128xf32>, vector<128x8xf32>, vector<64x8xf32> -> vector<64x8xf32>
    %cst_81 = arith.constant dense<0.000000e+00> : vector<64x128xf32>
    %188 = tpu.matmul %187, %174, %cst_81 {dimension_numbers = #tpu.dot_dimension_numbers<[1], [0], [0], [1], [0, 0, 1, 1], [], []>} : vector<64x8xf32>, vector<8x128xf32>, vector<64x128xf32> -> vector<64x128xf32>
    %189 = arith.addf %172, %188 : vector<64x128xf32>
    %c11 = arith.constant 11 : index
    %c0_82 = arith.constant 0 : index
    %c0_83 = arith.constant 0 : index
    %190 = vector.load %arg4[%c11, %c0_82, %c0_83] : memref<16x8x128xf32, #tpu.memory_space<vmem>>, vector<1x8x128xf32>
    %191 = vector.shape_cast %190 : vector<1x8x128xf32> to vector<8x128xf32>
    %cst_84 = arith.constant dense<0.000000e+00> : vector<64x8xf32>
    %192 = tpu.matmul %0, %191, %cst_84 {dimension_numbers = #tpu.dot_dimension_numbers<[1], [1], [0], [0], [0, 0, 1, 0], [], []>} : vector<64x128xf32>, vector<8x128xf32>, vector<64x8xf32> -> vector<64x8xf32>
    %cst_85 = arith.constant dense<0.000000e+00> : vector<64x128xf32>
    %193 = tpu.matmul %192, %1, %cst_85 {dimension_numbers = #tpu.dot_dimension_numbers<[1], [1], [0], [0], [0, 0, 1, 0], [], []>} : vector<64x8xf32>, vector<128x8xf32>, vector<64x128xf32> -> vector<64x128xf32>
    %cst_86 = arith.constant 2.000000e+00 : f32
    %194 = vector.broadcast %cst_86 : f32 to vector<64x128xf32>
    %195 = arith.mulf %194, %193 : vector<64x128xf32>
    %196 = vector.broadcast %2 : vector<1x128xf32> to vector<64x128xf32>
    %197 = arith.subf %196, %195 : vector<64x128xf32>
    %198 = tpu.reduce_index %197 {axis = 1 : i32, kind = #tpu.reduction_kind<arg_min>} : vector<64x128xf32> -> vector<64xi32>
    %199 = vector.shape_cast %198 : vector<64xi32> to vector<64x1xi32>
    %200 = vector.broadcast %199 : vector<64x1xi32> to vector<64x128xi32>
    %201 = arith.cmpi eq, %3, %200 : vector<64x128xi32>
    %202 = arith.extui %201 : vector<64x128xi1> to vector<64x128xi32>
    %203 = arith.sitofp %202 : vector<64x128xi32> to vector<64x128xf32>
    %cst_87 = arith.constant dense<0.000000e+00> : vector<64x8xf32>
    %204 = tpu.matmul %203, %1, %cst_87 {dimension_numbers = #tpu.dot_dimension_numbers<[1], [0], [0], [1], [0, 0, 1, 1], [], []>} : vector<64x128xf32>, vector<128x8xf32>, vector<64x8xf32> -> vector<64x8xf32>
    %cst_88 = arith.constant dense<0.000000e+00> : vector<64x128xf32>
    %205 = tpu.matmul %204, %191, %cst_88 {dimension_numbers = #tpu.dot_dimension_numbers<[1], [0], [0], [1], [0, 0, 1, 1], [], []>} : vector<64x8xf32>, vector<8x128xf32>, vector<64x128xf32> -> vector<64x128xf32>
    %206 = arith.addf %189, %205 : vector<64x128xf32>
    %c12 = arith.constant 12 : index
    %c0_89 = arith.constant 0 : index
    %c0_90 = arith.constant 0 : index
    %207 = vector.load %arg4[%c12, %c0_89, %c0_90] : memref<16x8x128xf32, #tpu.memory_space<vmem>>, vector<1x8x128xf32>
    %208 = vector.shape_cast %207 : vector<1x8x128xf32> to vector<8x128xf32>
    %cst_91 = arith.constant dense<0.000000e+00> : vector<64x8xf32>
    %209 = tpu.matmul %0, %208, %cst_91 {dimension_numbers = #tpu.dot_dimension_numbers<[1], [1], [0], [0], [0, 0, 1, 0], [], []>} : vector<64x128xf32>, vector<8x128xf32>, vector<64x8xf32> -> vector<64x8xf32>
    %cst_92 = arith.constant dense<0.000000e+00> : vector<64x128xf32>
    %210 = tpu.matmul %209, %1, %cst_92 {dimension_numbers = #tpu.dot_dimension_numbers<[1], [1], [0], [0], [0, 0, 1, 0], [], []>} : vector<64x8xf32>, vector<128x8xf32>, vector<64x128xf32> -> vector<64x128xf32>
    %cst_93 = arith.constant 2.000000e+00 : f32
    %211 = vector.broadcast %cst_93 : f32 to vector<64x128xf32>
    %212 = arith.mulf %211, %210 : vector<64x128xf32>
    %213 = vector.broadcast %2 : vector<1x128xf32> to vector<64x128xf32>
    %214 = arith.subf %213, %212 : vector<64x128xf32>
    %215 = tpu.reduce_index %214 {axis = 1 : i32, kind = #tpu.reduction_kind<arg_min>} : vector<64x128xf32> -> vector<64xi32>
    %216 = vector.shape_cast %215 : vector<64xi32> to vector<64x1xi32>
    %217 = vector.broadcast %216 : vector<64x1xi32> to vector<64x128xi32>
    %218 = arith.cmpi eq, %3, %217 : vector<64x128xi32>
    %219 = arith.extui %218 : vector<64x128xi1> to vector<64x128xi32>
    %220 = arith.sitofp %219 : vector<64x128xi32> to vector<64x128xf32>
    %cst_94 = arith.constant dense<0.000000e+00> : vector<64x8xf32>
    %221 = tpu.matmul %220, %1, %cst_94 {dimension_numbers = #tpu.dot_dimension_numbers<[1], [0], [0], [1], [0, 0, 1, 1], [], []>} : vector<64x128xf32>, vector<128x8xf32>, vector<64x8xf32> -> vector<64x8xf32>
    %cst_95 = arith.constant dense<0.000000e+00> : vector<64x128xf32>
    %222 = tpu.matmul %221, %208, %cst_95 {dimension_numbers = #tpu.dot_dimension_numbers<[1], [0], [0], [1], [0, 0, 1, 1], [], []>} : vector<64x8xf32>, vector<8x128xf32>, vector<64x128xf32> -> vector<64x128xf32>
    %223 = arith.addf %206, %222 : vector<64x128xf32>
    %c13 = arith.constant 13 : index
    %c0_96 = arith.constant 0 : index
    %c0_97 = arith.constant 0 : index
    %224 = vector.load %arg4[%c13, %c0_96, %c0_97] : memref<16x8x128xf32, #tpu.memory_space<vmem>>, vector<1x8x128xf32>
    %225 = vector.shape_cast %224 : vector<1x8x128xf32> to vector<8x128xf32>
    %cst_98 = arith.constant dense<0.000000e+00> : vector<64x8xf32>
    %226 = tpu.matmul %0, %225, %cst_98 {dimension_numbers = #tpu.dot_dimension_numbers<[1], [1], [0], [0], [0, 0, 1, 0], [], []>} : vector<64x128xf32>, vector<8x128xf32>, vector<64x8xf32> -> vector<64x8xf32>
    %cst_99 = arith.constant dense<0.000000e+00> : vector<64x128xf32>
    %227 = tpu.matmul %226, %1, %cst_99 {dimension_numbers = #tpu.dot_dimension_numbers<[1], [1], [0], [0], [0, 0, 1, 0], [], []>} : vector<64x8xf32>, vector<128x8xf32>, vector<64x128xf32> -> vector<64x128xf32>
    %cst_100 = arith.constant 2.000000e+00 : f32
    %228 = vector.broadcast %cst_100 : f32 to vector<64x128xf32>
    %229 = arith.mulf %228, %227 : vector<64x128xf32>
    %230 = vector.broadcast %2 : vector<1x128xf32> to vector<64x128xf32>
    %231 = arith.subf %230, %229 : vector<64x128xf32>
    %232 = tpu.reduce_index %231 {axis = 1 : i32, kind = #tpu.reduction_kind<arg_min>} : vector<64x128xf32> -> vector<64xi32>
    %233 = vector.shape_cast %232 : vector<64xi32> to vector<64x1xi32>
    %234 = vector.broadcast %233 : vector<64x1xi32> to vector<64x128xi32>
    %235 = arith.cmpi eq, %3, %234 : vector<64x128xi32>
    %236 = arith.extui %235 : vector<64x128xi1> to vector<64x128xi32>
    %237 = arith.sitofp %236 : vector<64x128xi32> to vector<64x128xf32>
    %cst_101 = arith.constant dense<0.000000e+00> : vector<64x8xf32>
    %238 = tpu.matmul %237, %1, %cst_101 {dimension_numbers = #tpu.dot_dimension_numbers<[1], [0], [0], [1], [0, 0, 1, 1], [], []>} : vector<64x128xf32>, vector<128x8xf32>, vector<64x8xf32> -> vector<64x8xf32>
    %cst_102 = arith.constant dense<0.000000e+00> : vector<64x128xf32>
    %239 = tpu.matmul %238, %225, %cst_102 {dimension_numbers = #tpu.dot_dimension_numbers<[1], [0], [0], [1], [0, 0, 1, 1], [], []>} : vector<64x8xf32>, vector<8x128xf32>, vector<64x128xf32> -> vector<64x128xf32>
    %240 = arith.addf %223, %239 : vector<64x128xf32>
    %c14 = arith.constant 14 : index
    %c0_103 = arith.constant 0 : index
    %c0_104 = arith.constant 0 : index
    %241 = vector.load %arg4[%c14, %c0_103, %c0_104] : memref<16x8x128xf32, #tpu.memory_space<vmem>>, vector<1x8x128xf32>
    %242 = vector.shape_cast %241 : vector<1x8x128xf32> to vector<8x128xf32>
    %cst_105 = arith.constant dense<0.000000e+00> : vector<64x8xf32>
    %243 = tpu.matmul %0, %242, %cst_105 {dimension_numbers = #tpu.dot_dimension_numbers<[1], [1], [0], [0], [0, 0, 1, 0], [], []>} : vector<64x128xf32>, vector<8x128xf32>, vector<64x8xf32> -> vector<64x8xf32>
    %cst_106 = arith.constant dense<0.000000e+00> : vector<64x128xf32>
    %244 = tpu.matmul %243, %1, %cst_106 {dimension_numbers = #tpu.dot_dimension_numbers<[1], [1], [0], [0], [0, 0, 1, 0], [], []>} : vector<64x8xf32>, vector<128x8xf32>, vector<64x128xf32> -> vector<64x128xf32>
    %cst_107 = arith.constant 2.000000e+00 : f32
    %245 = vector.broadcast %cst_107 : f32 to vector<64x128xf32>
    %246 = arith.mulf %245, %244 : vector<64x128xf32>
    %247 = vector.broadcast %2 : vector<1x128xf32> to vector<64x128xf32>
    %248 = arith.subf %247, %246 : vector<64x128xf32>
    %249 = tpu.reduce_index %248 {axis = 1 : i32, kind = #tpu.reduction_kind<arg_min>} : vector<64x128xf32> -> vector<64xi32>
    %250 = vector.shape_cast %249 : vector<64xi32> to vector<64x1xi32>
    %251 = vector.broadcast %250 : vector<64x1xi32> to vector<64x128xi32>
    %252 = arith.cmpi eq, %3, %251 : vector<64x128xi32>
    %253 = arith.extui %252 : vector<64x128xi1> to vector<64x128xi32>
    %254 = arith.sitofp %253 : vector<64x128xi32> to vector<64x128xf32>
    %cst_108 = arith.constant dense<0.000000e+00> : vector<64x8xf32>
    %255 = tpu.matmul %254, %1, %cst_108 {dimension_numbers = #tpu.dot_dimension_numbers<[1], [0], [0], [1], [0, 0, 1, 1], [], []>} : vector<64x128xf32>, vector<128x8xf32>, vector<64x8xf32> -> vector<64x8xf32>
    %cst_109 = arith.constant dense<0.000000e+00> : vector<64x128xf32>
    %256 = tpu.matmul %255, %242, %cst_109 {dimension_numbers = #tpu.dot_dimension_numbers<[1], [0], [0], [1], [0, 0, 1, 1], [], []>} : vector<64x8xf32>, vector<8x128xf32>, vector<64x128xf32> -> vector<64x128xf32>
    %257 = arith.addf %240, %256 : vector<64x128xf32>
    %c15 = arith.constant 15 : index
    %c0_110 = arith.constant 0 : index
    %c0_111 = arith.constant 0 : index
    %258 = vector.load %arg4[%c15, %c0_110, %c0_111] : memref<16x8x128xf32, #tpu.memory_space<vmem>>, vector<1x8x128xf32>
    %259 = vector.shape_cast %258 : vector<1x8x128xf32> to vector<8x128xf32>
    %cst_112 = arith.constant dense<0.000000e+00> : vector<64x8xf32>
    %260 = tpu.matmul %0, %259, %cst_112 {dimension_numbers = #tpu.dot_dimension_numbers<[1], [1], [0], [0], [0, 0, 1, 0], [], []>} : vector<64x128xf32>, vector<8x128xf32>, vector<64x8xf32> -> vector<64x8xf32>
    %cst_113 = arith.constant dense<0.000000e+00> : vector<64x128xf32>
    %261 = tpu.matmul %260, %1, %cst_113 {dimension_numbers = #tpu.dot_dimension_numbers<[1], [1], [0], [0], [0, 0, 1, 0], [], []>} : vector<64x8xf32>, vector<128x8xf32>, vector<64x128xf32> -> vector<64x128xf32>
    %cst_114 = arith.constant 2.000000e+00 : f32
    %262 = vector.broadcast %cst_114 : f32 to vector<64x128xf32>
    %263 = arith.mulf %262, %261 : vector<64x128xf32>
    %264 = vector.broadcast %2 : vector<1x128xf32> to vector<64x128xf32>
    %265 = arith.subf %264, %263 : vector<64x128xf32>
    %266 = tpu.reduce_index %265 {axis = 1 : i32, kind = #tpu.reduction_kind<arg_min>} : vector<64x128xf32> -> vector<64xi32>
    %267 = vector.shape_cast %266 : vector<64xi32> to vector<64x1xi32>
    %268 = vector.broadcast %267 : vector<64x1xi32> to vector<64x128xi32>
    %269 = arith.cmpi eq, %3, %268 : vector<64x128xi32>
    %270 = arith.extui %269 : vector<64x128xi1> to vector<64x128xi32>
    %271 = arith.sitofp %270 : vector<64x128xi32> to vector<64x128xf32>
    %cst_115 = arith.constant dense<0.000000e+00> : vector<64x8xf32>
    %272 = tpu.matmul %271, %1, %cst_115 {dimension_numbers = #tpu.dot_dimension_numbers<[1], [0], [0], [1], [0, 0, 1, 1], [], []>} : vector<64x128xf32>, vector<128x8xf32>, vector<64x8xf32> -> vector<64x8xf32>
    %cst_116 = arith.constant dense<0.000000e+00> : vector<64x128xf32>
    %273 = tpu.matmul %272, %259, %cst_116 {dimension_numbers = #tpu.dot_dimension_numbers<[1], [0], [0], [1], [0, 0, 1, 1], [], []>} : vector<64x8xf32>, vector<8x128xf32>, vector<64x128xf32> -> vector<64x128xf32>
    %274 = arith.addf %257, %273 : vector<64x128xf32>
    %c0_117 = arith.constant 0 : index
    %c0_118 = arith.constant 0 : index
    %275 = vector.load %arg5[%c0_117, %c0_118] : memref<64x128xf32, #tpu.memory_space<vmem>>, vector<64x128xf32>
    tpu.vector_store %arg5[%c0_117, %c0_118], %274 {strides = array<i32>} : memref<64x128xf32, #tpu.memory_space<vmem>>, vector<64x128xf32>,
    %276 = tpu.iota {dimensions = array<i32: 0>} : vector<64x128xi32>
    %277 = tpu.iota {dimensions = array<i32: 1>} : vector<64x128xi32>
    %c64_i32 = arith.constant 64 : i32
    %278 = arith.muli %arg0, %c64_i32 : i32
    %279 = vector.broadcast %278 : i32 to vector<64x128xi32>
    %280 = arith.addi %279, %276 : vector<64x128xi32>
    %c128_i32 = arith.constant 128 : i32
    %281 = vector.broadcast %c128_i32 : i32 to vector<64x128xi32>
    %282 = arith.muli %280, %281 : vector<64x128xi32>
    %283 = arith.addi %282, %277 : vector<64x128xi32>
    %c8192_i32 = arith.constant 8192 : i32
    %284 = vector.broadcast %c8192_i32 : i32 to vector<64x128xi32>
    %285 = arith.cmpi slt, %283, %284 : vector<64x128xi32>
    %286 = arith.extui %285 : vector<64x128xi1> to vector<64x128xi32>
    %287 = arith.sitofp %286 : vector<64x128xi32> to vector<64x128xf32>
    %288 = arith.subf %274, %0 : vector<64x128xf32>
    %289 = arith.mulf %288, %287 : vector<64x128xf32>
    %290 = arith.mulf %289, %289 : vector<64x128xf32>
    %291 = vector.shape_cast %290 : vector<64x128xf32> to vector<8x8x128xf32>
    %cst_119 = arith.constant dense<0.000000e+00> : vector<8x128xf32>
    %292 = vector.multi_reduction <add>, %291, %cst_119 [0] : vector<8x8x128xf32> to vector<8x128xf32>
    %c0_120 = arith.constant 0 : index
    %c0_121 = arith.constant 0 : index
    %293 = vector.load %arg6[%c0_120, %c0_121] : memref<8x128xf32, #tpu.memory_space<vmem>>, vector<8x128xf32>
    tpu.vector_store %arg6[%c0_120, %c0_121], %292 {strides = array<i32>} : memref<8x128xf32, #tpu.memory_space<vmem>>, vector<8x128xf32>,
    return
  }
  func.func @transform_0(%arg0: i32) -> (i32, i32) {
    %c0_i32 = arith.constant 0 : i32
    %c0_i32_0 = arith.constant 0 : i32
    return %arg0, %c0_i32 : i32, i32
  }
  func.func @transform_1(%arg0: i32) -> (i32, i32) {
    %c0_i32 = arith.constant 0 : i32
    %c0_i32_0 = arith.constant 0 : i32
    %c0_i32_1 = arith.constant 0 : i32
    return %c0_i32, %c0_i32_0 : i32, i32
  }
  func.func @transform_2(%arg0: i32) -> (i32, i32) {
    %c0_i32 = arith.constant 0 : i32
    %c0_i32_0 = arith.constant 0 : i32
    %c0_i32_1 = arith.constant 0 : i32
    return %c0_i32, %c0_i32_0 : i32, i32
  }
  func.func @transform_3(%arg0: i32) -> (i32, i32, i32) {
    %c0_i32 = arith.constant 0 : i32
    %c0_i32_0 = arith.constant 0 : i32
    %c0_i32_1 = arith.constant 0 : i32
    %c0_i32_2 = arith.constant 0 : i32
    return %c0_i32, %c0_i32_0, %c0_i32_1 : i32, i32, i32
  }
  func.func @transform_4(%arg0: i32) -> (i32, i32) {
    %c0_i32 = arith.constant 0 : i32
    %c0_i32_0 = arith.constant 0 : i32
    return %arg0, %c0_i32 : i32, i32
  }
  func.func @transform_5(%arg0: i32) -> (i32, i32) {
    %c0_i32 = arith.constant 0 : i32
    %c0_i32_0 = arith.constant 0 : i32
    return %arg0, %c0_i32 : i32, i32
  }
}

</mosaic_0001>

<llo_original>
// kernel: tpu_custom_call.1
$region0: #{tpu_custom_call.1}
  #allocation0 [shape = 'u32[]', space=smem, size = 0x4, offset = 0x4, fixed_abs, tag = 'smem constant byte address 0x4 - core index']
  #allocation1 [shape = 'u32[72,128]{1,0:T(1,128)}', space=vmem, size = 0x9000, scoped, tag = 'internal scratch']
  %s0 = inlined_call_operand.hbm [shape: f32[64,128], index: 0, kind: input, shape index: {}]
  %s1 = inlined_call_operand.vmem [shape: f32[128,8], index: 1, kind: input, shape index: {}]
  %s2 = inlined_call_operand.vmem [shape: f32[1,128], index: 2, kind: input, shape index: {}]
  %s3 = inlined_call_operand.vmem [shape: f32[16,8,128], index: 3, kind: input, shape index: {}]
  %s4 = inlined_call_operand.hbm [shape: f32[64,128], index: 4, kind: output, shape index: {0}]
  %s5 = inlined_call_operand.hbm [shape: f32[8,128], index: 5, kind: output, shape index: {1}]
  %6 = xla_tuple %s4, %s5
  %s7 = sld [smem:[#allocation0]]
  $region38: #{tpu_custom_call.1} parent=0
    _
  %s9 = ssub.s32 1, %s7
  %s10 = scalar_select 0, %s9, %s7
  $region1: #{tpu_custom_call.1} parent=0
    #allocation2 [shape = 'u8[32768]{0}', space=vmem, size = 0x8000, scoped, tag = 'input window, operand 0, single buffered']
    #allocation3 [shape = 's32[1]{0}', space=sflag, size = 0x4, scoped, tag = 'scoped memory for tpu_custom_call.1']
    #allocation4 [shape = 's32[1]{0}', space=sflag, size = 0x4, scoped, tag = 'scoped memory for tpu_custom_call.1']
    #allocation5 [shape = 'u8[32768]{0}', space=vmem, size = 0x8000, scoped, tag = 'output window, operand 0, single buffered']
    #allocation6 [shape = 'u8[4096]{0}', space=vmem, size = 0x1000, scoped, tag = 'output window, operand 1, single buffered']
    #allocation7 [shape = 's32[1]{0}', space=sflag, size = 0x4, scoped, tag = 'scoped memory for tpu_custom_call.1']
    %11 = vsyncpa [#allocation3], 0
    %12 = vsyncpa [#allocation4], 0
    %13 = vsyncpa [#allocation7], 0
    // Predicated region
    $region2: #{tpu_custom_call.1} parent=1 // pred_check
      _
    $region3: #{tpu_custom_call.1} parent=1 // pred_check_branch
      %15 = sbr.rel (0) target = $region5
    $region4: #{tpu_custom_call.1} parent=1 // pred_region
      %17 = vsyncadd [#allocation3], 0
      %s18 = sshll.u32 %s0, 4
      %s19 = int_to_ptr.hbm [resolvable:$true] %s18
      %s20 = sshll.u32 [#allocation2], 4
      %s21 = int_to_ptr.vmem [resolvable:$true] %s20
      %26 = dma.hbm_to_vmem [thread:$0]  %s19, 1024, %s21, [#allocation3], 128, 128, 8
    $region5: #{tpu_custom_call.1} parent=1 // pred_fallthru
      _
    // Predicated region
    $region6: #{tpu_custom_call.1} parent=1 // pred_check
      _
    $region7: #{tpu_custom_call.1} parent=1 // pred_check_branch
      %28 = sbr.rel (0) target = $region9
    $region8: #{tpu_custom_call.1} parent=1 // pred_region
      _
    $region9: #{tpu_custom_call.1} parent=1 // pred_fallthru
      _
    // Predicated region
    $region10: #{tpu_custom_call.1} parent=1 // pred_check
      _
    $region11: #{tpu_custom_call.1} parent=1 // pred_check_branch
      %30 = sbr.rel (0) target = $region13
    $region12: #{tpu_custom_call.1} parent=1 // pred_region
      _
    $region13: #{tpu_custom_call.1} parent=1 // pred_fallthru
      _
    // Predicated region
    $region14: #{tpu_custom_call.1} parent=1 // pred_check
      _
    $region15: #{tpu_custom_call.1} parent=1 // pred_check_branch
      %32 = sbr.rel (0) target = $region17
    $region16: #{tpu_custom_call.1} parent=1 // pred_region
      _
    $region17: #{tpu_custom_call.1} parent=1 // pred_fallthru
      _
    // Predicated region
    $region18: #{tpu_custom_call.1} parent=1 // pred_check
      _
    $region19: #{tpu_custom_call.1} parent=1 // pred_check_branch
      %34 = sbr.rel (0) target = $region21
    $region20: #{tpu_custom_call.1} parent=1 // pred_region
      %36 = dma.done [#allocation3], 1024
    $region21: #{tpu_custom_call.1} parent=1 // pred_fallthru
      _
    %v37 = vld [vmem:[#allocation2] sm:$0xff]
    %v38 = vld [vmem:[#allocation2 + $0x8] sm:$0xff]
    %v39 = vld [vmem:[#allocation2 + $0x10] sm:$0xff]
    %v40 = vld [vmem:[#allocation2 + $0x18] sm:$0xff]
    %v41 = vld [vmem:[#allocation2 + $0x20] sm:$0xff]
    %v42 = vld [vmem:[#allocation2 + $0x28] sm:$0xff]
    %v43 = vld [vmem:[#allocation2 + $0x30] sm:$0xff]
    %v44 = vld [vmem:[#allocation2 + $0x38] sm:$0xff]
    %v45 = vld [vmem:[%s1] sm:$0xff]
    %v46 = vld [vmem:[%s1 + $0x8] sm:$0xff]
    %v47 = vld [vmem:[%s1 + $0x10] sm:$0xff]
    %v48 = vld [vmem:[%s1 + $0x18] sm:$0xff]
    %v49 = vld [vmem:[%s1 + $0x20] sm:$0xff]
    %v50 = vld [vmem:[%s1 + $0x28] sm:$0xff]
    %v51 = vld [vmem:[%s1 + $0x30] sm:$0xff]
    %v52 = vld [vmem:[%s1 + $0x38] sm:$0xff]
    %v53 = vld [vmem:[%s1 + $0x40] sm:$0xff]
    %v54 = vld [vmem:[%s1 + $0x48] sm:$0xff]
    %v55 = vld [vmem:[%s1 + $0x50] sm:$0xff]
    %v56 = vld [vmem:[%s1 + $0x58] sm:$0xff]
    %v57 = vld [vmem:[%s1 + $0x60] sm:$0xff]
    %v58 = vld [vmem:[%s1 + $0x68] sm:$0xff]
    %v59 = vld [vmem:[%s1 + $0x70] sm:$0xff]
    %v60 = vld [vmem:[%s1 + $0x78] sm:$0xff]
    %v61 = vld [vmem:[%s2] sm:$0x1]
    %v62 = vlaneseq
    %v63 = vand.u32 %v62, 127
    %v64 = vld [vmem:[%s3] sm:$0xff]
    %65 = vmatpush.xpose.msra.mxu0 0.0
    %66 = vmatpush.xpose.msra.mxu0 0.0
    %67 = vmatpush.xpose.msra.mxu0 0.0
    %68 = vmatpush.xpose.msra.mxu0 0.0
    %69 = vmatpush.xpose.msra.mxu0 0.0
    %70 = vmatpush.xpose.msra.mxu0 0.0
    %71 = vmatpush.xpose.msra.mxu0 0.0
    %72 = vmatpush.xpose.msra.mxu0 0.0
    %73 = vmatpush.xpose.msra.mxu0 0.0
    %74 = vmatpush.xpose.msra.mxu0 0.0
    %75 = vmatpush.xpose.msra.mxu0 0.0
    %76 = vmatpush.xpose.msra.mxu0 0.0
    %77 = vmatpush.xpose.msra.mxu0 0.0
    %78 = vmatpush.xpose.msra.mxu0 0.0
    %79 = vmatpush.xpose.msra.mxu0 0.0
    %80 = vmatpush.xpose.msra.mxu0 %v64
    %81 = vmatmul.f32.gmra.mxu0 %v37
    %v82 = vpop.f32.mrf.mxu0
    %v83 = vadd.f32 0.0, %v82
    %84 = vmatmul.f32.gmra.mxu0 %v38
    %v85 = vpop.f32.mrf.mxu0
    %v86 = vadd.f32 0.0, %v85
    %87 = vmatmul.f32.gmra.mxu0 %v39
    %v88 = vpop.f32.mrf.mxu0
    %v89 = vadd.f32 0.0, %v88
    %90 = vmatmul.f32.gmra.mxu0 %v40
    %v91 = vpop.f32.mrf.mxu0
    %v92 = vadd.f32 0.0, %v91
    %93 = vmatmul.f32.gmra.mxu0 %v41
    %v94 = vpop.f32.mrf.mxu0
    %v95 = vadd.f32 0.0, %v94
    %96 = vmatmul.f32.gmra.mxu0 %v42
    %v97 = vpop.f32.mrf.mxu0
    %v98 = vadd.f32 0.0, %v97
    %99 = vmatmul.f32.gmra.mxu0 %v43
    %v100 = vpop.f32.mrf.mxu0
    %v101 = vadd.f32 0.0, %v100
    %102 = vmatmul.f32.gmra.mxu0 %v44
    %v103 = vpop.f32.mrf.mxu0
    %v104 = vadd.f32 0.0, %v103
    %105 = vdwg.mxu0
    %vm106 = vcmask 64512
    %v108 = vsel %vm106, %v83, 0
    %v111 = vsel %vm106, %v86, 0
    %v114 = vsel %vm106, %v89, 0
    %v117 = vsel %vm106, %v92, 0
    %v120 = vsel %vm106, %v95, 0
    %v123 = vsel %vm106, %v98, 0
    %v126 = vsel %vm106, %v101, 0
    %v129 = vsel %vm106, %v104, 0
    %v132 = vsel %vm106, %v45, 0
    %v135 = vsel %vm106, %v46, 0
    %v138 = vsel %vm106, %v47, 0
    %v141 = vsel %vm106, %v48, 0
    %v144 = vsel %vm106, %v49, 0
    %v147 = vsel %vm106, %v50, 0
    %v150 = vsel %vm106, %v51, 0
    %v153 = vsel %vm106, %v52, 0
    %v156 = vsel %vm106, %v53, 0
    %v159 = vsel %vm106, %v54, 0
    %v162 = vsel %vm106, %v55, 0
    %v165 = vsel %vm106, %v56, 0
    %v168 = vsel %vm106, %v57, 0
    %v171 = vsel %vm106, %v58, 0
    %v174 = vsel %vm106, %v59, 0
    %v177 = vsel %vm106, %v60, 0
    %179 = vmatpush.xpose.msra.mxu0 %v177
    %180 = vmatpush.xpose.msra.mxu0 %v174
    %181 = vmatpush.xpose.msra.mxu0 %v171
    %182 = vmatpush.xpose.msra.mxu0 %v168
    %183 = vmatpush.xpose.msra.mxu0 %v165
    %184 = vmatpush.xpose.msra.mxu0 %v162
    %185 = vmatpush.xpose.msra.mxu0 %v159
    %186 = vmatpush.xpose.msra.mxu0 %v156
    %187 = vmatpush.xpose.msra.mxu0 %v153
    %188 = vmatpush.xpose.msra.mxu0 %v150
    %189 = vmatpush.xpose.msra.mxu0 %v147
    %190 = vmatpush.xpose.msra.mxu0 %v144
    %191 = vmatpush.xpose.msra.mxu0 %v141
    %192 = vmatpush.xpose.msra.mxu0 %v138
    %193 = vmatpush.xpose.msra.mxu0 %v135
    %194 = vmatpush.xpose.msra.mxu0 %v132
    %195 = vmatmul.f32.gmra.mxu0 %v108
    %v196 = vpop.f32.mrf.mxu0
    %v197 = vadd.f32 0.0, %v196
    %198 = vmatmul.f32.gmra.mxu0 %v111
    %v199 = vpop.f32.mrf.mxu0
    %v200 = vadd.f32 0.0, %v199
    %201 = vmatmul.f32.gmra.mxu0 %v114
    %v202 = vpop.f32.mrf.mxu0
    %v203 = vadd.f32 0.0, %v202
    %204 = vmatmul.f32.gmra.mxu0 %v117
    %v205 = vpop.f32.mrf.mxu0
    %v206 = vadd.f32 0.0, %v205
    %207 = vmatmul.f32.gmra.mxu0 %v120
    %v208 = vpop.f32.mrf.mxu0
    %v209 = vadd.f32 0.0, %v208
    %210 = vmatmul.f32.gmra.mxu0 %v123
    %v211 = vpop.f32.mrf.mxu0
    %v212 = vadd.f32 0.0, %v211
    %213 = vmatmul.f32.gmra.mxu0 %v126
    %v214 = vpop.f32.mrf.mxu0
    %v215 = vadd.f32 0.0, %v214
    %216 = vmatmul.f32.gmra.mxu0 %v129
    %v217 = vpop.f32.mrf.mxu0
    %v218 = vadd.f32 0.0, %v217
    %219 = vdwg.mxu0
    %v220 = vmul.f32 %v197, 2.0
    %v221 = vmul.f32 %v200, 2.0
    %v222 = vmul.f32 %v203, 2.0
    %v223 = vmul.f32 %v206, 2.0
    %v224 = vmul.f32 %v209, 2.0
    %v225 = vmul.f32 %v212, 2.0
    %v226 = vmul.f32 %v215, 2.0
    %v227 = vmul.f32 %v218, 2.0
    %v229 = vperm.slane %v61, 0
    %v231 = vsub.f32 %v229, %v220
    %v232 = vsub.f32 %v229, %v221
    %v233 = vsub.f32 %v229, %v222
    %v234 = vsub.f32 %v229, %v223
    %v235 = vsub.f32 %v229, %v224
    %v236 = vsub.f32 %v229, %v225
    %v237 = vsub.f32 %v229, %v226
    %v238 = vsub.f32 %v229, %v227
    %239 = vmin.index.xlane.f32.xlu0 %v231
    %v240 = vpop.xlane.xlu0 %239
    %241 = vmin.index.xlane.f32.xlu0 %v232
    %v242 = vpop.xlane.xlu0 %241
    %243 = vmin.index.xlane.f32.xlu0 %v233
    %v244 = vpop.xlane.xlu0 %243
    %245 = vmin.index.xlane.f32.xlu0 %v234
    %v246 = vpop.xlane.xlu0 %245
    %247 = vmin.index.xlane.f32.xlu0 %v235
    %v248 = vpop.xlane.xlu0 %247
    %249 = vmin.index.xlane.f32.xlu0 %v236
    %v250 = vpop.xlane.xlu0 %249
    %251 = vmin.index.xlane.f32.xlu0 %v237
    %v252 = vpop.xlane.xlu0 %251
    %253 = vmin.index.xlane.f32.xlu0 %v238
    %v254 = vpop.xlane.xlu0 %253
    %vm255 = vcmp.eq.s32.totalorder %v63, %v240
    %vm256 = vcmp.eq.s32.totalorder %v63, %v242
    %vm257 = vcmp.eq.s32.totalorder %v63, %v244
    %vm258 = vcmp.eq.s32.totalorder %v63, %v246
    %vm259 = vcmp.eq.s32.totalorder %v63, %v248
    %vm260 = vcmp.eq.s32.totalorder %v63, %v250
    %vm261 = vcmp.eq.s32.totalorder %v63, %v252
    %vm262 = vcmp.eq.s32.totalorder %v63, %v254
    %v263 = vsel %vm255, 1, 0
    %v264 = vsel %vm256, 1, 0
    %v265 = vsel %vm257, 1, 0
    %v266 = vsel %vm258, 1, 0
    %v267 = vsel %vm259, 1, 0
    %v268 = vsel %vm260, 1, 0
    %v269 = vsel %vm261, 1, 0
    %v270 = vsel %vm262, 1, 0
    %v271 = vcvt.s32.f32 %v263
    %v272 = vcvt.s32.f32 %v264
    %v273 = vcvt.s32.f32 %v265
    %v274 = vcvt.s32.f32 %v266
    %v275 = vcvt.s32.f32 %v267
    %v276 = vcvt.s32.f32 %v268
    %v277 = vcvt.s32.f32 %v269
    %v278 = vcvt.s32.f32 %v270
    %279 = vmatpush.msra.mxu0 %v60
    %280 = vmatpush.msra.mxu0 %v59
    %281 = vmatpush.msra.mxu0 %v58
    %282 = vmatpush.msra.mxu0 %v57
    %283 = vmatpush.msra.mxu0 %v56
    %284 = vmatpush.msra.mxu0 %v55
    %285 = vmatpush.msra.mxu0 %v54
    %286 = vmatpush.msra.mxu0 %v53
    %287 = vmatpush.msra.mxu0 %v52
    %288 = vmatpush.msra.mxu0 %v51
    %289 = vmatpush.msra.mxu0 %v50
    %290 = vmatpush.msra.mxu0 %v49
    %291 = vmatpush.msra.mxu0 %v48
    %292 = vmatpush.msra.mxu0 %v47
    %293 = vmatpush.msra.mxu0 %v46
    %294 = vmatpush.msra.mxu0 %v45
    %295 = vmatmul.f32.gmra.mxu0 %v271
    %v296 = vpop.f32.mrf.mxu0
    %v297 = vadd.f32 0.0, %v296
    %298 = vmatmul.f32.gmra.mxu0 %v272
    %v299 = vpop.f32.mrf.mxu0
    %v300 = vadd.f32 0.0, %v299
    %301 = vmatmul.f32.gmra.mxu0 %v273
    %v302 = vpop.f32.mrf.mxu0
    %v303 = vadd.f32 0.0, %v302
    %304 = vmatmul.f32.gmra.mxu0 %v274
    %v305 = vpop.f32.mrf.mxu0
    %v306 = vadd.f32 0.0, %v305
    %307 = vmatmul.f32.gmra.mxu0 %v275
    %v308 = vpop.f32.mrf.mxu0
    %v309 = vadd.f32 0.0, %v308
    %310 = vmatmul.f32.gmra.mxu0 %v276
    %v311 = vpop.f32.mrf.mxu0
    %v312 = vadd.f32 0.0, %v311
    %313 = vmatmul.f32.gmra.mxu0 %v277
    %v314 = vpop.f32.mrf.mxu0
    %v315 = vadd.f32 0.0, %v314
    %316 = vmatmul.f32.gmra.mxu0 %v278
    %v317 = vpop.f32.mrf.mxu0
    %v318 = vadd.f32 0.0, %v317
    %319 = vdwg.mxu0
    %s320 = scalar_lea.vmem %s3, 8
    %v321 = vld [vmem:[%s320] sm:$0xff]
    %322 = vmatpush.xpose.msra.mxu0 0.0
    %323 = vmatpush.xpose.msra.mxu0 0.0
    %324 = vmatpush.xpose.msra.mxu0 0.0
    %325 = vmatpush.xpose.msra.mxu0 0.0
    %326 = vmatpush.xpose.msra.mxu0 0.0
    %327 = vmatpush.xpose.msra.mxu0 0.0
    %328 = vmatpush.xpose.msra.mxu0 0.0
    %329 = vmatpush.xpose.msra.mxu0 0.0
    %330 = vmatpush.xpose.msra.mxu0 0.0
    %331 = vmatpush.xpose.msra.mxu0 0.0
    %332 = vmatpush.xpose.msra.mxu0 0.0
    %333 = vmatpush.xpose.msra.mxu0 0.0
    %334 = vmatpush.xpose.msra.mxu0 0.0
    %335 = vmatpush.xpose.msra.mxu0 0.0
    %336 = vmatpush.xpose.msra.mxu0 0.0
    %337 = vmatpush.xpose.msra.mxu0 %v321
    %338 = vmatmul.f32.gmra.mxu0 %v37
    %v339 = vpop.f32.mrf.mxu0
    %v340 = vadd.f32 0.0, %v339
    %341 = vmatmul.f32.gmra.mxu0 %v38
    %v342 = vpop.f32.mrf.mxu0
    %v343 = vadd.f32 0.0, %v342
    %344 = vmatmul.f32.gmra.mxu0 %v39
    %v345 = vpop.f32.mrf.mxu0
    %v346 = vadd.f32 0.0, %v345
    %347 = vmatmul.f32.gmra.mxu0 %v40
    %v348 = vpop.f32.mrf.mxu0
    %v349 = vadd.f32 0.0, %v348
    %350 = vmatmul.f32.gmra.mxu0 %v41
    %v351 = vpop.f32.mrf.mxu0
    %v352 = vadd.f32 0.0, %v351
    %353 = vmatmul.f32.gmra.mxu0 %v42
    %v354 = vpop.f32.mrf.mxu0
    %v355 = vadd.f32 0.0, %v354
    %356 = vmatmul.f32.gmra.mxu0 %v43
    %v357 = vpop.f32.mrf.mxu0
    %v358 = vadd.f32 0.0, %v357
    %359 = vmatmul.f32.gmra.mxu0 %v44
    %v360 = vpop.f32.mrf.mxu0
    %v361 = vadd.f32 0.0, %v360
    %362 = vdwg.mxu0
    %v364 = vsel %vm106, %v340, 0
    %v367 = vsel %vm106, %v343, 0
    %v370 = vsel %vm106, %v346, 0
    %v373 = vsel %vm106, %v349, 0
    %v376 = vsel %vm106, %v352, 0
    %v379 = vsel %vm106, %v355, 0
    %v382 = vsel %vm106, %v358, 0
    %v385 = vsel %vm106, %v361, 0
    %387 = vmatpush.xpose.msra.mxu0 %v177
    %388 = vmatpush.xpose.msra.mxu0 %v174
    %389 = vmatpush.xpose.msra.mxu0 %v171
    %390 = vmatpush.xpose.msra.mxu0 %v168
    %391 = vmatpush.xpose.msra.mxu0 %v165
    %392 = vmatpush.xpose.msra.mxu0 %v162
    %393 = vmatpush.xpose.msra.mxu0 %v159
    %394 = vmatpush.xpose.msra.mxu0 %v156
    %395 = vmatpush.xpose.msra.mxu0 %v153
    %396 = vmatpush.xpose.msra.mxu0 %v150
    %397 = vmatpush.xpose.msra.mxu0 %v147
    %398 = vmatpush.xpose.msra.mxu0 %v144
    %399 = vmatpush.xpose.msra.mxu0 %v141
    %400 = vmatpush.xpose.msra.mxu0 %v138
    %401 = vmatpush.xpose.msra.mxu0 %v135
    %402 = vmatpush.xpose.msra.mxu0 %v132
    %403 = vmatmul.f32.gmra.mxu0 %v364
    %v404 = vpop.f32.mrf.mxu0
    %v405 = vadd.f32 0.0, %v404
    %406 = vmatmul.f32.gmra.mxu0 %v367
    %v407 = vpop.f32.mrf.mxu0
    %v408 = vadd.f32 0.0, %v407
    %409 = vmatmul.f32.gmra.mxu0 %v370
    %v410 = vpop.f32.mrf.mxu0
    %v411 = vadd.f32 0.0, %v410
    %412 = vmatmul.f32.gmra.mxu0 %v373
    %v413 = vpop.f32.mrf.mxu0
    %v414 = vadd.f32 0.0, %v413
    %415 = vmatmul.f32.gmra.mxu0 %v376
    %v416 = vpop.f32.mrf.mxu0
    %v417 = vadd.f32 0.0, %v416
    %418 = vmatmul.f32.gmra.mxu0 %v379
    %v419 = vpop.f32.mrf.mxu0
    %v420 = vadd.f32 0.0, %v419
    %421 = vmatmul.f32.gmra.mxu0 %v382
    %v422 = vpop.f32.mrf.mxu0
    %v423 = vadd.f32 0.0, %v422
    %424 = vmatmul.f32.gmra.mxu0 %v385
    %v425 = vpop.f32.mrf.mxu0
    %v426 = vadd.f32 0.0, %v425
    %427 = vdwg.mxu0
    %v428 = vmul.f32 %v405, 2.0
    %v429 = vmul.f32 %v408, 2.0
    %v430 = vmul.f32 %v411, 2.0
    %v431 = vmul.f32 %v414, 2.0
    %v432 = vmul.f32 %v417, 2.0
    %v433 = vmul.f32 %v420, 2.0
    %v434 = vmul.f32 %v423, 2.0
    %v435 = vmul.f32 %v426, 2.0
    %v436 = vsub.f32 %v229, %v428
    %v437 = vsub.f32 %v229, %v429
    %v438 = vsub.f32 %v229, %v430
    %v439 = vsub.f32 %v229, %v431
    %v440 = vsub.f32 %v229, %v432
    %v441 = vsub.f32 %v229, %v433
    %v442 = vsub.f32 %v229, %v434
    %v443 = vsub.f32 %v229, %v435
    %444 = vmin.index.xlane.f32.xlu0 %v436
    %v445 = vpop.xlane.xlu0 %444
    %446 = vmin.index.xlane.f32.xlu0 %v437
    %v447 = vpop.xlane.xlu0 %446
    %448 = vmin.index.xlane.f32.xlu0 %v438
    %v449 = vpop.xlane.xlu0 %448
    %450 = vmin.index.xlane.f32.xlu0 %v439
    %v451 = vpop.xlane.xlu0 %450
    %452 = vmin.index.xlane.f32.xlu0 %v440
    %v453 = vpop.xlane.xlu0 %452
    %454 = vmin.index.xlane.f32.xlu0 %v441
    %v455 = vpop.xlane.xlu0 %454
    %456 = vmin.index.xlane.f32.xlu0 %v442
    %v457 = vpop.xlane.xlu0 %456
    %458 = vmin.index.xlane.f32.xlu0 %v443
    %v459 = vpop.xlane.xlu0 %458
    %vm460 = vcmp.eq.s32.totalorder %v63, %v445
    %vm461 = vcmp.eq.s32.totalorder %v63, %v447
    %vm462 = vcmp.eq.s32.totalorder %v63, %v449
    %vm463 = vcmp.eq.s32.totalorder %v63, %v451
    %vm464 = vcmp.eq.s32.totalorder %v63, %v453
    %vm465 = vcmp.eq.s32.totalorder %v63, %v455
    %vm466 = vcmp.eq.s32.totalorder %v63, %v457
    %vm467 = vcmp.eq.s32.totalorder %v63, %v459
    %v468 = vsel %vm460, 1, 0
    %v469 = vsel %vm461, 1, 0
    %v470 = vsel %vm462, 1, 0
    %v471 = vsel %vm463, 1, 0
    %v472 = vsel %vm464, 1, 0
    %v473 = vsel %vm465, 1, 0
    %v474 = vsel %vm466, 1, 0
    %v475 = vsel %vm467, 1, 0
    %v476 = vcvt.s32.f32 %v468
    %v477 = vcvt.s32.f32 %v469
    %v478 = vcvt.s32.f32 %v470
    %v479 = vcvt.s32.f32 %v471
    %v480 = vcvt.s32.f32 %v472
    %v481 = vcvt.s32.f32 %v473
    %v482 = vcvt.s32.f32 %v474
    %v483 = vcvt.s32.f32 %v475
    %484 = vmatpush.msra.mxu0 %v60
    %485 = vmatpush.msra.mxu0 %v59
    %486 = vmatpush.msra.mxu0 %v58
    %487 = vmatpush.msra.mxu0 %v57
    %488 = vmatpush.msra.mxu0 %v56
    %489 = vmatpush.msra.mxu0 %v55
    %490 = vmatpush.msra.mxu0 %v54
    %491 = vmatpush.msra.mxu0 %v53
    %492 = vmatpush.msra.mxu0 %v52
    %493 = vmatpush.msra.mxu0 %v51
    %494 = vmatpush.msra.mxu0 %v50
    %495 = vmatpush.msra.mxu0 %v49
    %496 = vmatpush.msra.mxu0 %v48
    %497 = vmatpush.msra.mxu0 %v47
    %498 = vmatpush.msra.mxu0 %v46
    %499 = vmatpush.msra.mxu0 %v45
    %500 = vmatmul.f32.gmra.mxu0 %v476
    %v501 = vpop.f32.mrf.mxu0
    %v502 = vadd.f32 0.0, %v501
    %503 = vmatmul.f32.gmra.mxu0 %v477
    %v504 = vpop.f32.mrf.mxu0
    %v505 = vadd.f32 0.0, %v504
    %506 = vmatmul.f32.gmra.mxu0 %v478
    %v507 = vpop.f32.mrf.mxu0
    %v508 = vadd.f32 0.0, %v507
    %509 = vmatmul.f32.gmra.mxu0 %v479
    %v510 = vpop.f32.mrf.mxu0
    %v511 = vadd.f32 0.0, %v510
    %512 = vmatmul.f32.gmra.mxu0 %v480
    %v513 = vpop.f32.mrf.mxu0
    %v514 = vadd.f32 0.0, %v513
    %515 = vmatmul.f32.gmra.mxu0 %v481
    %v516 = vpop.f32.mrf.mxu0
    %v517 = vadd.f32 0.0, %v516
    %518 = vmatmul.f32.gmra.mxu0 %v482
    %v519 = vpop.f32.mrf.mxu0
    %v520 = vadd.f32 0.0, %v519
    %521 = vmatmul.f32.gmra.mxu0 %v483
    %v522 = vpop.f32.mrf.mxu0
    %v523 = vadd.f32 0.0, %v522
    %524 = vdwg.mxu0
    %v526 = vsel %vm106, %v502, 0
    %v529 = vsel %vm106, %v505, 0
    %v532 = vsel %vm106, %v508, 0
    %v535 = vsel %vm106, %v511, 0
    %v538 = vsel %vm106, %v514, 0
    %v541 = vsel %vm106, %v517, 0
    %v544 = vsel %vm106, %v520, 0
    %v547 = vsel %vm106, %v523, 0
    %549 = vmatpush.msra.mxu0 0.0
    %550 = vmatpush.msra.mxu0 0.0
    %551 = vmatpush.msra.mxu0 0.0
    %552 = vmatpush.msra.mxu0 0.0
    %553 = vmatpush.msra.mxu0 0.0
    %554 = vmatpush.msra.mxu0 0.0
    %555 = vmatpush.msra.mxu0 0.0
    %556 = vmatpush.msra.mxu0 0.0
    %557 = vmatpush.msra.mxu0 0.0
    %558 = vmatpush.msra.mxu0 0.0
    %559 = vmatpush.msra.mxu0 0.0
    %560 = vmatpush.msra.mxu0 0.0
    %561 = vmatpush.msra.mxu0 0.0
    %562 = vmatpush.msra.mxu0 0.0
    %563 = vmatpush.msra.mxu0 0.0
    %564 = vmatpush.msra.mxu0 %v321
    %565 = vmatmul.f32.gmra.mxu0 %v526
    %v566 = vpop.f32.mrf.mxu0
    %v567 = vadd.f32 0.0, %v566
    %568 = vmatmul.f32.gmra.mxu0 %v529
    %v569 = vpop.f32.mrf.mxu0
    %v570 = vadd.f32 0.0, %v569
    %571 = vmatmul.f32.gmra.mxu0 %v532
    %v572 = vpop.f32.mrf.mxu0
    %v573 = vadd.f32 0.0, %v572
    %574 = vmatmul.f32.gmra.mxu0 %v535
    %v575 = vpop.f32.mrf.mxu0
    %v576 = vadd.f32 0.0, %v575
    %577 = vmatmul.f32.gmra.mxu0 %v538
    %v578 = vpop.f32.mrf.mxu0
    %v579 = vadd.f32 0.0, %v578
    %580 = vmatmul.f32.gmra.mxu0 %v541
    %v581 = vpop.f32.mrf.mxu0
    %v582 = vadd.f32 0.0, %v581
    %583 = vmatmul.f32.gmra.mxu0 %v544
    %v584 = vpop.f32.mrf.mxu0
    %v585 = vadd.f32 0.0, %v584
    %586 = vmatmul.f32.gmra.mxu0 %v547
    %v587 = vpop.f32.mrf.mxu0
    %v588 = vadd.f32 0.0, %v587
    %589 = vdwg.mxu0
    %v591 = vsel %vm106, %v297, 0
    %v594 = vsel %vm106, %v300, 0
    %v597 = vsel %vm106, %v303, 0
    %v600 = vsel %vm106, %v306, 0
    %v603 = vsel %vm106, %v309, 0
    %v606 = vsel %vm106, %v312, 0
    %v609 = vsel %vm106, %v315, 0
    %v612 = vsel %vm106, %v318, 0
    %614 = vmatpush.msra.mxu0 0.0
    %615 = vmatpush.msra.mxu0 0.0
    %616 = vmatpush.msra.mxu0 0.0
    %617 = vmatpush.msra.mxu0 0.0
    %618 = vmatpush.msra.mxu0 0.0
    %619 = vmatpush.msra.mxu0 0.0
    %620 = vmatpush.msra.mxu0 0.0
    %621 = vmatpush.msra.mxu0 0.0
    %622 = vmatpush.msra.mxu0 0.0
    %623 = vmatpush.msra.mxu0 0.0
    %624 = vmatpush.msra.mxu0 0.0
    %625 = vmatpush.msra.mxu0 0.0
    %626 = vmatpush.msra.mxu0 0.0
    %627 = vmatpush.msra.mxu0 0.0
    %628 = vmatpush.msra.mxu0 0.0
    %629 = vmatpush.msra.mxu0 %v64
    %630 = vmatmul.f32.gmra.mxu0 %v591
    %v631 = vpop.f32.mrf.mxu0
    %v632 = vadd.f32 %v567, %v631
    %633 = vmatmul.f32.gmra.mxu0 %v594
    %v634 = vpop.f32.mrf.mxu0
    %v635 = vadd.f32 %v570, %v634
    %636 = vmatmul.f32.gmra.mxu0 %v597
    %v637 = vpop.f32.mrf.mxu0
    %v638 = vadd.f32 %v573, %v637
    %639 = vmatmul.f32.gmra.mxu0 %v600
    %v640 = vpop.f32.mrf.mxu0
    %v641 = vadd.f32 %v576, %v640
    %642 = vmatmul.f32.gmra.mxu0 %v603
    %v643 = vpop.f32.mrf.mxu0
    %v644 = vadd.f32 %v579, %v643
    %645 = vmatmul.f32.gmra.mxu0 %v606
    %v646 = vpop.f32.mrf.mxu0
    %v647 = vadd.f32 %v582, %v646
    %648 = vmatmul.f32.gmra.mxu0 %v609
    %v649 = vpop.f32.mrf.mxu0
    %v650 = vadd.f32 %v585, %v649
    %651 = vmatmul.f32.gmra.mxu0 %v612
    %v652 = vpop.f32.mrf.mxu0
    %v653 = vadd.f32 %v588, %v652
    %654 = vdwg.mxu0
    %s655 = scalar_lea.vmem %s3, 16
    %v656 = vld [vmem:[%s655] sm:$0xff]
    %657 = vmatpush.xpose.msra.mxu0 0.0
    %658 = vmatpush.xpose.msra.mxu0 0.0
    %659 = vmatpush.xpose.msra.mxu0 0.0
    %660 = vmatpush.xpose.msra.mxu0 0.0
    %661 = vmatpush.xpose.msra.mxu0 0.0
    %662 = vmatpush.xpose.msra.mxu0 0.0
    %663 = vmatpush.xpose.msra.mxu0 0.0
    %664 = vmatpush.xpose.msra.mxu0 0.0
    %665 = vmatpush.xpose.msra.mxu0 0.0
    %666 = vmatpush.xpose.msra.mxu0 0.0
    %667 = vmatpush.xpose.msra.mxu0 0.0
    %668 = vmatpush.xpose.msra.mxu0 0.0
    %669 = vmatpush.xpose.msra.mxu0 0.0
    %670 = vmatpush.xpose.msra.mxu0 0.0
    %671 = vmatpush.xpose.msra.mxu0 0.0
    %672 = vmatpush.xpose.msra.mxu0 %v656
    %673 = vmatmul.f32.gmra.mxu0 %v37
    %v674 = vpop.f32.mrf.mxu0
    %v675 = vadd.f32 0.0, %v674
    %676 = vmatmul.f32.gmra.mxu0 %v38
    %v677 = vpop.f32.mrf.mxu0
    %v678 = vadd.f32 0.0, %v677
    %679 = vmatmul.f32.gmra.mxu0 %v39
    %v680 = vpop.f32.mrf.mxu0
    %v681 = vadd.f32 0.0, %v680
    %682 = vmatmul.f32.gmra.mxu0 %v40
    %v683 = vpop.f32.mrf.mxu0
    %v684 = vadd.f32 0.0, %v683
    %685 = vmatmul.f32.gmra.mxu0 %v41
    %v686 = vpop.f32.mrf.mxu0
    %v687 = vadd.f32 0.0, %v686
    %688 = vmatmul.f32.gmra.mxu0 %v42
    %v689 = vpop.f32.mrf.mxu0
    %v690 = vadd.f32 0.0, %v689
    %691 = vmatmul.f32.gmra.mxu0 %v43
    %v692 = vpop.f32.mrf.mxu0
    %v693 = vadd.f32 0.0, %v692
    %694 = vmatmul.f32.gmra.mxu0 %v44
    %v695 = vpop.f32.mrf.mxu0
    %v696 = vadd.f32 0.0, %v695
    %697 = vdwg.mxu0
    %v699 = vsel %vm106, %v675, 0
    %v702 = vsel %vm106, %v678, 0
    %v705 = vsel %vm106, %v681, 0
    %v708 = vsel %vm106, %v684, 0
    %v711 = vsel %vm106, %v687, 0
    %v714 = vsel %vm106, %v690, 0
    %v717 = vsel %vm106, %v693, 0
    %v720 = vsel %vm106, %v696, 0
    %722 = vmatpush.xpose.msra.mxu0 %v177
    %723 = vmatpush.xpose.msra.mxu0 %v174
    %724 = vmatpush.xpose.msra.mxu0 %v171
    %725 = vmatpush.xpose.msra.mxu0 %v168
    %726 = vmatpush.xpose.msra.mxu0 %v165
    %727 = vmatpush.xpose.msra.mxu0 %v162
    %728 = vmatpush.xpose.msra.mxu0 %v159
    %729 = vmatpush.xpose.msra.mxu0 %v156
    %730 = vmatpush.xpose.msra.mxu0 %v153
    %731 = vmatpush.xpose.msra.mxu0 %v150
    %732 = vmatpush.xpose.msra.mxu0 %v147
    %733 = vmatpush.xpose.msra.mxu0 %v144
    %734 = vmatpush.xpose.msra.mxu0 %v141
    %735 = vmatpush.xpose.msra.mxu0 %v138
    %736 = vmatpush.xpose.msra.mxu0 %v135
    %737 = vmatpush.xpose.msra.mxu0 %v132
    %738 = vmatmul.f32.gmra.mxu0 %v699
    %v739 = vpop.f32.mrf.mxu0
    %v740 = vadd.f32 0.0, %v739
    %741 = vmatmul.f32.gmra.mxu0 %v702
    %v742 = vpop.f32.mrf.mxu0
    %v743 = vadd.f32 0.0, %v742
    %744 = vmatmul.f32.gmra.mxu0 %v705
    %v745 = vpop.f32.mrf.mxu0
    %v746 = vadd.f32 0.0, %v745
    %747 = vmatmul.f32.gmra.mxu0 %v708
    %v748 = vpop.f32.mrf.mxu0
    %v749 = vadd.f32 0.0, %v748
    %750 = vmatmul.f32.gmra.mxu0 %v711
    %v751 = vpop.f32.mrf.mxu0
    %v752 = vadd.f32 0.0, %v751
    %753 = vmatmul.f32.gmra.mxu0 %v714
    %v754 = vpop.f32.mrf.mxu0
    %v755 = vadd.f32 0.0, %v754
    %756 = vmatmul.f32.gmra.mxu0 %v717
    %v757 = vpop.f32.mrf.mxu0
    %v758 = vadd.f32 0.0, %v757
    %759 = vmatmul.f32.gmra.mxu0 %v720
    %v760 = vpop.f32.mrf.mxu0
    %v761 = vadd.f32 0.0, %v760
    %762 = vdwg.mxu0
    %v763 = vmul.f32 %v740, 2.0
    %v764 = vmul.f32 %v743, 2.0
    %v765 = vmul.f32 %v746, 2.0
    %v766 = vmul.f32 %v749, 2.0
    %v767 = vmul.f32 %v752, 2.0
    %v768 = vmul.f32 %v755, 2.0
    %v769 = vmul.f32 %v758, 2.0
    %v770 = vmul.f32 %v761, 2.0
    %v771 = vsub.f32 %v229, %v763
    %v772 = vsub.f32 %v229, %v764
    %v773 = vsub.f32 %v229, %v765
    %v774 = vsub.f32 %v229, %v766
    %v775 = vsub.f32 %v229, %v767
    %v776 = vsub.f32 %v229, %v768
    %v777 = vsub.f32 %v229, %v769
    %v778 = vsub.f32 %v229, %v770
    %779 = vmin.index.xlane.f32.xlu0 %v771
    %v780 = vpop.xlane.xlu0 %779
    %781 = vmin.index.xlane.f32.xlu0 %v772
    %v782 = vpop.xlane.xlu0 %781
    %783 = vmin.index.xlane.f32.xlu0 %v773
    %v784 = vpop.xlane.xlu0 %783
    %785 = vmin.index.xlane.f32.xlu0 %v774
    %v786 = vpop.xlane.xlu0 %785
    %787 = vmin.index.xlane.f32.xlu0 %v775
    %v788 = vpop.xlane.xlu0 %787
    %789 = vmin.index.xlane.f32.xlu0 %v776
    %v790 = vpop.xlane.xlu0 %789
    %791 = vmin.index.xlane.f32.xlu0 %v777
    %v792 = vpop.xlane.xlu0 %791
    %793 = vmin.index.xlane.f32.xlu0 %v778
    %v794 = vpop.xlane.xlu0 %793
    %vm795 = vcmp.eq.s32.totalorder %v63, %v780
    %vm796 = vcmp.eq.s32.totalorder %v63, %v782
    %vm797 = vcmp.eq.s32.totalorder %v63, %v784
    %vm798 = vcmp.eq.s32.totalorder %v63, %v786
    %vm799 = vcmp.eq.s32.totalorder %v63, %v788
    %vm800 = vcmp.eq.s32.totalorder %v63, %v790
    %vm801 = vcmp.eq.s32.totalorder %v63, %v792
    %vm802 = vcmp.eq.s32.totalorder %v63, %v794
    %v803 = vsel %vm795, 1, 0
    %v804 = vsel %vm796, 1, 0
    %v805 = vsel %vm797, 1, 0
    %v806 = vsel %vm798, 1, 0
    %v807 = vsel %vm799, 1, 0
    %v808 = vsel %vm800, 1, 0
    %v809 = vsel %vm801, 1, 0
    %v810 = vsel %vm802, 1, 0
    %v811 = vcvt.s32.f32 %v803
    %v812 = vcvt.s32.f32 %v804
    %v813 = vcvt.s32.f32 %v805
    %v814 = vcvt.s32.f32 %v806
    %v815 = vcvt.s32.f32 %v807
    %v816 = vcvt.s32.f32 %v808
    %v817 = vcvt.s32.f32 %v809
    %v818 = vcvt.s32.f32 %v810
    %819 = vmatpush.msra.mxu0 %v60
    %820 = vmatpush.msra.mxu0 %v59
    %821 = vmatpush.msra.mxu0 %v58
    %822 = vmatpush.msra.mxu0 %v57
    %823 = vmatpush.msra.mxu0 %v56
    %824 = vmatpush.msra.mxu0 %v55
    %825 = vmatpush.msra.mxu0 %v54
    %826 = vmatpush.msra.mxu0 %v53
    %827 = vmatpush.msra.mxu0 %v52
    %828 = vmatpush.msra.mxu0 %v51
    %829 = vmatpush.msra.mxu0 %v50
    %830 = vmatpush.msra.mxu0 %v49
    %831 = vmatpush.msra.mxu0 %v48
    %832 = vmatpush.msra.mxu0 %v47
    %833 = vmatpush.msra.mxu0 %v46
    %834 = vmatpush.msra.mxu0 %v45
    %835 = vmatmul.f32.gmra.mxu0 %v811
    %v836 = vpop.f32.mrf.mxu0
    %v837 = vadd.f32 0.0, %v836
    %838 = vmatmul.f32.gmra.mxu0 %v812
    %v839 = vpop.f32.mrf.mxu0
    %v840 = vadd.f32 0.0, %v839
    %841 = vmatmul.f32.gmra.mxu0 %v813
    %v842 = vpop.f32.mrf.mxu0
    %v843 = vadd.f32 0.0, %v842
    %844 = vmatmul.f32.gmra.mxu0 %v814
    %v845 = vpop.f32.mrf.mxu0
    %v846 = vadd.f32 0.0, %v845
    %847 = vmatmul.f32.gmra.mxu0 %v815
    %v848 = vpop.f32.mrf.mxu0
    %v849 = vadd.f32 0.0, %v848
    %850 = vmatmul.f32.gmra.mxu0 %v816
    %v851 = vpop.f32.mrf.mxu0
    %v852 = vadd.f32 0.0, %v851
    %853 = vmatmul.f32.gmra.mxu0 %v817
    %v854 = vpop.f32.mrf.mxu0
    %v855 = vadd.f32 0.0, %v854
    %856 = vmatmul.f32.gmra.mxu0 %v818
    %v857 = vpop.f32.mrf.mxu0
    %v858 = vadd.f32 0.0, %v857
    %859 = vdwg.mxu0
    %v861 = vsel %vm106, %v837, 0
    %v864 = vsel %vm106, %v840, 0
    %v867 = vsel %vm106, %v843, 0
    %v870 = vsel %vm106, %v846, 0
    %v873 = vsel %vm106, %v849, 0
    %v876 = vsel %vm106, %v852, 0
    %v879 = vsel %vm106, %v855, 0
    %v882 = vsel %vm106, %v858, 0
    %884 = vmatpush.msra.mxu0 0.0
    %885 = vmatpush.msra.mxu0 0.0
    %886 = vmatpush.msra.mxu0 0.0
    %887 = vmatpush.msra.mxu0 0.0
    %888 = vmatpush.msra.mxu0 0.0
    %889 = vmatpush.msra.mxu0 0.0
    %890 = vmatpush.msra.mxu0 0.0
    %891 = vmatpush.msra.mxu0 0.0
    %892 = vmatpush.msra.mxu0 0.0
    %893 = vmatpush.msra.mxu0 0.0
    %894 = vmatpush.msra.mxu0 0.0
    %895 = vmatpush.msra.mxu0 0.0
    %896 = vmatpush.msra.mxu0 0.0
    %897 = vmatpush.msra.mxu0 0.0
    %898 = vmatpush.msra.mxu0 0.0
    %899 = vmatpush.msra.mxu0 %v656
    %900 = vmatmul.f32.gmra.mxu0 %v861
    %v901 = vpop.f32.mrf.mxu0
    %v902 = vadd.f32 0.0, %v901
    %903 = vmatmul.f32.gmra.mxu0 %v864
    %v904 = vpop.f32.mrf.mxu0
    %v905 = vadd.f32 0.0, %v904
    %906 = vmatmul.f32.gmra.mxu0 %v867
    %v907 = vpop.f32.mrf.mxu0
    %v908 = vadd.f32 0.0, %v907
    %909 = vmatmul.f32.gmra.mxu0 %v870
    %v910 = vpop.f32.mrf.mxu0
    %v911 = vadd.f32 0.0, %v910
    %912 = vmatmul.f32.gmra.mxu0 %v873
    %v913 = vpop.f32.mrf.mxu0
    %v914 = vadd.f32 0.0, %v913
    %915 = vmatmul.f32.gmra.mxu0 %v876
    %v916 = vpop.f32.mrf.mxu0
    %v917 = vadd.f32 0.0, %v916
    %918 = vmatmul.f32.gmra.mxu0 %v879
    %v919 = vpop.f32.mrf.mxu0
    %v920 = vadd.f32 0.0, %v919
    %921 = vmatmul.f32.gmra.mxu0 %v882
    %v922 = vpop.f32.mrf.mxu0
    %v923 = vadd.f32 0.0, %v922
    %924 = vdwg.mxu0
    %v925 = vadd.f32 %v632, %v902
    %v926 = vadd.f32 %v635, %v905
    %v927 = vadd.f32 %v638, %v908
    %v928 = vadd.f32 %v641, %v911
    %v929 = vadd.f32 %v644, %v914
    %v930 = vadd.f32 %v647, %v917
    %v931 = vadd.f32 %v650, %v920
    %v932 = vadd.f32 %v653, %v923
    %s933 = scalar_lea.vmem %s3, 24
    %v934 = vld [vmem:[%s933] sm:$0xff]
    %935 = vmatpush.xpose.msra.mxu0 0.0
    %936 = vmatpush.xpose.msra.mxu0 0.0
    %937 = vmatpush.xpose.msra.mxu0 0.0
    %938 = vmatpush.xpose.msra.mxu0 0.0
    %939 = vmatpush.xpose.msra.mxu0 0.0
    %940 = vmatpush.xpose.msra.mxu0 0.0
    %941 = vmatpush.xpose.msra.mxu0 0.0
    %942 = vmatpush.xpose.msra.mxu0 0.0
    %943 = vmatpush.xpose.msra.mxu0 0.0
    %944 = vmatpush.xpose.msra.mxu0 0.0
    %945 = vmatpush.xpose.msra.mxu0 0.0
    %946 = vmatpush.xpose.msra.mxu0 0.0
    %947 = vmatpush.xpose.msra.mxu0 0.0
    %948 = vmatpush.xpose.msra.mxu0 0.0
    %949 = vmatpush.xpose.msra.mxu0 0.0
    %950 = vmatpush.xpose.msra.mxu0 %v934
    %951 = vmatmul.f32.gmra.mxu0 %v37
    %v952 = vpop.f32.mrf.mxu0
    %v953 = vadd.f32 0.0, %v952
    %954 = vmatmul.f32.gmra.mxu0 %v38
    %v955 = vpop.f32.mrf.mxu0
    %v956 = vadd.f32 0.0, %v955
    %957 = vmatmul.f32.gmra.mxu0 %v39
    %v958 = vpop.f32.mrf.mxu0
    %v959 = vadd.f32 0.0, %v958
    %960 = vmatmul.f32.gmra.mxu0 %v40
    %v961 = vpop.f32.mrf.mxu0
    %v962 = vadd.f32 0.0, %v961
    %963 = vmatmul.f32.gmra.mxu0 %v41
    %v964 = vpop.f32.mrf.mxu0
    %v965 = vadd.f32 0.0, %v964
    %966 = vmatmul.f32.gmra.mxu0 %v42
    %v967 = vpop.f32.mrf.mxu0
    %v968 = vadd.f32 0.0, %v967
    %969 = vmatmul.f32.gmra.mxu0 %v43
    %v970 = vpop.f32.mrf.mxu0
    %v971 = vadd.f32 0.0, %v970
    %972 = vmatmul.f32.gmra.mxu0 %v44
    %v973 = vpop.f32.mrf.mxu0
    %v974 = vadd.f32 0.0, %v973
    %975 = vdwg.mxu0
    %v977 = vsel %vm106, %v953, 0
    %v980 = vsel %vm106, %v956, 0
    %v983 = vsel %vm106, %v959, 0
    %v986 = vsel %vm106, %v962, 0
    %v989 = vsel %vm106, %v965, 0
    %v992 = vsel %vm106, %v968, 0
    %v995 = vsel %vm106, %v971, 0
    %v998 = vsel %vm106, %v974, 0
    %1000 = vmatpush.xpose.msra.mxu0 %v177
    %1001 = vmatpush.xpose.msra.mxu0 %v174
    %1002 = vmatpush.xpose.msra.mxu0 %v171
    %1003 = vmatpush.xpose.msra.mxu0 %v168
    %1004 = vmatpush.xpose.msra.mxu0 %v165
    %1005 = vmatpush.xpose.msra.mxu0 %v162
    %1006 = vmatpush.xpose.msra.mxu0 %v159
    %1007 = vmatpush.xpose.msra.mxu0 %v156
    %1008 = vmatpush.xpose.msra.mxu0 %v153
    %1009 = vmatpush.xpose.msra.mxu0 %v150
    %1010 = vmatpush.xpose.msra.mxu0 %v147
    %1011 = vmatpush.xpose.msra.mxu0 %v144
    %1012 = vmatpush.xpose.msra.mxu0 %v141
    %1013 = vmatpush.xpose.msra.mxu0 %v138
    %1014 = vmatpush.xpose.msra.mxu0 %v135
    %1015 = vmatpush.xpose.msra.mxu0 %v132
    %1016 = vmatmul.f32.gmra.mxu0 %v977
    %v1017 = vpop.f32.mrf.mxu0
    %v1018 = vadd.f32 0.0, %v1017
    %1019 = vmatmul.f32.gmra.mxu0 %v980
    %v1020 = vpop.f32.mrf.mxu0
    %v1021 = vadd.f32 0.0, %v1020
    %1022 = vmatmul.f32.gmra.mxu0 %v983
    %v1023 = vpop.f32.mrf.mxu0
    %v1024 = vadd.f32 0.0, %v1023
    %1025 = vmatmul.f32.gmra.mxu0 %v986
    %v1026 = vpop.f32.mrf.mxu0
    %v1027 = vadd.f32 0.0, %v1026
    %1028 = vmatmul.f32.gmra.mxu0 %v989
    %v1029 = vpop.f32.mrf.mxu0
    %v1030 = vadd.f32 0.0, %v1029
    %1031 = vmatmul.f32.gmra.mxu0 %v992
    %v1032 = vpop.f32.mrf.mxu0
    %v1033 = vadd.f32 0.0, %v1032
    %1034 = vmatmul.f32.gmra.mxu0 %v995
    %v1035 = vpop.f32.mrf.mxu0
    %v1036 = vadd.f32 0.0, %v1035
    %1037 = vmatmul.f32.gmra.mxu0 %v998
    %v1038 = vpop.f32.mrf.mxu0
    %v1039 = vadd.f32 0.0, %v1038
    %1040 = vdwg.mxu0
    %v1041 = vmul.f32 %v1018, 2.0
    %v1042 = vmul.f32 %v1021, 2.0
    %v1043 = vmul.f32 %v1024, 2.0
    %v1044 = vmul.f32 %v1027, 2.0
    %v1045 = vmul.f32 %v1030, 2.0
    %v1046 = vmul.f32 %v1033, 2.0
    %v1047 = vmul.f32 %v1036, 2.0
    %v1048 = vmul.f32 %v1039, 2.0
    %v1049 = vsub.f32 %v229, %v1041
    %v1050 = vsub.f32 %v229, %v1042
    %v1051 = vsub.f32 %v229, %v1043
    %v1052 = vsub.f32 %v229, %v1044
    %v1053 = vsub.f32 %v229, %v1045
    %v1054 = vsub.f32 %v229, %v1046
    %v1055 = vsub.f32 %v229, %v1047
    %v1056 = vsub.f32 %v229, %v1048
    %1057 = vmin.index.xlane.f32.xlu0 %v1049
    %v1058 = vpop.xlane.xlu0 %1057
    %1059 = vmin.index.xlane.f32.xlu0 %v1050
    %v1060 = vpop.xlane.xlu0 %1059
    %1061 = vmin.index.xlane.f32.xlu0 %v1051
    %v1062 = vpop.xlane.xlu0 %1061
    %1063 = vmin.index.xlane.f32.xlu0 %v1052
    %v1064 = vpop.xlane.xlu0 %1063
    %1065 = vmin.index.xlane.f32.xlu0 %v1053
    %v1066 = vpop.xlane.xlu0 %1065
    %1067 = vmin.index.xlane.f32.xlu0 %v1054
    %v1068 = vpop.xlane.xlu0 %1067
    %1069 = vmin.index.xlane.f32.xlu0 %v1055
    %v1070 = vpop.xlane.xlu0 %1069
    %1071 = vmin.index.xlane.f32.xlu0 %v1056
    %v1072 = vpop.xlane.xlu0 %1071
    %vm1073 = vcmp.eq.s32.totalorder %v63, %v1058
    %vm1074 = vcmp.eq.s32.totalorder %v63, %v1060
    %vm1075 = vcmp.eq.s32.totalorder %v63, %v1062
    %vm1076 = vcmp.eq.s32.totalorder %v63, %v1064
    %vm1077 = vcmp.eq.s32.totalorder %v63, %v1066
    %vm1078 = vcmp.eq.s32.totalorder %v63, %v1068
    %vm1079 = vcmp.eq.s32.totalorder %v63, %v1070
    %vm1080 = vcmp.eq.s32.totalorder %v63, %v1072
    %v1081 = vsel %vm1073, 1, 0
    %v1082 = vsel %vm1074, 1, 0
    %v1083 = vsel %vm1075, 1, 0
    %v1084 = vsel %vm1076, 1, 0
    %v1085 = vsel %vm1077, 1, 0
    %v1086 = vsel %vm1078, 1, 0
    %v1087 = vsel %vm1079, 1, 0
    %v1088 = vsel %vm1080, 1, 0
    %v1089 = vcvt.s32.f32 %v1081
    %v1090 = vcvt.s32.f32 %v1082
    %v1091 = vcvt.s32.f32 %v1083
    %v1092 = vcvt.s32.f32 %v1084
    %v1093 = vcvt.s32.f32 %v1085
    %v1094 = vcvt.s32.f32 %v1086
    %v1095 = vcvt.s32.f32 %v1087
    %v1096 = vcvt.s32.f32 %v1088
    %1097 = vmatpush.msra.mxu0 %v60
    %1098 = vmatpush.msra.mxu0 %v59
    %1099 = vmatpush.msra.mxu0 %v58
    %1100 = vmatpush.msra.mxu0 %v57
    %1101 = vmatpush.msra.mxu0 %v56
    %1102 = vmatpush.msra.mxu0 %v55
    %1103 = vmatpush.msra.mxu0 %v54
    %1104 = vmatpush.msra.mxu0 %v53
    %1105 = vmatpush.msra.mxu0 %v52
    %1106 = vmatpush.msra.mxu0 %v51
    %1107 = vmatpush.msra.mxu0 %v50
    %1108 = vmatpush.msra.mxu0 %v49
    %1109 = vmatpush.msra.mxu0 %v48
    %1110 = vmatpush.msra.mxu0 %v47
    %1111 = vmatpush.msra.mxu0 %v46
    %1112 = vmatpush.msra.mxu0 %v45
    %1113 = vmatmul.f32.gmra.mxu0 %v1089
    %v1114 = vpop.f32.mrf.mxu0
    %v1115 = vadd.f32 0.0, %v1114
    %1116 = vmatmul.f32.gmra.mxu0 %v1090
    %v1117 = vpop.f32.mrf.mxu0
    %v1118 = vadd.f32 0.0, %v1117
    %1119 = vmatmul.f32.gmra.mxu0 %v1091
    %v1120 = vpop.f32.mrf.mxu0
    %v1121 = vadd.f32 0.0, %v1120
    %1122 = vmatmul.f32.gmra.mxu0 %v1092
    %v1123 = vpop.f32.mrf.mxu0
    %v1124 = vadd.f32 0.0, %v1123
    %1125 = vmatmul.f32.gmra.mxu0 %v1093
    %v1126 = vpop.f32.mrf.mxu0
    %v1127 = vadd.f32 0.0, %v1126
    %1128 = vmatmul.f32.gmra.mxu0 %v1094
    %v1129 = vpop.f32.mrf.mxu0
    %v1130 = vadd.f32 0.0, %v1129
    %1131 = vmatmul.f32.gmra.mxu0 %v1095
    %v1132 = vpop.f32.mrf.mxu0
    %v1133 = vadd.f32 0.0, %v1132
    %1134 = vmatmul.f32.gmra.mxu0 %v1096
    %v1135 = vpop.f32.mrf.mxu0
    %v1136 = vadd.f32 0.0, %v1135
    %1137 = vdwg.mxu0
    %v1139 = vsel %vm106, %v1115, 0
    %v1142 = vsel %vm106, %v1118, 0
    %v1145 = vsel %vm106, %v1121, 0
    %v1148 = vsel %vm106, %v1124, 0
    %v1151 = vsel %vm106, %v1127, 0
    %v1154 = vsel %vm106, %v1130, 0
    %v1157 = vsel %vm106, %v1133, 0
    %v1160 = vsel %vm106, %v1136, 0
    %1162 = vmatpush.msra.mxu0 0.0
    %1163 = vmatpush.msra.mxu0 0.0
    %1164 = vmatpush.msra.mxu0 0.0
    %1165 = vmatpush.msra.mxu0 0.0
    %1166 = vmatpush.msra.mxu0 0.0
    %1167 = vmatpush.msra.mxu0 0.0
    %1168 = vmatpush.msra.mxu0 0.0
    %1169 = vmatpush.msra.mxu0 0.0
    %1170 = vmatpush.msra.mxu0 0.0
    %1171 = vmatpush.msra.mxu0 0.0
    %1172 = vmatpush.msra.mxu0 0.0
    %1173 = vmatpush.msra.mxu0 0.0
    %1174 = vmatpush.msra.mxu0 0.0
    %1175 = vmatpush.msra.mxu0 0.0
    %1176 = vmatpush.msra.mxu0 0.0
    %1177 = vmatpush.msra.mxu0 %v934
    %1178 = vmatmul.f32.gmra.mxu0 %v1139
    %v1179 = vpop.f32.mrf.mxu0
    %v1180 = vadd.f32 0.0, %v1179
    %1181 = vmatmul.f32.gmra.mxu0 %v1142
    %v1182 = vpop.f32.mrf.mxu0
    %v1183 = vadd.f32 0.0, %v1182
    %1184 = vmatmul.f32.gmra.mxu0 %v1145
    %v1185 = vpop.f32.mrf.mxu0
    %v1186 = vadd.f32 0.0, %v1185
    %1187 = vmatmul.f32.gmra.mxu0 %v1148
    %v1188 = vpop.f32.mrf.mxu0
    %v1189 = vadd.f32 0.0, %v1188
    %1190 = vmatmul.f32.gmra.mxu0 %v1151
    %v1191 = vpop.f32.mrf.mxu0
    %v1192 = vadd.f32 0.0, %v1191
    %1193 = vmatmul.f32.gmra.mxu0 %v1154
    %v1194 = vpop.f32.mrf.mxu0
    %v1195 = vadd.f32 0.0, %v1194
    %1196 = vmatmul.f32.gmra.mxu0 %v1157
    %v1197 = vpop.f32.mrf.mxu0
    %v1198 = vadd.f32 0.0, %v1197
    %1199 = vmatmul.f32.gmra.mxu0 %v1160
    %v1200 = vpop.f32.mrf.mxu0
    %v1201 = vadd.f32 0.0, %v1200
    %1202 = vdwg.mxu0
    %v1203 = vadd.f32 %v925, %v1180
    %v1204 = vadd.f32 %v926, %v1183
    %v1205 = vadd.f32 %v927, %v1186
    %v1206 = vadd.f32 %v928, %v1189
    %v1207 = vadd.f32 %v929, %v1192
    %v1208 = vadd.f32 %v930, %v1195
    %v1209 = vadd.f32 %v931, %v1198
    %v1210 = vadd.f32 %v932, %v1201
    %s1211 = scalar_lea.vmem %s3, 32
    %v1212 = vld [vmem:[%s1211] sm:$0xff]
    %1213 = vmatpush.xpose.msra.mxu0 0.0
    %1214 = vmatpush.xpose.msra.mxu0 0.0
    %1215 = vmatpush.xpose.msra.mxu0 0.0
    %1216 = vmatpush.xpose.msra.mxu0 0.0
    %1217 = vmatpush.xpose.msra.mxu0 0.0
    %1218 = vmatpush.xpose.msra.mxu0 0.0
    %1219 = vmatpush.xpose.msra.mxu0 0.0
    %1220 = vmatpush.xpose.msra.mxu0 0.0
    %1221 = vmatpush.xpose.msra.mxu0 0.0
    %1222 = vmatpush.xpose.msra.mxu0 0.0
    %1223 = vmatpush.xpose.msra.mxu0 0.0
    %1224 = vmatpush.xpose.msra.mxu0 0.0
    %1225 = vmatpush.xpose.msra.mxu0 0.0
    %1226 = vmatpush.xpose.msra.mxu0 0.0
    %1227 = vmatpush.xpose.msra.mxu0 0.0
    %1228 = vmatpush.xpose.msra.mxu0 %v1212
    %1229 = vmatmul.f32.gmra.mxu0 %v37
    %v1230 = vpop.f32.mrf.mxu0
    %v1231 = vadd.f32 0.0, %v1230
    %1232 = vmatmul.f32.gmra.mxu0 %v38
    %v1233 = vpop.f32.mrf.mxu0
    %v1234 = vadd.f32 0.0, %v1233
    %1235 = vmatmul.f32.gmra.mxu0 %v39
    %v1236 = vpop.f32.mrf.mxu0
    %v1237 = vadd.f32 0.0, %v1236
    %1238 = vmatmul.f32.gmra.mxu0 %v40
    %v1239 = vpop.f32.mrf.mxu0
    %v1240 = vadd.f32 0.0, %v1239
    %1241 = vmatmul.f32.gmra.mxu0 %v41
    %v1242 = vpop.f32.mrf.mxu0
    %v1243 = vadd.f32 0.0, %v1242
    %1244 = vmatmul.f32.gmra.mxu0 %v42
    %v1245 = vpop.f32.mrf.mxu0
    %v1246 = vadd.f32 0.0, %v1245
    %1247 = vmatmul.f32.gmra.mxu0 %v43
    %v1248 = vpop.f32.mrf.mxu0
    %v1249 = vadd.f32 0.0, %v1248
    %1250 = vmatmul.f32.gmra.mxu0 %v44
    %v1251 = vpop.f32.mrf.mxu0
    %v1252 = vadd.f32 0.0, %v1251
    %1253 = vdwg.mxu0
    %v1255 = vsel %vm106, %v1231, 0
    %v1258 = vsel %vm106, %v1234, 0
    %v1261 = vsel %vm106, %v1237, 0
    %v1264 = vsel %vm106, %v1240, 0
    %v1267 = vsel %vm106, %v1243, 0
    %v1270 = vsel %vm106, %v1246, 0
    %v1273 = vsel %vm106, %v1249, 0
    %v1276 = vsel %vm106, %v1252, 0
    %1278 = vmatpush.xpose.msra.mxu0 %v177
    %1279 = vmatpush.xpose.msra.mxu0 %v174
    %1280 = vmatpush.xpose.msra.mxu0 %v171
    %1281 = vmatpush.xpose.msra.mxu0 %v168
    %1282 = vmatpush.xpose.msra.mxu0 %v165
    %1283 = vmatpush.xpose.msra.mxu0 %v162
    %1284 = vmatpush.xpose.msra.mxu0 %v159
    %1285 = vmatpush.xpose.msra.mxu0 %v156
    %1286 = vmatpush.xpose.msra.mxu0 %v153
    %1287 = vmatpush.xpose.msra.mxu0 %v150
    %1288 = vmatpush.xpose.msra.mxu0 %v147
    %1289 = vmatpush.xpose.msra.mxu0 %v144
    %1290 = vmatpush.xpose.msra.mxu0 %v141
    %1291 = vmatpush.xpose.msra.mxu0 %v138
    %1292 = vmatpush.xpose.msra.mxu0 %v135
    %1293 = vmatpush.xpose.msra.mxu0 %v132
    %1294 = vmatmul.f32.gmra.mxu0 %v1255
    %v1295 = vpop.f32.mrf.mxu0
    %v1296 = vadd.f32 0.0, %v1295
    %1297 = vmatmul.f32.gmra.mxu0 %v1258
    %v1298 = vpop.f32.mrf.mxu0
    %v1299 = vadd.f32 0.0, %v1298
    %1300 = vmatmul.f32.gmra.mxu0 %v1261
    %v1301 = vpop.f32.mrf.mxu0
    %v1302 = vadd.f32 0.0, %v1301
    %1303 = vmatmul.f32.gmra.mxu0 %v1264
    %v1304 = vpop.f32.mrf.mxu0
    %v1305 = vadd.f32 0.0, %v1304
    %1306 = vmatmul.f32.gmra.mxu0 %v1267
    %v1307 = vpop.f32.mrf.mxu0
    %v1308 = vadd.f32 0.0, %v1307
    %1309 = vmatmul.f32.gmra.mxu0 %v1270
    %v1310 = vpop.f32.mrf.mxu0
    %v1311 = vadd.f32 0.0, %v1310
    %1312 = vmatmul.f32.gmra.mxu0 %v1273
    %v1313 = vpop.f32.mrf.mxu0
    %v1314 = vadd.f32 0.0, %v1313
    %1315 = vmatmul.f32.gmra.mxu0 %v1276
    %v1316 = vpop.f32.mrf.mxu0
    %v1317 = vadd.f32 0.0, %v1316
    %1318 = vdwg.mxu0
    %v1319 = vmul.f32 %v1296, 2.0
    %v1320 = vmul.f32 %v1299, 2.0
    %v1321 = vmul.f32 %v1302, 2.0
    %v1322 = vmul.f32 %v1305, 2.0
    %v1323 = vmul.f32 %v1308, 2.0
    %v1324 = vmul.f32 %v1311, 2.0
    %v1325 = vmul.f32 %v1314, 2.0
    %v1326 = vmul.f32 %v1317, 2.0
    %v1327 = vsub.f32 %v229, %v1319
    %v1328 = vsub.f32 %v229, %v1320
    %v1329 = vsub.f32 %v229, %v1321
    %v1330 = vsub.f32 %v229, %v1322
    %v1331 = vsub.f32 %v229, %v1323
    %v1332 = vsub.f32 %v229, %v1324
    %v1333 = vsub.f32 %v229, %v1325
    %v1334 = vsub.f32 %v229, %v1326
    %1335 = vmin.index.xlane.f32.xlu0 %v1327
    %v1336 = vpop.xlane.xlu0 %1335
    %1337 = vmin.index.xlane.f32.xlu0 %v1328
    %v1338 = vpop.xlane.xlu0 %1337
    %1339 = vmin.index.xlane.f32.xlu0 %v1329
    %v1340 = vpop.xlane.xlu0 %1339
    %1341 = vmin.index.xlane.f32.xlu0 %v1330
    %v1342 = vpop.xlane.xlu0 %1341
    %1343 = vmin.index.xlane.f32.xlu0 %v1331
    %v1344 = vpop.xlane.xlu0 %1343
    %1345 = vmin.index.xlane.f32.xlu0 %v1332
    %v1346 = vpop.xlane.xlu0 %1345
    %1347 = vmin.index.xlane.f32.xlu0 %v1333
    %v1348 = vpop.xlane.xlu0 %1347
    %1349 = vmin.index.xlane.f32.xlu0 %v1334
    %v1350 = vpop.xlane.xlu0 %1349
    %vm1351 = vcmp.eq.s32.totalorder %v63, %v1336
    %vm1352 = vcmp.eq.s32.totalorder %v63, %v1338
    %vm1353 = vcmp.eq.s32.totalorder %v63, %v1340
    %vm1354 = vcmp.eq.s32.totalorder %v63, %v1342
    %vm1355 = vcmp.eq.s32.totalorder %v63, %v1344
    %vm1356 = vcmp.eq.s32.totalorder %v63, %v1346
    %vm1357 = vcmp.eq.s32.totalorder %v63, %v1348
    %vm1358 = vcmp.eq.s32.totalorder %v63, %v1350
    %v1359 = vsel %vm1351, 1, 0
    %v1360 = vsel %vm1352, 1, 0
    %v1361 = vsel %vm1353, 1, 0
    %v1362 = vsel %vm1354, 1, 0
    %v1363 = vsel %vm1355, 1, 0
    %v1364 = vsel %vm1356, 1, 0
    %v1365 = vsel %vm1357, 1, 0
    %v1366 = vsel %vm1358, 1, 0
    %v1367 = vcvt.s32.f32 %v1359
    %v1368 = vcvt.s32.f32 %v1360
    %v1369 = vcvt.s32.f32 %v1361
    %v1370 = vcvt.s32.f32 %v1362
    %v1371 = vcvt.s32.f32 %v1363
    %v1372 = vcvt.s32.f32 %v1364
    %v1373 = vcvt.s32.f32 %v1365
    %v1374 = vcvt.s32.f32 %v1366
    %1375 = vmatpush.msra.mxu0 %v60
    %1376 = vmatpush.msra.mxu0 %v59
    %1377 = vmatpush.msra.mxu0 %v58
    %1378 = vmatpush.msra.mxu0 %v57
    %1379 = vmatpush.msra.mxu0 %v56
    %1380 = vmatpush.msra.mxu0 %v55
    %1381 = vmatpush.msra.mxu0 %v54
    %1382 = vmatpush.msra.mxu0 %v53
    %1383 = vmatpush.msra.mxu0 %v52
    %1384 = vmatpush.msra.mxu0 %v51
    %1385 = vmatpush.msra.mxu0 %v50
    %1386 = vmatpush.msra.mxu0 %v49
    %1387 = vmatpush.msra.mxu0 %v48
    %1388 = vmatpush.msra.mxu0 %v47
    %1389 = vmatpush.msra.mxu0 %v46
    %1390 = vmatpush.msra.mxu0 %v45
    %1391 = vmatmul.f32.gmra.mxu0 %v1367
    %v1392 = vpop.f32.mrf.mxu0
    %v1393 = vadd.f32 0.0, %v1392
    %1394 = vmatmul.f32.gmra.mxu0 %v1368
    %v1395 = vpop.f32.mrf.mxu0
    %v1396 = vadd.f32 0.0, %v1395
    %1397 = vmatmul.f32.gmra.mxu0 %v1369
    %v1398 = vpop.f32.mrf.mxu0
    %v1399 = vadd.f32 0.0, %v1398
    %1400 = vmatmul.f32.gmra.mxu0 %v1370
    %v1401 = vpop.f32.mrf.mxu0
    %v1402 = vadd.f32 0.0, %v1401
    %1403 = vmatmul.f32.gmra.mxu0 %v1371
    %v1404 = vpop.f32.mrf.mxu0
    %v1405 = vadd.f32 0.0, %v1404
    %1406 = vmatmul.f32.gmra.mxu0 %v1372
    %v1407 = vpop.f32.mrf.mxu0
    %v1408 = vadd.f32 0.0, %v1407
    %1409 = vmatmul.f32.gmra.mxu0 %v1373
    %v1410 = vpop.f32.mrf.mxu0
    %v1411 = vadd.f32 0.0, %v1410
    %1412 = vmatmul.f32.gmra.mxu0 %v1374
    %v1413 = vpop.f32.mrf.mxu0
    %v1414 = vadd.f32 0.0, %v1413
    %1415 = vdwg.mxu0
    %v1417 = vsel %vm106, %v1393, 0
    %v1420 = vsel %vm106, %v1396, 0
    %v1423 = vsel %vm106, %v1399, 0
    %v1426 = vsel %vm106, %v1402, 0
    %v1429 = vsel %vm106, %v1405, 0
    %v1432 = vsel %vm106, %v1408, 0
    %v1435 = vsel %vm106, %v1411, 0
    %v1438 = vsel %vm106, %v1414, 0
    %1440 = vmatpush.msra.mxu0 0.0
    %1441 = vmatpush.msra.mxu0 0.0
    %1442 = vmatpush.msra.mxu0 0.0
    %1443 = vmatpush.msra.mxu0 0.0
    %1444 = vmatpush.msra.mxu0 0.0
    %1445 = vmatpush.msra.mxu0 0.0
    %1446 = vmatpush.msra.mxu0 0.0
    %1447 = vmatpush.msra.mxu0 0.0
    %1448 = vmatpush.msra.mxu0 0.0
    %1449 = vmatpush.msra.mxu0 0.0
    %1450 = vmatpush.msra.mxu0 0.0
    %1451 = vmatpush.msra.mxu0 0.0
    %1452 = vmatpush.msra.mxu0 0.0
    %1453 = vmatpush.msra.mxu0 0.0
    %1454 = vmatpush.msra.mxu0 0.0
    %1455 = vmatpush.msra.mxu0 %v1212
    %1456 = vmatmul.f32.gmra.mxu0 %v1417
    %v1457 = vpop.f32.mrf.mxu0
    %v1458 = vadd.f32 0.0, %v1457
    %1459 = vmatmul.f32.gmra.mxu0 %v1420
    %v1460 = vpop.f32.mrf.mxu0
    %v1461 = vadd.f32 0.0, %v1460
    %1462 = vmatmul.f32.gmra.mxu0 %v1423
    %v1463 = vpop.f32.mrf.mxu0
    %v1464 = vadd.f32 0.0, %v1463
    %1465 = vmatmul.f32.gmra.mxu0 %v1426
    %v1466 = vpop.f32.mrf.mxu0
    %v1467 = vadd.f32 0.0, %v1466
    %1468 = vmatmul.f32.gmra.mxu0 %v1429
    %v1469 = vpop.f32.mrf.mxu0
    %v1470 = vadd.f32 0.0, %v1469
    %1471 = vmatmul.f32.gmra.mxu0 %v1432
    %v1472 = vpop.f32.mrf.mxu0
    %v1473 = vadd.f32 0.0, %v1472
    %1474 = vmatmul.f32.gmra.mxu0 %v1435
    %v1475 = vpop.f32.mrf.mxu0
    %v1476 = vadd.f32 0.0, %v1475
    %1477 = vmatmul.f32.gmra.mxu0 %v1438
    %v1478 = vpop.f32.mrf.mxu0
    %v1479 = vadd.f32 0.0, %v1478
    %1480 = vdwg.mxu0
    %v1481 = vadd.f32 %v1203, %v1458
    %v1482 = vadd.f32 %v1204, %v1461
    %v1483 = vadd.f32 %v1205, %v1464
    %v1484 = vadd.f32 %v1206, %v1467
    %v1485 = vadd.f32 %v1207, %v1470
    %v1486 = vadd.f32 %v1208, %v1473
    %v1487 = vadd.f32 %v1209, %v1476
    %v1488 = vadd.f32 %v1210, %v1479
    %s1489 = scalar_lea.vmem %s3, 40
    %v1490 = vld [vmem:[%s1489] sm:$0xff]
    %1491 = vmatpush.xpose.msra.mxu0 0.0
    %1492 = vmatpush.xpose.msra.mxu0 0.0
    %1493 = vmatpush.xpose.msra.mxu0 0.0
    %1494 = vmatpush.xpose.msra.mxu0 0.0
    %1495 = vmatpush.xpose.msra.mxu0 0.0
    %1496 = vmatpush.xpose.msra.mxu0 0.0
    %1497 = vmatpush.xpose.msra.mxu0 0.0
    %1498 = vmatpush.xpose.msra.mxu0 0.0
    %1499 = vmatpush.xpose.msra.mxu0 0.0
    %1500 = vmatpush.xpose.msra.mxu0 0.0
    %1501 = vmatpush.xpose.msra.mxu0 0.0
    %1502 = vmatpush.xpose.msra.mxu0 0.0
    %1503 = vmatpush.xpose.msra.mxu0 0.0
    %1504 = vmatpush.xpose.msra.mxu0 0.0
    %1505 = vmatpush.xpose.msra.mxu0 0.0
    %1506 = vmatpush.xpose.msra.mxu0 %v1490
    %1507 = vmatmul.f32.gmra.mxu0 %v37
    %v1508 = vpop.f32.mrf.mxu0
    %v1509 = vadd.f32 0.0, %v1508
    %1510 = vmatmul.f32.gmra.mxu0 %v38
    %v1511 = vpop.f32.mrf.mxu0
    %v1512 = vadd.f32 0.0, %v1511
    %1513 = vmatmul.f32.gmra.mxu0 %v39
    %v1514 = vpop.f32.mrf.mxu0
    %v1515 = vadd.f32 0.0, %v1514
    %1516 = vmatmul.f32.gmra.mxu0 %v40
    %v1517 = vpop.f32.mrf.mxu0
    %v1518 = vadd.f32 0.0, %v1517
    %1519 = vmatmul.f32.gmra.mxu0 %v41
    %v1520 = vpop.f32.mrf.mxu0
    %v1521 = vadd.f32 0.0, %v1520
    %1522 = vmatmul.f32.gmra.mxu0 %v42
    %v1523 = vpop.f32.mrf.mxu0
    %v1524 = vadd.f32 0.0, %v1523
    %1525 = vmatmul.f32.gmra.mxu0 %v43
    %v1526 = vpop.f32.mrf.mxu0
    %v1527 = vadd.f32 0.0, %v1526
    %1528 = vmatmul.f32.gmra.mxu0 %v44
    %v1529 = vpop.f32.mrf.mxu0
    %v1530 = vadd.f32 0.0, %v1529
    %1531 = vdwg.mxu0
    %v1533 = vsel %vm106, %v1509, 0
    %v1536 = vsel %vm106, %v1512, 0
    %v1539 = vsel %vm106, %v1515, 0
    %v1542 = vsel %vm106, %v1518, 0
    %v1545 = vsel %vm106, %v1521, 0
    %v1548 = vsel %vm106, %v1524, 0
    %v1551 = vsel %vm106, %v1527, 0
    %v1554 = vsel %vm106, %v1530, 0
    %1556 = vmatpush.xpose.msra.mxu0 %v177
    %1557 = vmatpush.xpose.msra.mxu0 %v174
    %1558 = vmatpush.xpose.msra.mxu0 %v171
    %1559 = vmatpush.xpose.msra.mxu0 %v168
    %1560 = vmatpush.xpose.msra.mxu0 %v165
    %1561 = vmatpush.xpose.msra.mxu0 %v162
    %1562 = vmatpush.xpose.msra.mxu0 %v159
    %1563 = vmatpush.xpose.msra.mxu0 %v156
    %1564 = vmatpush.xpose.msra.mxu0 %v153
    %1565 = vmatpush.xpose.msra.mxu0 %v150
    %1566 = vmatpush.xpose.msra.mxu0 %v147
    %1567 = vmatpush.xpose.msra.mxu0 %v144
    %1568 = vmatpush.xpose.msra.mxu0 %v141
    %1569 = vmatpush.xpose.msra.mxu0 %v138
    %1570 = vmatpush.xpose.msra.mxu0 %v135
    %1571 = vmatpush.xpose.msra.mxu0 %v132
    %1572 = vmatmul.f32.gmra.mxu0 %v1533
    %v1573 = vpop.f32.mrf.mxu0
    %v1574 = vadd.f32 0.0, %v1573
    %1575 = vmatmul.f32.gmra.mxu0 %v1536
    %v1576 = vpop.f32.mrf.mxu0
    %v1577 = vadd.f32 0.0, %v1576
    %1578 = vmatmul.f32.gmra.mxu0 %v1539
    %v1579 = vpop.f32.mrf.mxu0
    %v1580 = vadd.f32 0.0, %v1579
    %1581 = vmatmul.f32.gmra.mxu0 %v1542
    %v1582 = vpop.f32.mrf.mxu0
    %v1583 = vadd.f32 0.0, %v1582
    %1584 = vmatmul.f32.gmra.mxu0 %v1545
    %v1585 = vpop.f32.mrf.mxu0
    %v1586 = vadd.f32 0.0, %v1585
    %1587 = vmatmul.f32.gmra.mxu0 %v1548
    %v1588 = vpop.f32.mrf.mxu0
    %v1589 = vadd.f32 0.0, %v1588
    %1590 = vmatmul.f32.gmra.mxu0 %v1551
    %v1591 = vpop.f32.mrf.mxu0
    %v1592 = vadd.f32 0.0, %v1591
    %1593 = vmatmul.f32.gmra.mxu0 %v1554
    %v1594 = vpop.f32.mrf.mxu0
    %v1595 = vadd.f32 0.0, %v1594
    %1596 = vdwg.mxu0
    %v1597 = vmul.f32 %v1574, 2.0
    %v1598 = vmul.f32 %v1577, 2.0
    %v1599 = vmul.f32 %v1580, 2.0
    %v1600 = vmul.f32 %v1583, 2.0
    %v1601 = vmul.f32 %v1586, 2.0
    %v1602 = vmul.f32 %v1589, 2.0
    %v1603 = vmul.f32 %v1592, 2.0
    %v1604 = vmul.f32 %v1595, 2.0
    %v1605 = vsub.f32 %v229, %v1597
    %v1606 = vsub.f32 %v229, %v1598
    %v1607 = vsub.f32 %v229, %v1599
    %v1608 = vsub.f32 %v229, %v1600
    %v1609 = vsub.f32 %v229, %v1601
    %v1610 = vsub.f32 %v229, %v1602
    %v1611 = vsub.f32 %v229, %v1603
    %v1612 = vsub.f32 %v229, %v1604
    %1613 = vmin.index.xlane.f32.xlu0 %v1605
    %v1614 = vpop.xlane.xlu0 %1613
    %1615 = vmin.index.xlane.f32.xlu0 %v1606
    %v1616 = vpop.xlane.xlu0 %1615
    %1617 = vmin.index.xlane.f32.xlu0 %v1607
    %v1618 = vpop.xlane.xlu0 %1617
    %1619 = vmin.index.xlane.f32.xlu0 %v1608
    %v1620 = vpop.xlane.xlu0 %1619
    %1621 = vmin.index.xlane.f32.xlu0 %v1609
    %v1622 = vpop.xlane.xlu0 %1621
    %1623 = vmin.index.xlane.f32.xlu0 %v1610
    %v1624 = vpop.xlane.xlu0 %1623
    %1625 = vmin.index.xlane.f32.xlu0 %v1611
    %v1626 = vpop.xlane.xlu0 %1625
    %1627 = vmin.index.xlane.f32.xlu0 %v1612
    %v1628 = vpop.xlane.xlu0 %1627
    %vm1629 = vcmp.eq.s32.totalorder %v63, %v1614
    %vm1630 = vcmp.eq.s32.totalorder %v63, %v1616
    %vm1631 = vcmp.eq.s32.totalorder %v63, %v1618
    %vm1632 = vcmp.eq.s32.totalorder %v63, %v1620
    %vm1633 = vcmp.eq.s32.totalorder %v63, %v1622
    %vm1634 = vcmp.eq.s32.totalorder %v63, %v1624
    %vm1635 = vcmp.eq.s32.totalorder %v63, %v1626
    %vm1636 = vcmp.eq.s32.totalorder %v63, %v1628
    %v1637 = vsel %vm1629, 1, 0
    %v1638 = vsel %vm1630, 1, 0
    %v1639 = vsel %vm1631, 1, 0
    %v1640 = vsel %vm1632, 1, 0
    %v1641 = vsel %vm1633, 1, 0
    %v1642 = vsel %vm1634, 1, 0
    %v1643 = vsel %vm1635, 1, 0
    %v1644 = vsel %vm1636, 1, 0
    %v1645 = vcvt.s32.f32 %v1637
    %v1646 = vcvt.s32.f32 %v1638
    %v1647 = vcvt.s32.f32 %v1639
    %v1648 = vcvt.s32.f32 %v1640
    %v1649 = vcvt.s32.f32 %v1641
    %v1650 = vcvt.s32.f32 %v1642
    %v1651 = vcvt.s32.f32 %v1643
    %v1652 = vcvt.s32.f32 %v1644
    %1653 = vmatpush.msra.mxu0 %v60
    %1654 = vmatpush.msra.mxu0 %v59
    %1655 = vmatpush.msra.mxu0 %v58
    %1656 = vmatpush.msra.mxu0 %v57
    %1657 = vmatpush.msra.mxu0 %v56
    %1658 = vmatpush.msra.mxu0 %v55
    %1659 = vmatpush.msra.mxu0 %v54
    %1660 = vmatpush.msra.mxu0 %v53
    %1661 = vmatpush.msra.mxu0 %v52
    %1662 = vmatpush.msra.mxu0 %v51
    %1663 = vmatpush.msra.mxu0 %v50
    %1664 = vmatpush.msra.mxu0 %v49
    %1665 = vmatpush.msra.mxu0 %v48
    %1666 = vmatpush.msra.mxu0 %v47
    %1667 = vmatpush.msra.mxu0 %v46
    %1668 = vmatpush.msra.mxu0 %v45
    %1669 = vmatmul.f32.gmra.mxu0 %v1645
    %v1670 = vpop.f32.mrf.mxu0
    %v1671 = vadd.f32 0.0, %v1670
    %1672 = vmatmul.f32.gmra.mxu0 %v1646
    %v1673 = vpop.f32.mrf.mxu0
    %v1674 = vadd.f32 0.0, %v1673
    %1675 = vmatmul.f32.gmra.mxu0 %v1647
    %v1676 = vpop.f32.mrf.mxu0
    %v1677 = vadd.f32 0.0, %v1676
    %1678 = vmatmul.f32.gmra.mxu0 %v1648
    %v1679 = vpop.f32.mrf.mxu0
    %v1680 = vadd.f32 0.0, %v1679
    %1681 = vmatmul.f32.gmra.mxu0 %v1649
    %v1682 = vpop.f32.mrf.mxu0
    %v1683 = vadd.f32 0.0, %v1682
    %1684 = vmatmul.f32.gmra.mxu0 %v1650
    %v1685 = vpop.f32.mrf.mxu0
    %v1686 = vadd.f32 0.0, %v1685
    %1687 = vmatmul.f32.gmra.mxu0 %v1651
    %v1688 = vpop.f32.mrf.mxu0
    %v1689 = vadd.f32 0.0, %v1688
    %1690 = vmatmul.f32.gmra.mxu0 %v1652
    %v1691 = vpop.f32.mrf.mxu0
    %v1692 = vadd.f32 0.0, %v1691
    %1693 = vdwg.mxu0
    %v1695 = vsel %vm106, %v1671, 0
    %v1698 = vsel %vm106, %v1674, 0
    %v1701 = vsel %vm106, %v1677, 0
    %v1704 = vsel %vm106, %v1680, 0
    %v1707 = vsel %vm106, %v1683, 0
    %v1710 = vsel %vm106, %v1686, 0
    %v1713 = vsel %vm106, %v1689, 0
    %v1716 = vsel %vm106, %v1692, 0
    %1718 = vmatpush.msra.mxu0 0.0
    %1719 = vmatpush.msra.mxu0 0.0
    %1720 = vmatpush.msra.mxu0 0.0
    %1721 = vmatpush.msra.mxu0 0.0
    %1722 = vmatpush.msra.mxu0 0.0
    %1723 = vmatpush.msra.mxu0 0.0
    %1724 = vmatpush.msra.mxu0 0.0
    %1725 = vmatpush.msra.mxu0 0.0
    %1726 = vmatpush.msra.mxu0 0.0
    %1727 = vmatpush.msra.mxu0 0.0
    %1728 = vmatpush.msra.mxu0 0.0
    %1729 = vmatpush.msra.mxu0 0.0
    %1730 = vmatpush.msra.mxu0 0.0
    %1731 = vmatpush.msra.mxu0 0.0
    %1732 = vmatpush.msra.mxu0 0.0
    %1733 = vmatpush.msra.mxu0 %v1490
    %1734 = vmatmul.f32.gmra.mxu0 %v1695
    %v1735 = vpop.f32.mrf.mxu0
    %v1736 = vadd.f32 0.0, %v1735
    %1737 = vmatmul.f32.gmra.mxu0 %v1698
    %v1738 = vpop.f32.mrf.mxu0
    %v1739 = vadd.f32 0.0, %v1738
    %1740 = vmatmul.f32.gmra.mxu0 %v1701
    %v1741 = vpop.f32.mrf.mxu0
    %v1742 = vadd.f32 0.0, %v1741
    %1743 = vmatmul.f32.gmra.mxu0 %v1704
    %v1744 = vpop.f32.mrf.mxu0
    %v1745 = vadd.f32 0.0, %v1744
    %1746 = vmatmul.f32.gmra.mxu0 %v1707
    %v1747 = vpop.f32.mrf.mxu0
    %v1748 = vadd.f32 0.0, %v1747
    %1749 = vmatmul.f32.gmra.mxu0 %v1710
    %v1750 = vpop.f32.mrf.mxu0
    %v1751 = vadd.f32 0.0, %v1750
    %1752 = vmatmul.f32.gmra.mxu0 %v1713
    %v1753 = vpop.f32.mrf.mxu0
    %v1754 = vadd.f32 0.0, %v1753
    %1755 = vmatmul.f32.gmra.mxu0 %v1716
    %v1756 = vpop.f32.mrf.mxu0
    %v1757 = vadd.f32 0.0, %v1756
    %1758 = vdwg.mxu0
    %v1759 = vadd.f32 %v1481, %v1736
    %v1760 = vadd.f32 %v1482, %v1739
    %v1761 = vadd.f32 %v1483, %v1742
    %v1762 = vadd.f32 %v1484, %v1745
    %v1763 = vadd.f32 %v1485, %v1748
    %v1764 = vadd.f32 %v1486, %v1751
    %v1765 = vadd.f32 %v1487, %v1754
    %v1766 = vadd.f32 %v1488, %v1757
    %s1767 = scalar_lea.vmem %s3, 48
    %v1768 = vld [vmem:[%s1767] sm:$0xff]
    %1769 = vmatpush.xpose.msra.mxu0 0.0
    %1770 = vmatpush.xpose.msra.mxu0 0.0
    %1771 = vmatpush.xpose.msra.mxu0 0.0
    %1772 = vmatpush.xpose.msra.mxu0 0.0
    %1773 = vmatpush.xpose.msra.mxu0 0.0
    %1774 = vmatpush.xpose.msra.mxu0 0.0
    %1775 = vmatpush.xpose.msra.mxu0 0.0
    %1776 = vmatpush.xpose.msra.mxu0 0.0
    %1777 = vmatpush.xpose.msra.mxu0 0.0
    %1778 = vmatpush.xpose.msra.mxu0 0.0
    %1779 = vmatpush.xpose.msra.mxu0 0.0
    %1780 = vmatpush.xpose.msra.mxu0 0.0
    %1781 = vmatpush.xpose.msra.mxu0 0.0
    %1782 = vmatpush.xpose.msra.mxu0 0.0
    %1783 = vmatpush.xpose.msra.mxu0 0.0
    %1784 = vmatpush.xpose.msra.mxu0 %v1768
    %1785 = vmatmul.f32.gmra.mxu0 %v37
    %v1786 = vpop.f32.mrf.mxu0
    %v1787 = vadd.f32 0.0, %v1786
    %1788 = vmatmul.f32.gmra.mxu0 %v38
    %v1789 = vpop.f32.mrf.mxu0
    %v1790 = vadd.f32 0.0, %v1789
    %1791 = vmatmul.f32.gmra.mxu0 %v39
    %v1792 = vpop.f32.mrf.mxu0
    %v1793 = vadd.f32 0.0, %v1792
    %1794 = vmatmul.f32.gmra.mxu0 %v40
    %v1795 = vpop.f32.mrf.mxu0
    %v1796 = vadd.f32 0.0, %v1795
    %1797 = vmatmul.f32.gmra.mxu0 %v41
    %v1798 = vpop.f32.mrf.mxu0
    %v1799 = vadd.f32 0.0, %v1798
    %1800 = vmatmul.f32.gmra.mxu0 %v42
    %v1801 = vpop.f32.mrf.mxu0
    %v1802 = vadd.f32 0.0, %v1801
    %1803 = vmatmul.f32.gmra.mxu0 %v43
    %v1804 = vpop.f32.mrf.mxu0
    %v1805 = vadd.f32 0.0, %v1804
    %1806 = vmatmul.f32.gmra.mxu0 %v44
    %v1807 = vpop.f32.mrf.mxu0
    %v1808 = vadd.f32 0.0, %v1807
    %1809 = vdwg.mxu0
    %v1811 = vsel %vm106, %v1787, 0
    %v1814 = vsel %vm106, %v1790, 0
    %v1817 = vsel %vm106, %v1793, 0
    %v1820 = vsel %vm106, %v1796, 0
    %v1823 = vsel %vm106, %v1799, 0
    %v1826 = vsel %vm106, %v1802, 0
    %v1829 = vsel %vm106, %v1805, 0
    %v1832 = vsel %vm106, %v1808, 0
    %1834 = vmatpush.xpose.msra.mxu0 %v177
    %1835 = vmatpush.xpose.msra.mxu0 %v174
    %1836 = vmatpush.xpose.msra.mxu0 %v171
    %1837 = vmatpush.xpose.msra.mxu0 %v168
    %1838 = vmatpush.xpose.msra.mxu0 %v165
    %1839 = vmatpush.xpose.msra.mxu0 %v162
    %1840 = vmatpush.xpose.msra.mxu0 %v159
    %1841 = vmatpush.xpose.msra.mxu0 %v156
    %1842 = vmatpush.xpose.msra.mxu0 %v153
    %1843 = vmatpush.xpose.msra.mxu0 %v150
    %1844 = vmatpush.xpose.msra.mxu0 %v147
    %1845 = vmatpush.xpose.msra.mxu0 %v144
    %1846 = vmatpush.xpose.msra.mxu0 %v141
    %1847 = vmatpush.xpose.msra.mxu0 %v138
    %1848 = vmatpush.xpose.msra.mxu0 %v135
    %1849 = vmatpush.xpose.msra.mxu0 %v132
    %1850 = vmatmul.f32.gmra.mxu0 %v1811
    %v1851 = vpop.f32.mrf.mxu0
    %v1852 = vadd.f32 0.0, %v1851
    %1853 = vmatmul.f32.gmra.mxu0 %v1814
    %v1854 = vpop.f32.mrf.mxu0
    %v1855 = vadd.f32 0.0, %v1854
    %1856 = vmatmul.f32.gmra.mxu0 %v1817
    %v1857 = vpop.f32.mrf.mxu0
    %v1858 = vadd.f32 0.0, %v1857
    %1859 = vmatmul.f32.gmra.mxu0 %v1820
    %v1860 = vpop.f32.mrf.mxu0
    %v1861 = vadd.f32 0.0, %v1860
    %1862 = vmatmul.f32.gmra.mxu0 %v1823
    %v1863 = vpop.f32.mrf.mxu0
    %v1864 = vadd.f32 0.0, %v1863
    %1865 = vmatmul.f32.gmra.mxu0 %v1826
    %v1866 = vpop.f32.mrf.mxu0
    %v1867 = vadd.f32 0.0, %v1866
    %1868 = vmatmul.f32.gmra.mxu0 %v1829
    %v1869 = vpop.f32.mrf.mxu0
    %v1870 = vadd.f32 0.0, %v1869
    %1871 = vmatmul.f32.gmra.mxu0 %v1832
    %v1872 = vpop.f32.mrf.mxu0
    %v1873 = vadd.f32 0.0, %v1872
    %1874 = vdwg.mxu0
    %v1875 = vmul.f32 %v1852, 2.0
    %v1876 = vmul.f32 %v1855, 2.0
    %v1877 = vmul.f32 %v1858, 2.0
    %v1878 = vmul.f32 %v1861, 2.0
    %v1879 = vmul.f32 %v1864, 2.0
    %v1880 = vmul.f32 %v1867, 2.0
    %v1881 = vmul.f32 %v1870, 2.0
    %v1882 = vmul.f32 %v1873, 2.0
    %v1883 = vsub.f32 %v229, %v1875
    %v1884 = vsub.f32 %v229, %v1876
    %v1885 = vsub.f32 %v229, %v1877
    %v1886 = vsub.f32 %v229, %v1878
    %v1887 = vsub.f32 %v229, %v1879
    %v1888 = vsub.f32 %v229, %v1880
    %v1889 = vsub.f32 %v229, %v1881
    %v1890 = vsub.f32 %v229, %v1882
    %1891 = vmin.index.xlane.f32.xlu0 %v1883
    %v1892 = vpop.xlane.xlu0 %1891
    %1893 = vmin.index.xlane.f32.xlu0 %v1884
    %v1894 = vpop.xlane.xlu0 %1893
    %1895 = vmin.index.xlane.f32.xlu0 %v1885
    %v1896 = vpop.xlane.xlu0 %1895
    %1897 = vmin.index.xlane.f32.xlu0 %v1886
    %v1898 = vpop.xlane.xlu0 %1897
    %1899 = vmin.index.xlane.f32.xlu0 %v1887
    %v1900 = vpop.xlane.xlu0 %1899
    %1901 = vmin.index.xlane.f32.xlu0 %v1888
    %v1902 = vpop.xlane.xlu0 %1901
    %1903 = vmin.index.xlane.f32.xlu0 %v1889
    %v1904 = vpop.xlane.xlu0 %1903
    %1905 = vmin.index.xlane.f32.xlu0 %v1890
    %v1906 = vpop.xlane.xlu0 %1905
    %vm1907 = vcmp.eq.s32.totalorder %v63, %v1892
    %vm1908 = vcmp.eq.s32.totalorder %v63, %v1894
    %vm1909 = vcmp.eq.s32.totalorder %v63, %v1896
    %vm1910 = vcmp.eq.s32.totalorder %v63, %v1898
    %vm1911 = vcmp.eq.s32.totalorder %v63, %v1900
    %vm1912 = vcmp.eq.s32.totalorder %v63, %v1902
    %vm1913 = vcmp.eq.s32.totalorder %v63, %v1904
    %vm1914 = vcmp.eq.s32.totalorder %v63, %v1906
    %v1915 = vsel %vm1907, 1, 0
    %v1916 = vsel %vm1908, 1, 0
    %v1917 = vsel %vm1909, 1, 0
    %v1918 = vsel %vm1910, 1, 0
    %v1919 = vsel %vm1911, 1, 0
    %v1920 = vsel %vm1912, 1, 0
    %v1921 = vsel %vm1913, 1, 0
    %v1922 = vsel %vm1914, 1, 0
    %v1923 = vcvt.s32.f32 %v1915
    %v1924 = vcvt.s32.f32 %v1916
    %v1925 = vcvt.s32.f32 %v1917
    %v1926 = vcvt.s32.f32 %v1918
    %v1927 = vcvt.s32.f32 %v1919
    %v1928 = vcvt.s32.f32 %v1920
    %v1929 = vcvt.s32.f32 %v1921
    %v1930 = vcvt.s32.f32 %v1922
    %1931 = vmatpush.msra.mxu0 %v60
    %1932 = vmatpush.msra.mxu0 %v59
    %1933 = vmatpush.msra.mxu0 %v58
    %1934 = vmatpush.msra.mxu0 %v57
    %1935 = vmatpush.msra.mxu0 %v56
    %1936 = vmatpush.msra.mxu0 %v55
    %1937 = vmatpush.msra.mxu0 %v54
    %1938 = vmatpush.msra.mxu0 %v53
    %1939 = vmatpush.msra.mxu0 %v52
    %1940 = vmatpush.msra.mxu0 %v51
    %1941 = vmatpush.msra.mxu0 %v50
    %1942 = vmatpush.msra.mxu0 %v49
    %1943 = vmatpush.msra.mxu0 %v48
    %1944 = vmatpush.msra.mxu0 %v47
    %1945 = vmatpush.msra.mxu0 %v46
    %1946 = vmatpush.msra.mxu0 %v45
    %1947 = vmatmul.f32.gmra.mxu0 %v1923
    %v1948 = vpop.f32.mrf.mxu0
    %v1949 = vadd.f32 0.0, %v1948
    %1950 = vmatmul.f32.gmra.mxu0 %v1924
    %v1951 = vpop.f32.mrf.mxu0
    %v1952 = vadd.f32 0.0, %v1951
    %1953 = vmatmul.f32.gmra.mxu0 %v1925
    %v1954 = vpop.f32.mrf.mxu0
    %v1955 = vadd.f32 0.0, %v1954
    %1956 = vmatmul.f32.gmra.mxu0 %v1926
    %v1957 = vpop.f32.mrf.mxu0
    %v1958 = vadd.f32 0.0, %v1957
    %1959 = vmatmul.f32.gmra.mxu0 %v1927
    %v1960 = vpop.f32.mrf.mxu0
    %v1961 = vadd.f32 0.0, %v1960
    %1962 = vmatmul.f32.gmra.mxu0 %v1928
    %v1963 = vpop.f32.mrf.mxu0
    %v1964 = vadd.f32 0.0, %v1963
    %1965 = vmatmul.f32.gmra.mxu0 %v1929
    %v1966 = vpop.f32.mrf.mxu0
    %v1967 = vadd.f32 0.0, %v1966
    %1968 = vmatmul.f32.gmra.mxu0 %v1930
    %v1969 = vpop.f32.mrf.mxu0
    %v1970 = vadd.f32 0.0, %v1969
    %1971 = vdwg.mxu0
    %v1973 = vsel %vm106, %v1949, 0
    %v1976 = vsel %vm106, %v1952, 0
    %v1979 = vsel %vm106, %v1955, 0
    %v1982 = vsel %vm106, %v1958, 0
    %v1985 = vsel %vm106, %v1961, 0
    %v1988 = vsel %vm106, %v1964, 0
    %v1991 = vsel %vm106, %v1967, 0
    %v1994 = vsel %vm106, %v1970, 0
    %1996 = vmatpush.msra.mxu0 0.0
    %1997 = vmatpush.msra.mxu0 0.0
    %1998 = vmatpush.msra.mxu0 0.0
    %1999 = vmatpush.msra.mxu0 0.0
    %2000 = vmatpush.msra.mxu0 0.0
    %2001 = vmatpush.msra.mxu0 0.0
    %2002 = vmatpush.msra.mxu0 0.0
    %2003 = vmatpush.msra.mxu0 0.0
    %2004 = vmatpush.msra.mxu0 0.0
    %2005 = vmatpush.msra.mxu0 0.0
    %2006 = vmatpush.msra.mxu0 0.0
    %2007 = vmatpush.msra.mxu0 0.0
    %2008 = vmatpush.msra.mxu0 0.0
    %2009 = vmatpush.msra.mxu0 0.0
    %2010 = vmatpush.msra.mxu0 0.0
    %2011 = vmatpush.msra.mxu0 %v1768
    %2012 = vmatmul.f32.gmra.mxu0 %v1973
    %v2013 = vpop.f32.mrf.mxu0
    %v2014 = vadd.f32 0.0, %v2013
    %2015 = vmatmul.f32.gmra.mxu0 %v1976
    %v2016 = vpop.f32.mrf.mxu0
    %v2017 = vadd.f32 0.0, %v2016
    %2018 = vmatmul.f32.gmra.mxu0 %v1979
    %v2019 = vpop.f32.mrf.mxu0
    %v2020 = vadd.f32 0.0, %v2019
    %2021 = vmatmul.f32.gmra.mxu0 %v1982
    %v2022 = vpop.f32.mrf.mxu0
    %v2023 = vadd.f32 0.0, %v2022
    %2024 = vmatmul.f32.gmra.mxu0 %v1985
    %v2025 = vpop.f32.mrf.mxu0
    %v2026 = vadd.f32 0.0, %v2025
    %2027 = vmatmul.f32.gmra.mxu0 %v1988
    %v2028 = vpop.f32.mrf.mxu0
    %v2029 = vadd.f32 0.0, %v2028
    %2030 = vmatmul.f32.gmra.mxu0 %v1991
    %v2031 = vpop.f32.mrf.mxu0
    %v2032 = vadd.f32 0.0, %v2031
    %2033 = vmatmul.f32.gmra.mxu0 %v1994
    %v2034 = vpop.f32.mrf.mxu0
    %v2035 = vadd.f32 0.0, %v2034
    %2036 = vdwg.mxu0
    %v2037 = vadd.f32 %v1759, %v2014
    %v2038 = vadd.f32 %v1760, %v2017
    %v2039 = vadd.f32 %v1761, %v2020
    %v2040 = vadd.f32 %v1762, %v2023
    %v2041 = vadd.f32 %v1763, %v2026
    %v2042 = vadd.f32 %v1764, %v2029
    %v2043 = vadd.f32 %v1765, %v2032
    %v2044 = vadd.f32 %v1766, %v2035
    %s2045 = scalar_lea.vmem %s3, 56
    %v2046 = vld [vmem:[%s2045] sm:$0xff]
    %2047 = vmatpush.xpose.msra.mxu0 0.0
    %2048 = vmatpush.xpose.msra.mxu0 0.0
    %2049 = vmatpush.xpose.msra.mxu0 0.0
    %2050 = vmatpush.xpose.msra.mxu0 0.0
    %2051 = vmatpush.xpose.msra.mxu0 0.0
    %2052 = vmatpush.xpose.msra.mxu0 0.0
    %2053 = vmatpush.xpose.msra.mxu0 0.0
    %2054 = vmatpush.xpose.msra.mxu0 0.0
    %2055 = vmatpush.xpose.msra.mxu0 0.0
    %2056 = vmatpush.xpose.msra.mxu0 0.0
    %2057 = vmatpush.xpose.msra.mxu0 0.0
    %2058 = vmatpush.xpose.msra.mxu0 0.0
    %2059 = vmatpush.xpose.msra.mxu0 0.0
    %2060 = vmatpush.xpose.msra.mxu0 0.0
    %2061 = vmatpush.xpose.msra.mxu0 0.0
    %2062 = vmatpush.xpose.msra.mxu0 %v2046
    %2063 = vmatmul.f32.gmra.mxu0 %v37
    %v2064 = vpop.f32.mrf.mxu0
    %v2065 = vadd.f32 0.0, %v2064
    %2066 = vmatmul.f32.gmra.mxu0 %v38
    %v2067 = vpop.f32.mrf.mxu0
    %v2068 = vadd.f32 0.0, %v2067
    %2069 = vmatmul.f32.gmra.mxu0 %v39
    %v2070 = vpop.f32.mrf.mxu0
    %v2071 = vadd.f32 0.0, %v2070
    %2072 = vmatmul.f32.gmra.mxu0 %v40
    %v2073 = vpop.f32.mrf.mxu0
    %v2074 = vadd.f32 0.0, %v2073
    %2075 = vmatmul.f32.gmra.mxu0 %v41
    %v2076 = vpop.f32.mrf.mxu0
    %v2077 = vadd.f32 0.0, %v2076
    %2078 = vmatmul.f32.gmra.mxu0 %v42
    %v2079 = vpop.f32.mrf.mxu0
    %v2080 = vadd.f32 0.0, %v2079
    %2081 = vmatmul.f32.gmra.mxu0 %v43
    %v2082 = vpop.f32.mrf.mxu0
    %v2083 = vadd.f32 0.0, %v2082
    %2084 = vmatmul.f32.gmra.mxu0 %v44
    %v2085 = vpop.f32.mrf.mxu0
    %v2086 = vadd.f32 0.0, %v2085
    %2087 = vdwg.mxu0
    %v2089 = vsel %vm106, %v2065, 0
    %v2092 = vsel %vm106, %v2068, 0
    %v2095 = vsel %vm106, %v2071, 0
    %v2098 = vsel %vm106, %v2074, 0
    %v2101 = vsel %vm106, %v2077, 0
    %v2104 = vsel %vm106, %v2080, 0
    %v2107 = vsel %vm106, %v2083, 0
    %v2110 = vsel %vm106, %v2086, 0
    %2112 = vmatpush.xpose.msra.mxu0 %v177
    %2113 = vmatpush.xpose.msra.mxu0 %v174
    %2114 = vmatpush.xpose.msra.mxu0 %v171
    %2115 = vmatpush.xpose.msra.mxu0 %v168
    %2116 = vmatpush.xpose.msra.mxu0 %v165
    %2117 = vmatpush.xpose.msra.mxu0 %v162
    %2118 = vmatpush.xpose.msra.mxu0 %v159
    %2119 = vmatpush.xpose.msra.mxu0 %v156
    %2120 = vmatpush.xpose.msra.mxu0 %v153
    %2121 = vmatpush.xpose.msra.mxu0 %v150
    %2122 = vmatpush.xpose.msra.mxu0 %v147
    %2123 = vmatpush.xpose.msra.mxu0 %v144
    %2124 = vmatpush.xpose.msra.mxu0 %v141
    %2125 = vmatpush.xpose.msra.mxu0 %v138
    %2126 = vmatpush.xpose.msra.mxu0 %v135
    %2127 = vmatpush.xpose.msra.mxu0 %v132
    %2128 = vmatmul.f32.gmra.mxu0 %v2089
    %v2129 = vpop.f32.mrf.mxu0
    %v2130 = vadd.f32 0.0, %v2129
    %2131 = vmatmul.f32.gmra.mxu0 %v2092
    %v2132 = vpop.f32.mrf.mxu0
    %v2133 = vadd.f32 0.0, %v2132
    %2134 = vmatmul.f32.gmra.mxu0 %v2095
    %v2135 = vpop.f32.mrf.mxu0
    %v2136 = vadd.f32 0.0, %v2135
    %2137 = vmatmul.f32.gmra.mxu0 %v2098
    %v2138 = vpop.f32.mrf.mxu0
    %v2139 = vadd.f32 0.0, %v2138
    %2140 = vmatmul.f32.gmra.mxu0 %v2101
    %v2141 = vpop.f32.mrf.mxu0
    %v2142 = vadd.f32 0.0, %v2141
    %2143 = vmatmul.f32.gmra.mxu0 %v2104
    %v2144 = vpop.f32.mrf.mxu0
    %v2145 = vadd.f32 0.0, %v2144
    %2146 = vmatmul.f32.gmra.mxu0 %v2107
    %v2147 = vpop.f32.mrf.mxu0
    %v2148 = vadd.f32 0.0, %v2147
    %2149 = vmatmul.f32.gmra.mxu0 %v2110
    %v2150 = vpop.f32.mrf.mxu0
    %v2151 = vadd.f32 0.0, %v2150
    %2152 = vdwg.mxu0
    %v2153 = vmul.f32 %v2130, 2.0
    %v2154 = vmul.f32 %v2133, 2.0
    %v2155 = vmul.f32 %v2136, 2.0
    %v2156 = vmul.f32 %v2139, 2.0
    %v2157 = vmul.f32 %v2142, 2.0
    %v2158 = vmul.f32 %v2145, 2.0
    %v2159 = vmul.f32 %v2148, 2.0
    %v2160 = vmul.f32 %v2151, 2.0
    %v2161 = vsub.f32 %v229, %v2153
    %v2162 = vsub.f32 %v229, %v2154
    %v2163 = vsub.f32 %v229, %v2155
    %v2164 = vsub.f32 %v229, %v2156
    %v2165 = vsub.f32 %v229, %v2157
    %v2166 = vsub.f32 %v229, %v2158
    %v2167 = vsub.f32 %v229, %v2159
    %v2168 = vsub.f32 %v229, %v2160
    %2169 = vmin.index.xlane.f32.xlu0 %v2161
    %v2170 = vpop.xlane.xlu0 %2169
    %2171 = vmin.index.xlane.f32.xlu0 %v2162
    %v2172 = vpop.xlane.xlu0 %2171
    %2173 = vmin.index.xlane.f32.xlu0 %v2163
    %v2174 = vpop.xlane.xlu0 %2173
    %2175 = vmin.index.xlane.f32.xlu0 %v2164
    %v2176 = vpop.xlane.xlu0 %2175
    %2177 = vmin.index.xlane.f32.xlu0 %v2165
    %v2178 = vpop.xlane.xlu0 %2177
    %2179 = vmin.index.xlane.f32.xlu0 %v2166
    %v2180 = vpop.xlane.xlu0 %2179
    %2181 = vmin.index.xlane.f32.xlu0 %v2167
    %v2182 = vpop.xlane.xlu0 %2181
    %2183 = vmin.index.xlane.f32.xlu0 %v2168
    %v2184 = vpop.xlane.xlu0 %2183
    %vm2185 = vcmp.eq.s32.totalorder %v63, %v2170
    %vm2186 = vcmp.eq.s32.totalorder %v63, %v2172
    %vm2187 = vcmp.eq.s32.totalorder %v63, %v2174
    %vm2188 = vcmp.eq.s32.totalorder %v63, %v2176
    %vm2189 = vcmp.eq.s32.totalorder %v63, %v2178
    %vm2190 = vcmp.eq.s32.totalorder %v63, %v2180
    %vm2191 = vcmp.eq.s32.totalorder %v63, %v2182
    %vm2192 = vcmp.eq.s32.totalorder %v63, %v2184
    %v2193 = vsel %vm2185, 1, 0
    %v2194 = vsel %vm2186, 1, 0
    %v2195 = vsel %vm2187, 1, 0
    %v2196 = vsel %vm2188, 1, 0
    %v2197 = vsel %vm2189, 1, 0
    %v2198 = vsel %vm2190, 1, 0
    %v2199 = vsel %vm2191, 1, 0
    %v2200 = vsel %vm2192, 1, 0
    %v2201 = vcvt.s32.f32 %v2193
    %v2202 = vcvt.s32.f32 %v2194
    %v2203 = vcvt.s32.f32 %v2195
    %v2204 = vcvt.s32.f32 %v2196
    %v2205 = vcvt.s32.f32 %v2197
    %v2206 = vcvt.s32.f32 %v2198
    %v2207 = vcvt.s32.f32 %v2199
    %v2208 = vcvt.s32.f32 %v2200
    %2209 = vmatpush.msra.mxu0 %v60
    %2210 = vmatpush.msra.mxu0 %v59
    %2211 = vmatpush.msra.mxu0 %v58
    %2212 = vmatpush.msra.mxu0 %v57
    %2213 = vmatpush.msra.mxu0 %v56
    %2214 = vmatpush.msra.mxu0 %v55
    %2215 = vmatpush.msra.mxu0 %v54
    %2216 = vmatpush.msra.mxu0 %v53
    %2217 = vmatpush.msra.mxu0 %v52
    %2218 = vmatpush.msra.mxu0 %v51
    %2219 = vmatpush.msra.mxu0 %v50
    %2220 = vmatpush.msra.mxu0 %v49
    %2221 = vmatpush.msra.mxu0 %v48
    %2222 = vmatpush.msra.mxu0 %v47
    %2223 = vmatpush.msra.mxu0 %v46
    %2224 = vmatpush.msra.mxu0 %v45
    %2225 = vmatmul.f32.gmra.mxu0 %v2201
    %v2226 = vpop.f32.mrf.mxu0
    %v2227 = vadd.f32 0.0, %v2226
    %2228 = vmatmul.f32.gmra.mxu0 %v2202
    %v2229 = vpop.f32.mrf.mxu0
    %v2230 = vadd.f32 0.0, %v2229
    %2231 = vmatmul.f32.gmra.mxu0 %v2203
    %v2232 = vpop.f32.mrf.mxu0
    %v2233 = vadd.f32 0.0, %v2232
    %2234 = vmatmul.f32.gmra.mxu0 %v2204
    %v2235 = vpop.f32.mrf.mxu0
    %v2236 = vadd.f32 0.0, %v2235
    %2237 = vmatmul.f32.gmra.mxu0 %v2205
    %v2238 = vpop.f32.mrf.mxu0
    %v2239 = vadd.f32 0.0, %v2238
    %2240 = vmatmul.f32.gmra.mxu0 %v2206
    %v2241 = vpop.f32.mrf.mxu0
    %v2242 = vadd.f32 0.0, %v2241
    %2243 = vmatmul.f32.gmra.mxu0 %v2207
    %v2244 = vpop.f32.mrf.mxu0
    %v2245 = vadd.f32 0.0, %v2244
    %2246 = vmatmul.f32.gmra.mxu0 %v2208
    %v2247 = vpop.f32.mrf.mxu0
    %v2248 = vadd.f32 0.0, %v2247
    %2249 = vdwg.mxu0
    %v2251 = vsel %vm106, %v2227, 0
    %v2254 = vsel %vm106, %v2230, 0
    %v2257 = vsel %vm106, %v2233, 0
    %v2260 = vsel %vm106, %v2236, 0
    %v2263 = vsel %vm106, %v2239, 0
    %v2266 = vsel %vm106, %v2242, 0
    %v2269 = vsel %vm106, %v2245, 0
    %v2272 = vsel %vm106, %v2248, 0
    %2274 = vmatpush.msra.mxu0 0.0
    %2275 = vmatpush.msra.mxu0 0.0
    %2276 = vmatpush.msra.mxu0 0.0
    %2277 = vmatpush.msra.mxu0 0.0
    %2278 = vmatpush.msra.mxu0 0.0
    %2279 = vmatpush.msra.mxu0 0.0
    %2280 = vmatpush.msra.mxu0 0.0
    %2281 = vmatpush.msra.mxu0 0.0
    %2282 = vmatpush.msra.mxu0 0.0
    %2283 = vmatpush.msra.mxu0 0.0
    %2284 = vmatpush.msra.mxu0 0.0
    %2285 = vmatpush.msra.mxu0 0.0
    %2286 = vmatpush.msra.mxu0 0.0
    %2287 = vmatpush.msra.mxu0 0.0
    %2288 = vmatpush.msra.mxu0 0.0
    %2289 = vmatpush.msra.mxu0 %v2046
    %2290 = vmatmul.f32.gmra.mxu0 %v2251
    %v2291 = vpop.f32.mrf.mxu0
    %v2292 = vadd.f32 0.0, %v2291
    %2293 = vmatmul.f32.gmra.mxu0 %v2254
    %v2294 = vpop.f32.mrf.mxu0
    %v2295 = vadd.f32 0.0, %v2294
    %2296 = vmatmul.f32.gmra.mxu0 %v2257
    %v2297 = vpop.f32.mrf.mxu0
    %v2298 = vadd.f32 0.0, %v2297
    %2299 = vmatmul.f32.gmra.mxu0 %v2260
    %v2300 = vpop.f32.mrf.mxu0
    %v2301 = vadd.f32 0.0, %v2300
    %2302 = vmatmul.f32.gmra.mxu0 %v2263
    %v2303 = vpop.f32.mrf.mxu0
    %v2304 = vadd.f32 0.0, %v2303
    %2305 = vmatmul.f32.gmra.mxu0 %v2266
    %v2306 = vpop.f32.mrf.mxu0
    %v2307 = vadd.f32 0.0, %v2306
    %2308 = vmatmul.f32.gmra.mxu0 %v2269
    %v2309 = vpop.f32.mrf.mxu0
    %v2310 = vadd.f32 0.0, %v2309
    %2311 = vmatmul.f32.gmra.mxu0 %v2272
    %v2312 = vpop.f32.mrf.mxu0
    %v2313 = vadd.f32 0.0, %v2312
    %2314 = vdwg.mxu0
    %v2315 = vadd.f32 %v2037, %v2292
    %v2316 = vadd.f32 %v2038, %v2295
    %v2317 = vadd.f32 %v2039, %v2298
    %v2318 = vadd.f32 %v2040, %v2301
    %v2319 = vadd.f32 %v2041, %v2304
    %v2320 = vadd.f32 %v2042, %v2307
    %v2321 = vadd.f32 %v2043, %v2310
    %v2322 = vadd.f32 %v2044, %v2313
    %s2323 = scalar_lea.vmem %s3, 64
    %v2324 = vld [vmem:[%s2323] sm:$0xff]
    %2325 = vmatpush.xpose.msra.mxu0 0.0
    %2326 = vmatpush.xpose.msra.mxu0 0.0
    %2327 = vmatpush.xpose.msra.mxu0 0.0
    %2328 = vmatpush.xpose.msra.mxu0 0.0
    %2329 = vmatpush.xpose.msra.mxu0 0.0
    %2330 = vmatpush.xpose.msra.mxu0 0.0
    %2331 = vmatpush.xpose.msra.mxu0 0.0
    %2332 = vmatpush.xpose.msra.mxu0 0.0
    %2333 = vmatpush.xpose.msra.mxu0 0.0
    %2334 = vmatpush.xpose.msra.mxu0 0.0
    %2335 = vmatpush.xpose.msra.mxu0 0.0
    %2336 = vmatpush.xpose.msra.mxu0 0.0
    %2337 = vmatpush.xpose.msra.mxu0 0.0
    %2338 = vmatpush.xpose.msra.mxu0 0.0
    %2339 = vmatpush.xpose.msra.mxu0 0.0
    %2340 = vmatpush.xpose.msra.mxu0 %v2324
    %2341 = vmatmul.f32.gmra.mxu0 %v37
    %v2342 = vpop.f32.mrf.mxu0
    %v2343 = vadd.f32 0.0, %v2342
    %2344 = vmatmul.f32.gmra.mxu0 %v38
    %v2345 = vpop.f32.mrf.mxu0
    %v2346 = vadd.f32 0.0, %v2345
    %2347 = vmatmul.f32.gmra.mxu0 %v39
    %v2348 = vpop.f32.mrf.mxu0
    %v2349 = vadd.f32 0.0, %v2348
    %2350 = vmatmul.f32.gmra.mxu0 %v40
    %v2351 = vpop.f32.mrf.mxu0
    %v2352 = vadd.f32 0.0, %v2351
    %2353 = vmatmul.f32.gmra.mxu0 %v41
    %v2354 = vpop.f32.mrf.mxu0
    %v2355 = vadd.f32 0.0, %v2354
    %2356 = vmatmul.f32.gmra.mxu0 %v42
    %v2357 = vpop.f32.mrf.mxu0
    %v2358 = vadd.f32 0.0, %v2357
    %2359 = vmatmul.f32.gmra.mxu0 %v43
    %v2360 = vpop.f32.mrf.mxu0
    %v2361 = vadd.f32 0.0, %v2360
    %2362 = vmatmul.f32.gmra.mxu0 %v44
    %v2363 = vpop.f32.mrf.mxu0
    %v2364 = vadd.f32 0.0, %v2363
    %2365 = vdwg.mxu0
    %v2367 = vsel %vm106, %v2343, 0
    %v2370 = vsel %vm106, %v2346, 0
    %v2373 = vsel %vm106, %v2349, 0
    %v2376 = vsel %vm106, %v2352, 0
    %v2379 = vsel %vm106, %v2355, 0
    %v2382 = vsel %vm106, %v2358, 0
    %v2385 = vsel %vm106, %v2361, 0
    %v2388 = vsel %vm106, %v2364, 0
    %2390 = vmatpush.xpose.msra.mxu0 %v177
    %2391 = vmatpush.xpose.msra.mxu0 %v174
    %2392 = vmatpush.xpose.msra.mxu0 %v171
    %2393 = vmatpush.xpose.msra.mxu0 %v168
    %2394 = vmatpush.xpose.msra.mxu0 %v165
    %2395 = vmatpush.xpose.msra.mxu0 %v162
    %2396 = vmatpush.xpose.msra.mxu0 %v159
    %2397 = vmatpush.xpose.msra.mxu0 %v156
    %2398 = vmatpush.xpose.msra.mxu0 %v153
    %2399 = vmatpush.xpose.msra.mxu0 %v150
    %2400 = vmatpush.xpose.msra.mxu0 %v147
    %2401 = vmatpush.xpose.msra.mxu0 %v144
    %2402 = vmatpush.xpose.msra.mxu0 %v141
    %2403 = vmatpush.xpose.msra.mxu0 %v138
    %2404 = vmatpush.xpose.msra.mxu0 %v135
    %2405 = vmatpush.xpose.msra.mxu0 %v132
    %2406 = vmatmul.f32.gmra.mxu0 %v2367
    %v2407 = vpop.f32.mrf.mxu0
    %v2408 = vadd.f32 0.0, %v2407
    %2409 = vmatmul.f32.gmra.mxu0 %v2370
    %v2410 = vpop.f32.mrf.mxu0
    %v2411 = vadd.f32 0.0, %v2410
    %2412 = vmatmul.f32.gmra.mxu0 %v2373
    %v2413 = vpop.f32.mrf.mxu0
    %v2414 = vadd.f32 0.0, %v2413
    %2415 = vmatmul.f32.gmra.mxu0 %v2376
    %v2416 = vpop.f32.mrf.mxu0
    %v2417 = vadd.f32 0.0, %v2416
    %2418 = vmatmul.f32.gmra.mxu0 %v2379
    %v2419 = vpop.f32.mrf.mxu0
    %v2420 = vadd.f32 0.0, %v2419
    %2421 = vmatmul.f32.gmra.mxu0 %v2382
    %v2422 = vpop.f32.mrf.mxu0
    %v2423 = vadd.f32 0.0, %v2422
    %2424 = vmatmul.f32.gmra.mxu0 %v2385
    %v2425 = vpop.f32.mrf.mxu0
    %v2426 = vadd.f32 0.0, %v2425
    %2427 = vmatmul.f32.gmra.mxu0 %v2388
    %v2428 = vpop.f32.mrf.mxu0
    %v2429 = vadd.f32 0.0, %v2428
    %2430 = vdwg.mxu0
    %v2431 = vmul.f32 %v2408, 2.0
    %v2432 = vmul.f32 %v2411, 2.0
    %v2433 = vmul.f32 %v2414, 2.0
    %v2434 = vmul.f32 %v2417, 2.0
    %v2435 = vmul.f32 %v2420, 2.0
    %v2436 = vmul.f32 %v2423, 2.0
    %v2437 = vmul.f32 %v2426, 2.0
    %v2438 = vmul.f32 %v2429, 2.0
    %v2439 = vsub.f32 %v229, %v2431
    %v2440 = vsub.f32 %v229, %v2432
    %v2441 = vsub.f32 %v229, %v2433
    %v2442 = vsub.f32 %v229, %v2434
    %v2443 = vsub.f32 %v229, %v2435
    %v2444 = vsub.f32 %v229, %v2436
    %v2445 = vsub.f32 %v229, %v2437
    %v2446 = vsub.f32 %v229, %v2438
    %2447 = vmin.index.xlane.f32.xlu0 %v2439
    %v2448 = vpop.xlane.xlu0 %2447
    %2449 = vmin.index.xlane.f32.xlu0 %v2440
    %v2450 = vpop.xlane.xlu0 %2449
    %2451 = vmin.index.xlane.f32.xlu0 %v2441
    %v2452 = vpop.xlane.xlu0 %2451
    %2453 = vmin.index.xlane.f32.xlu0 %v2442
    %v2454 = vpop.xlane.xlu0 %2453
    %2455 = vmin.index.xlane.f32.xlu0 %v2443
    %v2456 = vpop.xlane.xlu0 %2455
    %2457 = vmin.index.xlane.f32.xlu0 %v2444
    %v2458 = vpop.xlane.xlu0 %2457
    %2459 = vmin.index.xlane.f32.xlu0 %v2445
    %v2460 = vpop.xlane.xlu0 %2459
    %2461 = vmin.index.xlane.f32.xlu0 %v2446
    %v2462 = vpop.xlane.xlu0 %2461
    %vm2463 = vcmp.eq.s32.totalorder %v63, %v2448
    %vm2464 = vcmp.eq.s32.totalorder %v63, %v2450
    %vm2465 = vcmp.eq.s32.totalorder %v63, %v2452
    %vm2466 = vcmp.eq.s32.totalorder %v63, %v2454
    %vm2467 = vcmp.eq.s32.totalorder %v63, %v2456
    %vm2468 = vcmp.eq.s32.totalorder %v63, %v2458
    %vm2469 = vcmp.eq.s32.totalorder %v63, %v2460
    %vm2470 = vcmp.eq.s32.totalorder %v63, %v2462
    %v2471 = vsel %vm2463, 1, 0
    %v2472 = vsel %vm2464, 1, 0
    %v2473 = vsel %vm2465, 1, 0
    %v2474 = vsel %vm2466, 1, 0
    %v2475 = vsel %vm2467, 1, 0
    %v2476 = vsel %vm2468, 1, 0
    %v2477 = vsel %vm2469, 1, 0
    %v2478 = vsel %vm2470, 1, 0
    %v2479 = vcvt.s32.f32 %v2471
    %v2480 = vcvt.s32.f32 %v2472
    %v2481 = vcvt.s32.f32 %v2473
    %v2482 = vcvt.s32.f32 %v2474
    %v2483 = vcvt.s32.f32 %v2475
    %v2484 = vcvt.s32.f32 %v2476
    %v2485 = vcvt.s32.f32 %v2477
    %v2486 = vcvt.s32.f32 %v2478
    %2487 = vmatpush.msra.mxu0 %v60
    %2488 = vmatpush.msra.mxu0 %v59
    %2489 = vmatpush.msra.mxu0 %v58
    %2490 = vmatpush.msra.mxu0 %v57
    %2491 = vmatpush.msra.mxu0 %v56
    %2492 = vmatpush.msra.mxu0 %v55
    %2493 = vmatpush.msra.mxu0 %v54
    %2494 = vmatpush.msra.mxu0 %v53
    %2495 = vmatpush.msra.mxu0 %v52
    %2496 = vmatpush.msra.mxu0 %v51
    %2497 = vmatpush.msra.mxu0 %v50
    %2498 = vmatpush.msra.mxu0 %v49
    %2499 = vmatpush.msra.mxu0 %v48
    %2500 = vmatpush.msra.mxu0 %v47
    %2501 = vmatpush.msra.mxu0 %v46
    %2502 = vmatpush.msra.mxu0 %v45
    %2503 = vmatmul.f32.gmra.mxu0 %v2479
    %v2504 = vpop.f32.mrf.mxu0
    %v2505 = vadd.f32 0.0, %v2504
    %2506 = vmatmul.f32.gmra.mxu0 %v2480
    %v2507 = vpop.f32.mrf.mxu0
    %v2508 = vadd.f32 0.0, %v2507
    %2509 = vmatmul.f32.gmra.mxu0 %v2481
    %v2510 = vpop.f32.mrf.mxu0
    %v2511 = vadd.f32 0.0, %v2510
    %2512 = vmatmul.f32.gmra.mxu0 %v2482
    %v2513 = vpop.f32.mrf.mxu0
    %v2514 = vadd.f32 0.0, %v2513
    %2515 = vmatmul.f32.gmra.mxu0 %v2483
    %v2516 = vpop.f32.mrf.mxu0
    %v2517 = vadd.f32 0.0, %v2516
    %2518 = vmatmul.f32.gmra.mxu0 %v2484
    %v2519 = vpop.f32.mrf.mxu0
    %v2520 = vadd.f32 0.0, %v2519
    %2521 = vmatmul.f32.gmra.mxu0 %v2485
    %v2522 = vpop.f32.mrf.mxu0
    %v2523 = vadd.f32 0.0, %v2522
    %2524 = vmatmul.f32.gmra.mxu0 %v2486
    %v2525 = vpop.f32.mrf.mxu0
    %v2526 = vadd.f32 0.0, %v2525
    %2527 = vdwg.mxu0
    %v2529 = vsel %vm106, %v2505, 0
    %v2532 = vsel %vm106, %v2508, 0
    %v2535 = vsel %vm106, %v2511, 0
    %v2538 = vsel %vm106, %v2514, 0
    %v2541 = vsel %vm106, %v2517, 0
    %v2544 = vsel %vm106, %v2520, 0
    %v2547 = vsel %vm106, %v2523, 0
    %v2550 = vsel %vm106, %v2526, 0
    %2552 = vmatpush.msra.mxu0 0.0
    %2553 = vmatpush.msra.mxu0 0.0
    %2554 = vmatpush.msra.mxu0 0.0
    %2555 = vmatpush.msra.mxu0 0.0
    %2556 = vmatpush.msra.mxu0 0.0
    %2557 = vmatpush.msra.mxu0 0.0
    %2558 = vmatpush.msra.mxu0 0.0
    %2559 = vmatpush.msra.mxu0 0.0
    %2560 = vmatpush.msra.mxu0 0.0
    %2561 = vmatpush.msra.mxu0 0.0
    %2562 = vmatpush.msra.mxu0 0.0
    %2563 = vmatpush.msra.mxu0 0.0
    %2564 = vmatpush.msra.mxu0 0.0
    %2565 = vmatpush.msra.mxu0 0.0
    %2566 = vmatpush.msra.mxu0 0.0
    %2567 = vmatpush.msra.mxu0 %v2324
    %2568 = vmatmul.f32.gmra.mxu0 %v2529
    %v2569 = vpop.f32.mrf.mxu0
    %v2570 = vadd.f32 0.0, %v2569
    %2571 = vmatmul.f32.gmra.mxu0 %v2532
    %v2572 = vpop.f32.mrf.mxu0
    %v2573 = vadd.f32 0.0, %v2572
    %2574 = vmatmul.f32.gmra.mxu0 %v2535
    %v2575 = vpop.f32.mrf.mxu0
    %v2576 = vadd.f32 0.0, %v2575
    %2577 = vmatmul.f32.gmra.mxu0 %v2538
    %v2578 = vpop.f32.mrf.mxu0
    %v2579 = vadd.f32 0.0, %v2578
    %2580 = vmatmul.f32.gmra.mxu0 %v2541
    %v2581 = vpop.f32.mrf.mxu0
    %v2582 = vadd.f32 0.0, %v2581
    %2583 = vmatmul.f32.gmra.mxu0 %v2544
    %v2584 = vpop.f32.mrf.mxu0
    %v2585 = vadd.f32 0.0, %v2584
    %2586 = vmatmul.f32.gmra.mxu0 %v2547
    %v2587 = vpop.f32.mrf.mxu0
    %v2588 = vadd.f32 0.0, %v2587
    %2589 = vmatmul.f32.gmra.mxu0 %v2550
    %v2590 = vpop.f32.mrf.mxu0
    %v2591 = vadd.f32 0.0, %v2590
    %2592 = vdwg.mxu0
    %v2593 = vadd.f32 %v2315, %v2570
    %v2594 = vadd.f32 %v2316, %v2573
    %v2595 = vadd.f32 %v2317, %v2576
    %v2596 = vadd.f32 %v2318, %v2579
    %v2597 = vadd.f32 %v2319, %v2582
    %v2598 = vadd.f32 %v2320, %v2585
    %v2599 = vadd.f32 %v2321, %v2588
    %v2600 = vadd.f32 %v2322, %v2591
    %s2601 = scalar_lea.vmem %s3, 72
    %v2602 = vld [vmem:[%s2601] sm:$0xff]
    %2603 = vmatpush.xpose.msra.mxu0 0.0
    %2604 = vmatpush.xpose.msra.mxu0 0.0
    %2605 = vmatpush.xpose.msra.mxu0 0.0
    %2606 = vmatpush.xpose.msra.mxu0 0.0
    %2607 = vmatpush.xpose.msra.mxu0 0.0
    %2608 = vmatpush.xpose.msra.mxu0 0.0
    %2609 = vmatpush.xpose.msra.mxu0 0.0
    %2610 = vmatpush.xpose.msra.mxu0 0.0
    %2611 = vmatpush.xpose.msra.mxu0 0.0
    %2612 = vmatpush.xpose.msra.mxu0 0.0
    %2613 = vmatpush.xpose.msra.mxu0 0.0
    %2614 = vmatpush.xpose.msra.mxu0 0.0
    %2615 = vmatpush.xpose.msra.mxu0 0.0
    %2616 = vmatpush.xpose.msra.mxu0 0.0
    %2617 = vmatpush.xpose.msra.mxu0 0.0
    %2618 = vmatpush.xpose.msra.mxu0 %v2602
    %2619 = vmatmul.f32.gmra.mxu0 %v37
    %v2620 = vpop.f32.mrf.mxu0
    %v2621 = vadd.f32 0.0, %v2620
    %2622 = vmatmul.f32.gmra.mxu0 %v38
    %v2623 = vpop.f32.mrf.mxu0
    %v2624 = vadd.f32 0.0, %v2623
    %2625 = vmatmul.f32.gmra.mxu0 %v39
    %v2626 = vpop.f32.mrf.mxu0
    %v2627 = vadd.f32 0.0, %v2626
    %2628 = vmatmul.f32.gmra.mxu0 %v40
    %v2629 = vpop.f32.mrf.mxu0
    %v2630 = vadd.f32 0.0, %v2629
    %2631 = vmatmul.f32.gmra.mxu0 %v41
    %v2632 = vpop.f32.mrf.mxu0
    %v2633 = vadd.f32 0.0, %v2632
    %2634 = vmatmul.f32.gmra.mxu0 %v42
    %v2635 = vpop.f32.mrf.mxu0
    %v2636 = vadd.f32 0.0, %v2635
    %2637 = vmatmul.f32.gmra.mxu0 %v43
    %v2638 = vpop.f32.mrf.mxu0
    %v2639 = vadd.f32 0.0, %v2638
    %2640 = vmatmul.f32.gmra.mxu0 %v44
    %v2641 = vpop.f32.mrf.mxu0
    %v2642 = vadd.f32 0.0, %v2641
    %2643 = vdwg.mxu0
    %v2645 = vsel %vm106, %v2621, 0
    %v2648 = vsel %vm106, %v2624, 0
    %v2651 = vsel %vm106, %v2627, 0
    %v2654 = vsel %vm106, %v2630, 0
    %v2657 = vsel %vm106, %v2633, 0
    %v2660 = vsel %vm106, %v2636, 0
    %v2663 = vsel %vm106, %v2639, 0
    %v2666 = vsel %vm106, %v2642, 0
    %2668 = vmatpush.xpose.msra.mxu0 %v177
    %2669 = vmatpush.xpose.msra.mxu0 %v174
    %2670 = vmatpush.xpose.msra.mxu0 %v171
    %2671 = vmatpush.xpose.msra.mxu0 %v168
    %2672 = vmatpush.xpose.msra.mxu0 %v165
    %2673 = vmatpush.xpose.msra.mxu0 %v162
    %2674 = vmatpush.xpose.msra.mxu0 %v159
    %2675 = vmatpush.xpose.msra.mxu0 %v156
    %2676 = vmatpush.xpose.msra.mxu0 %v153
    %2677 = vmatpush.xpose.msra.mxu0 %v150
    %2678 = vmatpush.xpose.msra.mxu0 %v147
    %2679 = vmatpush.xpose.msra.mxu0 %v144
    %2680 = vmatpush.xpose.msra.mxu0 %v141
    %2681 = vmatpush.xpose.msra.mxu0 %v138
    %2682 = vmatpush.xpose.msra.mxu0 %v135
    %2683 = vmatpush.xpose.msra.mxu0 %v132
    %2684 = vmatmul.f32.gmra.mxu0 %v2645
    %v2685 = vpop.f32.mrf.mxu0
    %v2686 = vadd.f32 0.0, %v2685
    %2687 = vmatmul.f32.gmra.mxu0 %v2648
    %v2688 = vpop.f32.mrf.mxu0
    %v2689 = vadd.f32 0.0, %v2688
    %2690 = vmatmul.f32.gmra.mxu0 %v2651
    %v2691 = vpop.f32.mrf.mxu0
    %v2692 = vadd.f32 0.0, %v2691
    %2693 = vmatmul.f32.gmra.mxu0 %v2654
    %v2694 = vpop.f32.mrf.mxu0
    %v2695 = vadd.f32 0.0, %v2694
    %2696 = vmatmul.f32.gmra.mxu0 %v2657
    %v2697 = vpop.f32.mrf.mxu0
    %v2698 = vadd.f32 0.0, %v2697
    %2699 = vmatmul.f32.gmra.mxu0 %v2660
    %v2700 = vpop.f32.mrf.mxu0
    %v2701 = vadd.f32 0.0, %v2700
    %2702 = vmatmul.f32.gmra.mxu0 %v2663
    %v2703 = vpop.f32.mrf.mxu0
    %v2704 = vadd.f32 0.0, %v2703
    %2705 = vmatmul.f32.gmra.mxu0 %v2666
    %v2706 = vpop.f32.mrf.mxu0
    %v2707 = vadd.f32 0.0, %v2706
    %2708 = vdwg.mxu0
    %v2709 = vmul.f32 %v2686, 2.0
    %v2710 = vmul.f32 %v2689, 2.0
    %v2711 = vmul.f32 %v2692, 2.0
    %v2712 = vmul.f32 %v2695, 2.0
    %v2713 = vmul.f32 %v2698, 2.0
    %v2714 = vmul.f32 %v2701, 2.0
    %v2715 = vmul.f32 %v2704, 2.0
    %v2716 = vmul.f32 %v2707, 2.0
    %v2717 = vsub.f32 %v229, %v2709
    %v2718 = vsub.f32 %v229, %v2710
    %v2719 = vsub.f32 %v229, %v2711
    %v2720 = vsub.f32 %v229, %v2712
    %v2721 = vsub.f32 %v229, %v2713
    %v2722 = vsub.f32 %v229, %v2714
    %v2723 = vsub.f32 %v229, %v2715
    %v2724 = vsub.f32 %v229, %v2716
    %2725 = vmin.index.xlane.f32.xlu0 %v2717
    %v2726 = vpop.xlane.xlu0 %2725
    %2727 = vmin.index.xlane.f32.xlu0 %v2718
    %v2728 = vpop.xlane.xlu0 %2727
    %2729 = vmin.index.xlane.f32.xlu0 %v2719
    %v2730 = vpop.xlane.xlu0 %2729
    %2731 = vmin.index.xlane.f32.xlu0 %v2720
    %v2732 = vpop.xlane.xlu0 %2731
    %2733 = vmin.index.xlane.f32.xlu0 %v2721
    %v2734 = vpop.xlane.xlu0 %2733
    %2735 = vmin.index.xlane.f32.xlu0 %v2722
    %v2736 = vpop.xlane.xlu0 %2735
    %2737 = vmin.index.xlane.f32.xlu0 %v2723
    %v2738 = vpop.xlane.xlu0 %2737
    %2739 = vmin.index.xlane.f32.xlu0 %v2724
    %v2740 = vpop.xlane.xlu0 %2739
    %vm2741 = vcmp.eq.s32.totalorder %v63, %v2726
    %vm2742 = vcmp.eq.s32.totalorder %v63, %v2728
    %vm2743 = vcmp.eq.s32.totalorder %v63, %v2730
    %vm2744 = vcmp.eq.s32.totalorder %v63, %v2732
    %vm2745 = vcmp.eq.s32.totalorder %v63, %v2734
    %vm2746 = vcmp.eq.s32.totalorder %v63, %v2736
    %vm2747 = vcmp.eq.s32.totalorder %v63, %v2738
    %vm2748 = vcmp.eq.s32.totalorder %v63, %v2740
    %v2749 = vsel %vm2741, 1, 0
    %v2750 = vsel %vm2742, 1, 0
    %v2751 = vsel %vm2743, 1, 0
    %v2752 = vsel %vm2744, 1, 0
    %v2753 = vsel %vm2745, 1, 0
    %v2754 = vsel %vm2746, 1, 0
    %v2755 = vsel %vm2747, 1, 0
    %v2756 = vsel %vm2748, 1, 0
    %v2757 = vcvt.s32.f32 %v2749
    %v2758 = vcvt.s32.f32 %v2750
    %v2759 = vcvt.s32.f32 %v2751
    %v2760 = vcvt.s32.f32 %v2752
    %v2761 = vcvt.s32.f32 %v2753
    %v2762 = vcvt.s32.f32 %v2754
    %v2763 = vcvt.s32.f32 %v2755
    %v2764 = vcvt.s32.f32 %v2756
    %2765 = vmatpush.msra.mxu0 %v60
    %2766 = vmatpush.msra.mxu0 %v59
    %2767 = vmatpush.msra.mxu0 %v58
    %2768 = vmatpush.msra.mxu0 %v57
    %2769 = vmatpush.msra.mxu0 %v56
    %2770 = vmatpush.msra.mxu0 %v55
    %2771 = vmatpush.msra.mxu0 %v54
    %2772 = vmatpush.msra.mxu0 %v53
    %2773 = vmatpush.msra.mxu0 %v52
    %2774 = vmatpush.msra.mxu0 %v51
    %2775 = vmatpush.msra.mxu0 %v50
    %2776 = vmatpush.msra.mxu0 %v49
    %2777 = vmatpush.msra.mxu0 %v48
    %2778 = vmatpush.msra.mxu0 %v47
    %2779 = vmatpush.msra.mxu0 %v46
    %2780 = vmatpush.msra.mxu0 %v45
    %2781 = vmatmul.f32.gmra.mxu0 %v2757
    %v2782 = vpop.f32.mrf.mxu0
    %v2783 = vadd.f32 0.0, %v2782
    %2784 = vmatmul.f32.gmra.mxu0 %v2758
    %v2785 = vpop.f32.mrf.mxu0
    %v2786 = vadd.f32 0.0, %v2785
    %2787 = vmatmul.f32.gmra.mxu0 %v2759
    %v2788 = vpop.f32.mrf.mxu0
    %v2789 = vadd.f32 0.0, %v2788
    %2790 = vmatmul.f32.gmra.mxu0 %v2760
    %v2791 = vpop.f32.mrf.mxu0
    %v2792 = vadd.f32 0.0, %v2791
    %2793 = vmatmul.f32.gmra.mxu0 %v2761
    %v2794 = vpop.f32.mrf.mxu0
    %v2795 = vadd.f32 0.0, %v2794
    %2796 = vmatmul.f32.gmra.mxu0 %v2762
    %v2797 = vpop.f32.mrf.mxu0
    %v2798 = vadd.f32 0.0, %v2797
    %2799 = vmatmul.f32.gmra.mxu0 %v2763
    %v2800 = vpop.f32.mrf.mxu0
    %v2801 = vadd.f32 0.0, %v2800
    %2802 = vmatmul.f32.gmra.mxu0 %v2764
    %v2803 = vpop.f32.mrf.mxu0
    %v2804 = vadd.f32 0.0, %v2803
    %2805 = vdwg.mxu0
    %v2807 = vsel %vm106, %v2783, 0
    %v2810 = vsel %vm106, %v2786, 0
    %v2813 = vsel %vm106, %v2789, 0
    %v2816 = vsel %vm106, %v2792, 0
    %v2819 = vsel %vm106, %v2795, 0
    %v2822 = vsel %vm106, %v2798, 0
    %v2825 = vsel %vm106, %v2801, 0
    %v2828 = vsel %vm106, %v2804, 0
    %2830 = vmatpush.msra.mxu0 0.0
    %2831 = vmatpush.msra.mxu0 0.0
    %2832 = vmatpush.msra.mxu0 0.0
    %2833 = vmatpush.msra.mxu0 0.0
    %2834 = vmatpush.msra.mxu0 0.0
    %2835 = vmatpush.msra.mxu0 0.0
    %2836 = vmatpush.msra.mxu0 0.0
    %2837 = vmatpush.msra.mxu0 0.0
    %2838 = vmatpush.msra.mxu0 0.0
    %2839 = vmatpush.msra.mxu0 0.0
    %2840 = vmatpush.msra.mxu0 0.0
    %2841 = vmatpush.msra.mxu0 0.0
    %2842 = vmatpush.msra.mxu0 0.0
    %2843 = vmatpush.msra.mxu0 0.0
    %2844 = vmatpush.msra.mxu0 0.0
    %2845 = vmatpush.msra.mxu0 %v2602
    %2846 = vmatmul.f32.gmra.mxu0 %v2807
    %v2847 = vpop.f32.mrf.mxu0
    %v2848 = vadd.f32 0.0, %v2847
    %2849 = vmatmul.f32.gmra.mxu0 %v2810
    %v2850 = vpop.f32.mrf.mxu0
    %v2851 = vadd.f32 0.0, %v2850
    %2852 = vmatmul.f32.gmra.mxu0 %v2813
    %v2853 = vpop.f32.mrf.mxu0
    %v2854 = vadd.f32 0.0, %v2853
    %2855 = vmatmul.f32.gmra.mxu0 %v2816
    %v2856 = vpop.f32.mrf.mxu0
    %v2857 = vadd.f32 0.0, %v2856
    %2858 = vmatmul.f32.gmra.mxu0 %v2819
    %v2859 = vpop.f32.mrf.mxu0
    %v2860 = vadd.f32 0.0, %v2859
    %2861 = vmatmul.f32.gmra.mxu0 %v2822
    %v2862 = vpop.f32.mrf.mxu0
    %v2863 = vadd.f32 0.0, %v2862
    %2864 = vmatmul.f32.gmra.mxu0 %v2825
    %v2865 = vpop.f32.mrf.mxu0
    %v2866 = vadd.f32 0.0, %v2865
    %2867 = vmatmul.f32.gmra.mxu0 %v2828
    %v2868 = vpop.f32.mrf.mxu0
    %v2869 = vadd.f32 0.0, %v2868
    %2870 = vdwg.mxu0
    %v2871 = vadd.f32 %v2593, %v2848
    %v2872 = vadd.f32 %v2594, %v2851
    %v2873 = vadd.f32 %v2595, %v2854
    %v2874 = vadd.f32 %v2596, %v2857
    %v2875 = vadd.f32 %v2597, %v2860
    %v2876 = vadd.f32 %v2598, %v2863
    %v2877 = vadd.f32 %v2599, %v2866
    %v2878 = vadd.f32 %v2600, %v2869
    %s2879 = scalar_lea.vmem %s3, 80
    %v2880 = vld [vmem:[%s2879] sm:$0xff]
    %2881 = vmatpush.xpose.msra.mxu0 0.0
    %2882 = vmatpush.xpose.msra.mxu0 0.0
    %2883 = vmatpush.xpose.msra.mxu0 0.0
    %2884 = vmatpush.xpose.msra.mxu0 0.0
    %2885 = vmatpush.xpose.msra.mxu0 0.0
    %2886 = vmatpush.xpose.msra.mxu0 0.0
    %2887 = vmatpush.xpose.msra.mxu0 0.0
    %2888 = vmatpush.xpose.msra.mxu0 0.0
    %2889 = vmatpush.xpose.msra.mxu0 0.0
    %2890 = vmatpush.xpose.msra.mxu0 0.0
    %2891 = vmatpush.xpose.msra.mxu0 0.0
    %2892 = vmatpush.xpose.msra.mxu0 0.0
    %2893 = vmatpush.xpose.msra.mxu0 0.0
    %2894 = vmatpush.xpose.msra.mxu0 0.0
    %2895 = vmatpush.xpose.msra.mxu0 0.0
    %2896 = vmatpush.xpose.msra.mxu0 %v2880
    %2897 = vmatmul.f32.gmra.mxu0 %v37
    %v2898 = vpop.f32.mrf.mxu0
    %v2899 = vadd.f32 0.0, %v2898
    %2900 = vmatmul.f32.gmra.mxu0 %v38
    %v2901 = vpop.f32.mrf.mxu0
    %v2902 = vadd.f32 0.0, %v2901
    %2903 = vmatmul.f32.gmra.mxu0 %v39
    %v2904 = vpop.f32.mrf.mxu0
    %v2905 = vadd.f32 0.0, %v2904
    %2906 = vmatmul.f32.gmra.mxu0 %v40
    %v2907 = vpop.f32.mrf.mxu0
    %v2908 = vadd.f32 0.0, %v2907
    %2909 = vmatmul.f32.gmra.mxu0 %v41
    %v2910 = vpop.f32.mrf.mxu0
    %v2911 = vadd.f32 0.0, %v2910
    %2912 = vmatmul.f32.gmra.mxu0 %v42
    %v2913 = vpop.f32.mrf.mxu0
    %v2914 = vadd.f32 0.0, %v2913
    %2915 = vmatmul.f32.gmra.mxu0 %v43
    %v2916 = vpop.f32.mrf.mxu0
    %v2917 = vadd.f32 0.0, %v2916
    %2918 = vmatmul.f32.gmra.mxu0 %v44
    %v2919 = vpop.f32.mrf.mxu0
    %v2920 = vadd.f32 0.0, %v2919
    %2921 = vdwg.mxu0
    %v2923 = vsel %vm106, %v2899, 0
    %v2926 = vsel %vm106, %v2902, 0
    %v2929 = vsel %vm106, %v2905, 0
    %v2932 = vsel %vm106, %v2908, 0
    %v2935 = vsel %vm106, %v2911, 0
    %v2938 = vsel %vm106, %v2914, 0
    %v2941 = vsel %vm106, %v2917, 0
    %v2944 = vsel %vm106, %v2920, 0
    %2946 = vmatpush.xpose.msra.mxu0 %v177
    %2947 = vmatpush.xpose.msra.mxu0 %v174
    %2948 = vmatpush.xpose.msra.mxu0 %v171
    %2949 = vmatpush.xpose.msra.mxu0 %v168
    %2950 = vmatpush.xpose.msra.mxu0 %v165
    %2951 = vmatpush.xpose.msra.mxu0 %v162
    %2952 = vmatpush.xpose.msra.mxu0 %v159
    %2953 = vmatpush.xpose.msra.mxu0 %v156
    %2954 = vmatpush.xpose.msra.mxu0 %v153
    %2955 = vmatpush.xpose.msra.mxu0 %v150
    %2956 = vmatpush.xpose.msra.mxu0 %v147
    %2957 = vmatpush.xpose.msra.mxu0 %v144
    %2958 = vmatpush.xpose.msra.mxu0 %v141
    %2959 = vmatpush.xpose.msra.mxu0 %v138
    %2960 = vmatpush.xpose.msra.mxu0 %v135
    %2961 = vmatpush.xpose.msra.mxu0 %v132
    %2962 = vmatmul.f32.gmra.mxu0 %v2923
    %v2963 = vpop.f32.mrf.mxu0
    %v2964 = vadd.f32 0.0, %v2963
    %2965 = vmatmul.f32.gmra.mxu0 %v2926
    %v2966 = vpop.f32.mrf.mxu0
    %v2967 = vadd.f32 0.0, %v2966
    %2968 = vmatmul.f32.gmra.mxu0 %v2929
    %v2969 = vpop.f32.mrf.mxu0
    %v2970 = vadd.f32 0.0, %v2969
    %2971 = vmatmul.f32.gmra.mxu0 %v2932
    %v2972 = vpop.f32.mrf.mxu0
    %v2973 = vadd.f32 0.0, %v2972
    %2974 = vmatmul.f32.gmra.mxu0 %v2935
    %v2975 = vpop.f32.mrf.mxu0
    %v2976 = vadd.f32 0.0, %v2975
    %2977 = vmatmul.f32.gmra.mxu0 %v2938
    %v2978 = vpop.f32.mrf.mxu0
    %v2979 = vadd.f32 0.0, %v2978
    %2980 = vmatmul.f32.gmra.mxu0 %v2941
    %v2981 = vpop.f32.mrf.mxu0
    %v2982 = vadd.f32 0.0, %v2981
    %2983 = vmatmul.f32.gmra.mxu0 %v2944
    %v2984 = vpop.f32.mrf.mxu0
    %v2985 = vadd.f32 0.0, %v2984
    %2986 = vdwg.mxu0
    %v2987 = vmul.f32 %v2964, 2.0
    %v2988 = vmul.f32 %v2967, 2.0
    %v2989 = vmul.f32 %v2970, 2.0
    %v2990 = vmul.f32 %v2973, 2.0
    %v2991 = vmul.f32 %v2976, 2.0
    %v2992 = vmul.f32 %v2979, 2.0
    %v2993 = vmul.f32 %v2982, 2.0
    %v2994 = vmul.f32 %v2985, 2.0
    %v2995 = vsub.f32 %v229, %v2987
    %v2996 = vsub.f32 %v229, %v2988
    %v2997 = vsub.f32 %v229, %v2989
    %v2998 = vsub.f32 %v229, %v2990
    %v2999 = vsub.f32 %v229, %v2991
    %v3000 = vsub.f32 %v229, %v2992
    %v3001 = vsub.f32 %v229, %v2993
    %v3002 = vsub.f32 %v229, %v2994
    %3003 = vmin.index.xlane.f32.xlu0 %v2995
    %v3004 = vpop.xlane.xlu0 %3003
    %3005 = vmin.index.xlane.f32.xlu0 %v2996
    %v3006 = vpop.xlane.xlu0 %3005
    %3007 = vmin.index.xlane.f32.xlu0 %v2997
    %v3008 = vpop.xlane.xlu0 %3007
    %3009 = vmin.index.xlane.f32.xlu0 %v2998
    %v3010 = vpop.xlane.xlu0 %3009
    %3011 = vmin.index.xlane.f32.xlu0 %v2999
    %v3012 = vpop.xlane.xlu0 %3011
    %3013 = vmin.index.xlane.f32.xlu0 %v3000
    %v3014 = vpop.xlane.xlu0 %3013
    %3015 = vmin.index.xlane.f32.xlu0 %v3001
    %v3016 = vpop.xlane.xlu0 %3015
    %3017 = vmin.index.xlane.f32.xlu0 %v3002
    %v3018 = vpop.xlane.xlu0 %3017
    %vm3019 = vcmp.eq.s32.totalorder %v63, %v3004
    %vm3020 = vcmp.eq.s32.totalorder %v63, %v3006
    %vm3021 = vcmp.eq.s32.totalorder %v63, %v3008
    %vm3022 = vcmp.eq.s32.totalorder %v63, %v3010
    %vm3023 = vcmp.eq.s32.totalorder %v63, %v3012
    %vm3024 = vcmp.eq.s32.totalorder %v63, %v3014
    %vm3025 = vcmp.eq.s32.totalorder %v63, %v3016
    %vm3026 = vcmp.eq.s32.totalorder %v63, %v3018
    %v3027 = vsel %vm3019, 1, 0
    %v3028 = vsel %vm3020, 1, 0
    %v3029 = vsel %vm3021, 1, 0
    %v3030 = vsel %vm3022, 1, 0
    %v3031 = vsel %vm3023, 1, 0
    %v3032 = vsel %vm3024, 1, 0
    %v3033 = vsel %vm3025, 1, 0
    %v3034 = vsel %vm3026, 1, 0
    %v3035 = vcvt.s32.f32 %v3027
    %v3036 = vcvt.s32.f32 %v3028
    %v3037 = vcvt.s32.f32 %v3029
    %v3038 = vcvt.s32.f32 %v3030
    %v3039 = vcvt.s32.f32 %v3031
    %v3040 = vcvt.s32.f32 %v3032
    %v3041 = vcvt.s32.f32 %v3033
    %v3042 = vcvt.s32.f32 %v3034
    %3043 = vmatpush.msra.mxu0 %v60
    %3044 = vmatpush.msra.mxu0 %v59
    %3045 = vmatpush.msra.mxu0 %v58
    %3046 = vmatpush.msra.mxu0 %v57
    %3047 = vmatpush.msra.mxu0 %v56
    %3048 = vmatpush.msra.mxu0 %v55
    %3049 = vmatpush.msra.mxu0 %v54
    %3050 = vmatpush.msra.mxu0 %v53
    %3051 = vmatpush.msra.mxu0 %v52
    %3052 = vmatpush.msra.mxu0 %v51
    %3053 = vmatpush.msra.mxu0 %v50
    %3054 = vmatpush.msra.mxu0 %v49
    %3055 = vmatpush.msra.mxu0 %v48
    %3056 = vmatpush.msra.mxu0 %v47
    %3057 = vmatpush.msra.mxu0 %v46
    %3058 = vmatpush.msra.mxu0 %v45
    %3059 = vmatmul.f32.gmra.mxu0 %v3035
    %v3060 = vpop.f32.mrf.mxu0
    %v3061 = vadd.f32 0.0, %v3060
    %3062 = vmatmul.f32.gmra.mxu0 %v3036
    %v3063 = vpop.f32.mrf.mxu0
    %v3064 = vadd.f32 0.0, %v3063
    %3065 = vmatmul.f32.gmra.mxu0 %v3037
    %v3066 = vpop.f32.mrf.mxu0
    %v3067 = vadd.f32 0.0, %v3066
    %3068 = vmatmul.f32.gmra.mxu0 %v3038
    %v3069 = vpop.f32.mrf.mxu0
    %v3070 = vadd.f32 0.0, %v3069
    %3071 = vmatmul.f32.gmra.mxu0 %v3039
    %v3072 = vpop.f32.mrf.mxu0
    %v3073 = vadd.f32 0.0, %v3072
    %3074 = vmatmul.f32.gmra.mxu0 %v3040
    %v3075 = vpop.f32.mrf.mxu0
    %v3076 = vadd.f32 0.0, %v3075
    %3077 = vmatmul.f32.gmra.mxu0 %v3041
    %v3078 = vpop.f32.mrf.mxu0
    %v3079 = vadd.f32 0.0, %v3078
    %3080 = vmatmul.f32.gmra.mxu0 %v3042
    %v3081 = vpop.f32.mrf.mxu0
    %v3082 = vadd.f32 0.0, %v3081
    %3083 = vdwg.mxu0
    %v3085 = vsel %vm106, %v3061, 0
    %v3088 = vsel %vm106, %v3064, 0
    %v3091 = vsel %vm106, %v3067, 0
    %v3094 = vsel %vm106, %v3070, 0
    %v3097 = vsel %vm106, %v3073, 0
    %v3100 = vsel %vm106, %v3076, 0
    %v3103 = vsel %vm106, %v3079, 0
    %v3106 = vsel %vm106, %v3082, 0
    %3108 = vmatpush.msra.mxu0 0.0
    %3109 = vmatpush.msra.mxu0 0.0
    %3110 = vmatpush.msra.mxu0 0.0
    %3111 = vmatpush.msra.mxu0 0.0
    %3112 = vmatpush.msra.mxu0 0.0
    %3113 = vmatpush.msra.mxu0 0.0
    %3114 = vmatpush.msra.mxu0 0.0
    %3115 = vmatpush.msra.mxu0 0.0
    %3116 = vmatpush.msra.mxu0 0.0
    %3117 = vmatpush.msra.mxu0 0.0
    %3118 = vmatpush.msra.mxu0 0.0
    %3119 = vmatpush.msra.mxu0 0.0
    %3120 = vmatpush.msra.mxu0 0.0
    %3121 = vmatpush.msra.mxu0 0.0
    %3122 = vmatpush.msra.mxu0 0.0
    %3123 = vmatpush.msra.mxu0 %v2880
    %3124 = vmatmul.f32.gmra.mxu0 %v3085
    %v3125 = vpop.f32.mrf.mxu0
    %v3126 = vadd.f32 0.0, %v3125
    %3127 = vmatmul.f32.gmra.mxu0 %v3088
    %v3128 = vpop.f32.mrf.mxu0
    %v3129 = vadd.f32 0.0, %v3128
    %3130 = vmatmul.f32.gmra.mxu0 %v3091
    %v3131 = vpop.f32.mrf.mxu0
    %v3132 = vadd.f32 0.0, %v3131
    %3133 = vmatmul.f32.gmra.mxu0 %v3094
    %v3134 = vpop.f32.mrf.mxu0
    %v3135 = vadd.f32 0.0, %v3134
    %3136 = vmatmul.f32.gmra.mxu0 %v3097
    %v3137 = vpop.f32.mrf.mxu0
    %v3138 = vadd.f32 0.0, %v3137
    %3139 = vmatmul.f32.gmra.mxu0 %v3100
    %v3140 = vpop.f32.mrf.mxu0
    %v3141 = vadd.f32 0.0, %v3140
    %3142 = vmatmul.f32.gmra.mxu0 %v3103
    %v3143 = vpop.f32.mrf.mxu0
    %v3144 = vadd.f32 0.0, %v3143
    %3145 = vmatmul.f32.gmra.mxu0 %v3106
    %v3146 = vpop.f32.mrf.mxu0
    %v3147 = vadd.f32 0.0, %v3146
    %3148 = vdwg.mxu0
    %v3149 = vadd.f32 %v2871, %v3126
    %v3150 = vadd.f32 %v2872, %v3129
    %v3151 = vadd.f32 %v2873, %v3132
    %v3152 = vadd.f32 %v2874, %v3135
    %v3153 = vadd.f32 %v2875, %v3138
    %v3154 = vadd.f32 %v2876, %v3141
    %v3155 = vadd.f32 %v2877, %v3144
    %v3156 = vadd.f32 %v2878, %v3147
    %s3157 = scalar_lea.vmem %s3, 88
    %v3158 = vld [vmem:[%s3157] sm:$0xff]
    %3159 = vmatpush.xpose.msra.mxu0 0.0
    %3160 = vmatpush.xpose.msra.mxu0 0.0
    %3161 = vmatpush.xpose.msra.mxu0 0.0
    %3162 = vmatpush.xpose.msra.mxu0 0.0
    %3163 = vmatpush.xpose.msra.mxu0 0.0
    %3164 = vmatpush.xpose.msra.mxu0 0.0
    %3165 = vmatpush.xpose.msra.mxu0 0.0
    %3166 = vmatpush.xpose.msra.mxu0 0.0
    %3167 = vmatpush.xpose.msra.mxu0 0.0
    %3168 = vmatpush.xpose.msra.mxu0 0.0
    %3169 = vmatpush.xpose.msra.mxu0 0.0
    %3170 = vmatpush.xpose.msra.mxu0 0.0
    %3171 = vmatpush.xpose.msra.mxu0 0.0
    %3172 = vmatpush.xpose.msra.mxu0 0.0
    %3173 = vmatpush.xpose.msra.mxu0 0.0
    %3174 = vmatpush.xpose.msra.mxu0 %v3158
    %3175 = vmatmul.f32.gmra.mxu0 %v37
    %v3176 = vpop.f32.mrf.mxu0
    %v3177 = vadd.f32 0.0, %v3176
    %3178 = vmatmul.f32.gmra.mxu0 %v38
    %v3179 = vpop.f32.mrf.mxu0
    %v3180 = vadd.f32 0.0, %v3179
    %3181 = vmatmul.f32.gmra.mxu0 %v39
    %v3182 = vpop.f32.mrf.mxu0
    %v3183 = vadd.f32 0.0, %v3182
    %3184 = vmatmul.f32.gmra.mxu0 %v40
    %v3185 = vpop.f32.mrf.mxu0
    %v3186 = vadd.f32 0.0, %v3185
    %3187 = vmatmul.f32.gmra.mxu0 %v41
    %v3188 = vpop.f32.mrf.mxu0
    %v3189 = vadd.f32 0.0, %v3188
    %3190 = vmatmul.f32.gmra.mxu0 %v42
    %v3191 = vpop.f32.mrf.mxu0
    %v3192 = vadd.f32 0.0, %v3191
    %3193 = vmatmul.f32.gmra.mxu0 %v43
    %v3194 = vpop.f32.mrf.mxu0
    %v3195 = vadd.f32 0.0, %v3194
    %3196 = vmatmul.f32.gmra.mxu0 %v44
    %v3197 = vpop.f32.mrf.mxu0
    %v3198 = vadd.f32 0.0, %v3197
    %3199 = vdwg.mxu0
    %v3201 = vsel %vm106, %v3177, 0
    %v3204 = vsel %vm106, %v3180, 0
    %v3207 = vsel %vm106, %v3183, 0
    %v3210 = vsel %vm106, %v3186, 0
    %v3213 = vsel %vm106, %v3189, 0
    %v3216 = vsel %vm106, %v3192, 0
    %v3219 = vsel %vm106, %v3195, 0
    %v3222 = vsel %vm106, %v3198, 0
    %3224 = vmatpush.xpose.msra.mxu0 %v177
    %3225 = vmatpush.xpose.msra.mxu0 %v174
    %3226 = vmatpush.xpose.msra.mxu0 %v171
    %3227 = vmatpush.xpose.msra.mxu0 %v168
    %3228 = vmatpush.xpose.msra.mxu0 %v165
    %3229 = vmatpush.xpose.msra.mxu0 %v162
    %3230 = vmatpush.xpose.msra.mxu0 %v159
    %3231 = vmatpush.xpose.msra.mxu0 %v156
    %3232 = vmatpush.xpose.msra.mxu0 %v153
    %3233 = vmatpush.xpose.msra.mxu0 %v150
    %3234 = vmatpush.xpose.msra.mxu0 %v147
    %3235 = vmatpush.xpose.msra.mxu0 %v144
    %3236 = vmatpush.xpose.msra.mxu0 %v141
    %3237 = vmatpush.xpose.msra.mxu0 %v138
    %3238 = vmatpush.xpose.msra.mxu0 %v135
    %3239 = vmatpush.xpose.msra.mxu0 %v132
    %3240 = vmatmul.f32.gmra.mxu0 %v3201
    %v3241 = vpop.f32.mrf.mxu0
    %v3242 = vadd.f32 0.0, %v3241
    %3243 = vmatmul.f32.gmra.mxu0 %v3204
    %v3244 = vpop.f32.mrf.mxu0
    %v3245 = vadd.f32 0.0, %v3244
    %3246 = vmatmul.f32.gmra.mxu0 %v3207
    %v3247 = vpop.f32.mrf.mxu0
    %v3248 = vadd.f32 0.0, %v3247
    %3249 = vmatmul.f32.gmra.mxu0 %v3210
    %v3250 = vpop.f32.mrf.mxu0
    %v3251 = vadd.f32 0.0, %v3250
    %3252 = vmatmul.f32.gmra.mxu0 %v3213
    %v3253 = vpop.f32.mrf.mxu0
    %v3254 = vadd.f32 0.0, %v3253
    %3255 = vmatmul.f32.gmra.mxu0 %v3216
    %v3256 = vpop.f32.mrf.mxu0
    %v3257 = vadd.f32 0.0, %v3256
    %3258 = vmatmul.f32.gmra.mxu0 %v3219
    %v3259 = vpop.f32.mrf.mxu0
    %v3260 = vadd.f32 0.0, %v3259
    %3261 = vmatmul.f32.gmra.mxu0 %v3222
    %v3262 = vpop.f32.mrf.mxu0
    %v3263 = vadd.f32 0.0, %v3262
    %3264 = vdwg.mxu0
    %v3265 = vmul.f32 %v3242, 2.0
    %v3266 = vmul.f32 %v3245, 2.0
    %v3267 = vmul.f32 %v3248, 2.0
    %v3268 = vmul.f32 %v3251, 2.0
    %v3269 = vmul.f32 %v3254, 2.0
    %v3270 = vmul.f32 %v3257, 2.0
    %v3271 = vmul.f32 %v3260, 2.0
    %v3272 = vmul.f32 %v3263, 2.0
    %v3273 = vsub.f32 %v229, %v3265
    %v3274 = vsub.f32 %v229, %v3266
    %v3275 = vsub.f32 %v229, %v3267
    %v3276 = vsub.f32 %v229, %v3268
    %v3277 = vsub.f32 %v229, %v3269
    %v3278 = vsub.f32 %v229, %v3270
    %v3279 = vsub.f32 %v229, %v3271
    %v3280 = vsub.f32 %v229, %v3272
    %3281 = vmin.index.xlane.f32.xlu0 %v3273
    %v3282 = vpop.xlane.xlu0 %3281
    %3283 = vmin.index.xlane.f32.xlu0 %v3274
    %v3284 = vpop.xlane.xlu0 %3283
    %3285 = vmin.index.xlane.f32.xlu0 %v3275
    %v3286 = vpop.xlane.xlu0 %3285
    %3287 = vmin.index.xlane.f32.xlu0 %v3276
    %v3288 = vpop.xlane.xlu0 %3287
    %3289 = vmin.index.xlane.f32.xlu0 %v3277
    %v3290 = vpop.xlane.xlu0 %3289
    %3291 = vmin.index.xlane.f32.xlu0 %v3278
    %v3292 = vpop.xlane.xlu0 %3291
    %3293 = vmin.index.xlane.f32.xlu0 %v3279
    %v3294 = vpop.xlane.xlu0 %3293
    %3295 = vmin.index.xlane.f32.xlu0 %v3280
    %v3296 = vpop.xlane.xlu0 %3295
    %vm3297 = vcmp.eq.s32.totalorder %v63, %v3282
    %vm3298 = vcmp.eq.s32.totalorder %v63, %v3284
    %vm3299 = vcmp.eq.s32.totalorder %v63, %v3286
    %vm3300 = vcmp.eq.s32.totalorder %v63, %v3288
    %vm3301 = vcmp.eq.s32.totalorder %v63, %v3290
    %vm3302 = vcmp.eq.s32.totalorder %v63, %v3292
    %vm3303 = vcmp.eq.s32.totalorder %v63, %v3294
    %vm3304 = vcmp.eq.s32.totalorder %v63, %v3296
    %v3305 = vsel %vm3297, 1, 0
    %v3306 = vsel %vm3298, 1, 0
    %v3307 = vsel %vm3299, 1, 0
    %v3308 = vsel %vm3300, 1, 0
    %v3309 = vsel %vm3301, 1, 0
    %v3310 = vsel %vm3302, 1, 0
    %v3311 = vsel %vm3303, 1, 0
    %v3312 = vsel %vm3304, 1, 0
    %v3313 = vcvt.s32.f32 %v3305
    %v3314 = vcvt.s32.f32 %v3306
    %v3315 = vcvt.s32.f32 %v3307
    %v3316 = vcvt.s32.f32 %v3308
    %v3317 = vcvt.s32.f32 %v3309
    %v3318 = vcvt.s32.f32 %v3310
    %v3319 = vcvt.s32.f32 %v3311
    %v3320 = vcvt.s32.f32 %v3312
    %3321 = vmatpush.msra.mxu0 %v60
    %3322 = vmatpush.msra.mxu0 %v59
    %3323 = vmatpush.msra.mxu0 %v58
    %3324 = vmatpush.msra.mxu0 %v57
    %3325 = vmatpush.msra.mxu0 %v56
    %3326 = vmatpush.msra.mxu0 %v55
    %3327 = vmatpush.msra.mxu0 %v54
    %3328 = vmatpush.msra.mxu0 %v53
    %3329 = vmatpush.msra.mxu0 %v52
    %3330 = vmatpush.msra.mxu0 %v51
    %3331 = vmatpush.msra.mxu0 %v50
    %3332 = vmatpush.msra.mxu0 %v49
    %3333 = vmatpush.msra.mxu0 %v48
    %3334 = vmatpush.msra.mxu0 %v47
    %3335 = vmatpush.msra.mxu0 %v46
    %3336 = vmatpush.msra.mxu0 %v45
    %3337 = vmatmul.f32.gmra.mxu0 %v3313
    %v3338 = vpop.f32.mrf.mxu0
    %v3339 = vadd.f32 0.0, %v3338
    %3340 = vmatmul.f32.gmra.mxu0 %v3314
    %v3341 = vpop.f32.mrf.mxu0
    %v3342 = vadd.f32 0.0, %v3341
    %3343 = vmatmul.f32.gmra.mxu0 %v3315
    %v3344 = vpop.f32.mrf.mxu0
    %v3345 = vadd.f32 0.0, %v3344
    %3346 = vmatmul.f32.gmra.mxu0 %v3316
    %v3347 = vpop.f32.mrf.mxu0
    %v3348 = vadd.f32 0.0, %v3347
    %3349 = vmatmul.f32.gmra.mxu0 %v3317
    %v3350 = vpop.f32.mrf.mxu0
    %v3351 = vadd.f32 0.0, %v3350
    %3352 = vmatmul.f32.gmra.mxu0 %v3318
    %v3353 = vpop.f32.mrf.mxu0
    %v3354 = vadd.f32 0.0, %v3353
    %3355 = vmatmul.f32.gmra.mxu0 %v3319
    %v3356 = vpop.f32.mrf.mxu0
    %v3357 = vadd.f32 0.0, %v3356
    %3358 = vmatmul.f32.gmra.mxu0 %v3320
    %v3359 = vpop.f32.mrf.mxu0
    %v3360 = vadd.f32 0.0, %v3359
    %3361 = vdwg.mxu0
    %v3363 = vsel %vm106, %v3339, 0
    %v3366 = vsel %vm106, %v3342, 0
    %v3369 = vsel %vm106, %v3345, 0
    %v3372 = vsel %vm106, %v3348, 0
    %v3375 = vsel %vm106, %v3351, 0
    %v3378 = vsel %vm106, %v3354, 0
    %v3381 = vsel %vm106, %v3357, 0
    %v3384 = vsel %vm106, %v3360, 0
    %3386 = vmatpush.msra.mxu0 0.0
    %3387 = vmatpush.msra.mxu0 0.0
    %3388 = vmatpush.msra.mxu0 0.0
    %3389 = vmatpush.msra.mxu0 0.0
    %3390 = vmatpush.msra.mxu0 0.0
    %3391 = vmatpush.msra.mxu0 0.0
    %3392 = vmatpush.msra.mxu0 0.0
    %3393 = vmatpush.msra.mxu0 0.0
    %3394 = vmatpush.msra.mxu0 0.0
    %3395 = vmatpush.msra.mxu0 0.0
    %3396 = vmatpush.msra.mxu0 0.0
    %3397 = vmatpush.msra.mxu0 0.0
    %3398 = vmatpush.msra.mxu0 0.0
    %3399 = vmatpush.msra.mxu0 0.0
    %3400 = vmatpush.msra.mxu0 0.0
    %3401 = vmatpush.msra.mxu0 %v3158
    %3402 = vmatmul.f32.gmra.mxu0 %v3363
    %v3403 = vpop.f32.mrf.mxu0
    %v3404 = vadd.f32 0.0, %v3403
    %3405 = vmatmul.f32.gmra.mxu0 %v3366
    %v3406 = vpop.f32.mrf.mxu0
    %v3407 = vadd.f32 0.0, %v3406
    %3408 = vmatmul.f32.gmra.mxu0 %v3369
    %v3409 = vpop.f32.mrf.mxu0
    %v3410 = vadd.f32 0.0, %v3409
    %3411 = vmatmul.f32.gmra.mxu0 %v3372
    %v3412 = vpop.f32.mrf.mxu0
    %v3413 = vadd.f32 0.0, %v3412
    %3414 = vmatmul.f32.gmra.mxu0 %v3375
    %v3415 = vpop.f32.mrf.mxu0
    %v3416 = vadd.f32 0.0, %v3415
    %3417 = vmatmul.f32.gmra.mxu0 %v3378
    %v3418 = vpop.f32.mrf.mxu0
    %v3419 = vadd.f32 0.0, %v3418
    %3420 = vmatmul.f32.gmra.mxu0 %v3381
    %v3421 = vpop.f32.mrf.mxu0
    %v3422 = vadd.f32 0.0, %v3421
    %3423 = vmatmul.f32.gmra.mxu0 %v3384
    %v3424 = vpop.f32.mrf.mxu0
    %v3425 = vadd.f32 0.0, %v3424
    %3426 = vdwg.mxu0
    %v3427 = vadd.f32 %v3149, %v3404
    %v3428 = vadd.f32 %v3150, %v3407
    %v3429 = vadd.f32 %v3151, %v3410
    %v3430 = vadd.f32 %v3152, %v3413
    %v3431 = vadd.f32 %v3153, %v3416
    %v3432 = vadd.f32 %v3154, %v3419
    %v3433 = vadd.f32 %v3155, %v3422
    %v3434 = vadd.f32 %v3156, %v3425
    %s3435 = scalar_lea.vmem %s3, 96
    %v3436 = vld [vmem:[%s3435] sm:$0xff]
    %3437 = vmatpush.xpose.msra.mxu0 0.0
    %3438 = vmatpush.xpose.msra.mxu0 0.0
    %3439 = vmatpush.xpose.msra.mxu0 0.0
    %3440 = vmatpush.xpose.msra.mxu0 0.0
    %3441 = vmatpush.xpose.msra.mxu0 0.0
    %3442 = vmatpush.xpose.msra.mxu0 0.0
    %3443 = vmatpush.xpose.msra.mxu0 0.0
    %3444 = vmatpush.xpose.msra.mxu0 0.0
    %3445 = vmatpush.xpose.msra.mxu0 0.0
    %3446 = vmatpush.xpose.msra.mxu0 0.0
    %3447 = vmatpush.xpose.msra.mxu0 0.0
    %3448 = vmatpush.xpose.msra.mxu0 0.0
    %3449 = vmatpush.xpose.msra.mxu0 0.0
    %3450 = vmatpush.xpose.msra.mxu0 0.0
    %3451 = vmatpush.xpose.msra.mxu0 0.0
    %3452 = vmatpush.xpose.msra.mxu0 %v3436
    %3453 = vmatmul.f32.gmra.mxu0 %v37
    %v3454 = vpop.f32.mrf.mxu0
    %v3455 = vadd.f32 0.0, %v3454
    %3456 = vmatmul.f32.gmra.mxu0 %v38
    %v3457 = vpop.f32.mrf.mxu0
    %v3458 = vadd.f32 0.0, %v3457
    %3459 = vmatmul.f32.gmra.mxu0 %v39
    %v3460 = vpop.f32.mrf.mxu0
    %v3461 = vadd.f32 0.0, %v3460
    %3462 = vmatmul.f32.gmra.mxu0 %v40
    %v3463 = vpop.f32.mrf.mxu0
    %v3464 = vadd.f32 0.0, %v3463
    %3465 = vmatmul.f32.gmra.mxu0 %v41
    %v3466 = vpop.f32.mrf.mxu0
    %v3467 = vadd.f32 0.0, %v3466
    %3468 = vmatmul.f32.gmra.mxu0 %v42
    %v3469 = vpop.f32.mrf.mxu0
    %v3470 = vadd.f32 0.0, %v3469
    %3471 = vmatmul.f32.gmra.mxu0 %v43
    %v3472 = vpop.f32.mrf.mxu0
    %v3473 = vadd.f32 0.0, %v3472
    %3474 = vmatmul.f32.gmra.mxu0 %v44
    %v3475 = vpop.f32.mrf.mxu0
    %v3476 = vadd.f32 0.0, %v3475
    %3477 = vdwg.mxu0
    %v3479 = vsel %vm106, %v3455, 0
    %v3482 = vsel %vm106, %v3458, 0
    %v3485 = vsel %vm106, %v3461, 0
    %v3488 = vsel %vm106, %v3464, 0
    %v3491 = vsel %vm106, %v3467, 0
    %v3494 = vsel %vm106, %v3470, 0
    %v3497 = vsel %vm106, %v3473, 0
    %v3500 = vsel %vm106, %v3476, 0
    %3502 = vmatpush.xpose.msra.mxu0 %v177
    %3503 = vmatpush.xpose.msra.mxu0 %v174
    %3504 = vmatpush.xpose.msra.mxu0 %v171
    %3505 = vmatpush.xpose.msra.mxu0 %v168
    %3506 = vmatpush.xpose.msra.mxu0 %v165
    %3507 = vmatpush.xpose.msra.mxu0 %v162
    %3508 = vmatpush.xpose.msra.mxu0 %v159
    %3509 = vmatpush.xpose.msra.mxu0 %v156
    %3510 = vmatpush.xpose.msra.mxu0 %v153
    %3511 = vmatpush.xpose.msra.mxu0 %v150
    %3512 = vmatpush.xpose.msra.mxu0 %v147
    %3513 = vmatpush.xpose.msra.mxu0 %v144
    %3514 = vmatpush.xpose.msra.mxu0 %v141
    %3515 = vmatpush.xpose.msra.mxu0 %v138
    %3516 = vmatpush.xpose.msra.mxu0 %v135
    %3517 = vmatpush.xpose.msra.mxu0 %v132
    %3518 = vmatmul.f32.gmra.mxu0 %v3479
    %v3519 = vpop.f32.mrf.mxu0
    %v3520 = vadd.f32 0.0, %v3519
    %3521 = vmatmul.f32.gmra.mxu0 %v3482
    %v3522 = vpop.f32.mrf.mxu0
    %v3523 = vadd.f32 0.0, %v3522
    %3524 = vmatmul.f32.gmra.mxu0 %v3485
    %v3525 = vpop.f32.mrf.mxu0
    %v3526 = vadd.f32 0.0, %v3525
    %3527 = vmatmul.f32.gmra.mxu0 %v3488
    %v3528 = vpop.f32.mrf.mxu0
    %v3529 = vadd.f32 0.0, %v3528
    %3530 = vmatmul.f32.gmra.mxu0 %v3491
    %v3531 = vpop.f32.mrf.mxu0
    %v3532 = vadd.f32 0.0, %v3531
    %3533 = vmatmul.f32.gmra.mxu0 %v3494
    %v3534 = vpop.f32.mrf.mxu0
    %v3535 = vadd.f32 0.0, %v3534
    %3536 = vmatmul.f32.gmra.mxu0 %v3497
    %v3537 = vpop.f32.mrf.mxu0
    %v3538 = vadd.f32 0.0, %v3537
    %3539 = vmatmul.f32.gmra.mxu0 %v3500
    %v3540 = vpop.f32.mrf.mxu0
    %v3541 = vadd.f32 0.0, %v3540
    %3542 = vdwg.mxu0
    %v3543 = vmul.f32 %v3520, 2.0
    %v3544 = vmul.f32 %v3523, 2.0
    %v3545 = vmul.f32 %v3526, 2.0
    %v3546 = vmul.f32 %v3529, 2.0
    %v3547 = vmul.f32 %v3532, 2.0
    %v3548 = vmul.f32 %v3535, 2.0
    %v3549 = vmul.f32 %v3538, 2.0
    %v3550 = vmul.f32 %v3541, 2.0
    %v3551 = vsub.f32 %v229, %v3543
    %v3552 = vsub.f32 %v229, %v3544
    %v3553 = vsub.f32 %v229, %v3545
    %v3554 = vsub.f32 %v229, %v3546
    %v3555 = vsub.f32 %v229, %v3547
    %v3556 = vsub.f32 %v229, %v3548
    %v3557 = vsub.f32 %v229, %v3549
    %v3558 = vsub.f32 %v229, %v3550
    %3559 = vmin.index.xlane.f32.xlu0 %v3551
    %v3560 = vpop.xlane.xlu0 %3559
    %3561 = vmin.index.xlane.f32.xlu0 %v3552
    %v3562 = vpop.xlane.xlu0 %3561
    %3563 = vmin.index.xlane.f32.xlu0 %v3553
    %v3564 = vpop.xlane.xlu0 %3563
    %3565 = vmin.index.xlane.f32.xlu0 %v3554
    %v3566 = vpop.xlane.xlu0 %3565
    %3567 = vmin.index.xlane.f32.xlu0 %v3555
    %v3568 = vpop.xlane.xlu0 %3567
    %3569 = vmin.index.xlane.f32.xlu0 %v3556
    %v3570 = vpop.xlane.xlu0 %3569
    %3571 = vmin.index.xlane.f32.xlu0 %v3557
    %v3572 = vpop.xlane.xlu0 %3571
    %3573 = vmin.index.xlane.f32.xlu0 %v3558
    %v3574 = vpop.xlane.xlu0 %3573
    %vm3575 = vcmp.eq.s32.totalorder %v63, %v3560
    %vm3576 = vcmp.eq.s32.totalorder %v63, %v3562
    %vm3577 = vcmp.eq.s32.totalorder %v63, %v3564
    %vm3578 = vcmp.eq.s32.totalorder %v63, %v3566
    %vm3579 = vcmp.eq.s32.totalorder %v63, %v3568
    %vm3580 = vcmp.eq.s32.totalorder %v63, %v3570
    %vm3581 = vcmp.eq.s32.totalorder %v63, %v3572
    %vm3582 = vcmp.eq.s32.totalorder %v63, %v3574
    %v3583 = vsel %vm3575, 1, 0
    %v3584 = vsel %vm3576, 1, 0
    %v3585 = vsel %vm3577, 1, 0
    %v3586 = vsel %vm3578, 1, 0
    %v3587 = vsel %vm3579, 1, 0
    %v3588 = vsel %vm3580, 1, 0
    %v3589 = vsel %vm3581, 1, 0
    %v3590 = vsel %vm3582, 1, 0
    %v3591 = vcvt.s32.f32 %v3583
    %v3592 = vcvt.s32.f32 %v3584
    %v3593 = vcvt.s32.f32 %v3585
    %v3594 = vcvt.s32.f32 %v3586
    %v3595 = vcvt.s32.f32 %v3587
    %v3596 = vcvt.s32.f32 %v3588
    %v3597 = vcvt.s32.f32 %v3589
    %v3598 = vcvt.s32.f32 %v3590
    %3599 = vmatpush.msra.mxu0 %v60
    %3600 = vmatpush.msra.mxu0 %v59
    %3601 = vmatpush.msra.mxu0 %v58
    %3602 = vmatpush.msra.mxu0 %v57
    %3603 = vmatpush.msra.mxu0 %v56
    %3604 = vmatpush.msra.mxu0 %v55
    %3605 = vmatpush.msra.mxu0 %v54
    %3606 = vmatpush.msra.mxu0 %v53
    %3607 = vmatpush.msra.mxu0 %v52
    %3608 = vmatpush.msra.mxu0 %v51
    %3609 = vmatpush.msra.mxu0 %v50
    %3610 = vmatpush.msra.mxu0 %v49
    %3611 = vmatpush.msra.mxu0 %v48
    %3612 = vmatpush.msra.mxu0 %v47
    %3613 = vmatpush.msra.mxu0 %v46
    %3614 = vmatpush.msra.mxu0 %v45
    %3615 = vmatmul.f32.gmra.mxu0 %v3591
    %v3616 = vpop.f32.mrf.mxu0
    %v3617 = vadd.f32 0.0, %v3616
    %3618 = vmatmul.f32.gmra.mxu0 %v3592
    %v3619 = vpop.f32.mrf.mxu0
    %v3620 = vadd.f32 0.0, %v3619
    %3621 = vmatmul.f32.gmra.mxu0 %v3593
    %v3622 = vpop.f32.mrf.mxu0
    %v3623 = vadd.f32 0.0, %v3622
    %3624 = vmatmul.f32.gmra.mxu0 %v3594
    %v3625 = vpop.f32.mrf.mxu0
    %v3626 = vadd.f32 0.0, %v3625
    %3627 = vmatmul.f32.gmra.mxu0 %v3595
    %v3628 = vpop.f32.mrf.mxu0
    %v3629 = vadd.f32 0.0, %v3628
    %3630 = vmatmul.f32.gmra.mxu0 %v3596
    %v3631 = vpop.f32.mrf.mxu0
    %v3632 = vadd.f32 0.0, %v3631
    %3633 = vmatmul.f32.gmra.mxu0 %v3597
    %v3634 = vpop.f32.mrf.mxu0
    %v3635 = vadd.f32 0.0, %v3634
    %3636 = vmatmul.f32.gmra.mxu0 %v3598
    %v3637 = vpop.f32.mrf.mxu0
    %v3638 = vadd.f32 0.0, %v3637
    %3639 = vdwg.mxu0
    %v3641 = vsel %vm106, %v3617, 0
    %v3644 = vsel %vm106, %v3620, 0
    %v3647 = vsel %vm106, %v3623, 0
    %v3650 = vsel %vm106, %v3626, 0
    %v3653 = vsel %vm106, %v3629, 0
    %v3656 = vsel %vm106, %v3632, 0
    %v3659 = vsel %vm106, %v3635, 0
    %v3662 = vsel %vm106, %v3638, 0
    %3664 = vmatpush.msra.mxu0 0.0
    %3665 = vmatpush.msra.mxu0 0.0
    %3666 = vmatpush.msra.mxu0 0.0
    %3667 = vmatpush.msra.mxu0 0.0
    %3668 = vmatpush.msra.mxu0 0.0
    %3669 = vmatpush.msra.mxu0 0.0
    %3670 = vmatpush.msra.mxu0 0.0
    %3671 = vmatpush.msra.mxu0 0.0
    %3672 = vmatpush.msra.mxu0 0.0
    %3673 = vmatpush.msra.mxu0 0.0
    %3674 = vmatpush.msra.mxu0 0.0
    %3675 = vmatpush.msra.mxu0 0.0
    %3676 = vmatpush.msra.mxu0 0.0
    %3677 = vmatpush.msra.mxu0 0.0
    %3678 = vmatpush.msra.mxu0 0.0
    %3679 = vmatpush.msra.mxu0 %v3436
    %3680 = vmatmul.f32.gmra.mxu0 %v3641
    %v3681 = vpop.f32.mrf.mxu0
    %v3682 = vadd.f32 0.0, %v3681
    %3683 = vmatmul.f32.gmra.mxu0 %v3644
    %v3684 = vpop.f32.mrf.mxu0
    %v3685 = vadd.f32 0.0, %v3684
    %3686 = vmatmul.f32.gmra.mxu0 %v3647
    %v3687 = vpop.f32.mrf.mxu0
    %v3688 = vadd.f32 0.0, %v3687
    %3689 = vmatmul.f32.gmra.mxu0 %v3650
    %v3690 = vpop.f32.mrf.mxu0
    %v3691 = vadd.f32 0.0, %v3690
    %3692 = vmatmul.f32.gmra.mxu0 %v3653
    %v3693 = vpop.f32.mrf.mxu0
    %v3694 = vadd.f32 0.0, %v3693
    %3695 = vmatmul.f32.gmra.mxu0 %v3656
    %v3696 = vpop.f32.mrf.mxu0
    %v3697 = vadd.f32 0.0, %v3696
    %3698 = vmatmul.f32.gmra.mxu0 %v3659
    %v3699 = vpop.f32.mrf.mxu0
    %v3700 = vadd.f32 0.0, %v3699
    %3701 = vmatmul.f32.gmra.mxu0 %v3662
    %v3702 = vpop.f32.mrf.mxu0
    %v3703 = vadd.f32 0.0, %v3702
    %3704 = vdwg.mxu0
    %v3705 = vadd.f32 %v3427, %v3682
    %v3706 = vadd.f32 %v3428, %v3685
    %v3707 = vadd.f32 %v3429, %v3688
    %v3708 = vadd.f32 %v3430, %v3691
    %v3709 = vadd.f32 %v3431, %v3694
    %v3710 = vadd.f32 %v3432, %v3697
    %v3711 = vadd.f32 %v3433, %v3700
    %v3712 = vadd.f32 %v3434, %v3703
    %s3713 = scalar_lea.vmem %s3, 104
    %v3714 = vld [vmem:[%s3713] sm:$0xff]
    %3715 = vmatpush.xpose.msra.mxu0 0.0
    %3716 = vmatpush.xpose.msra.mxu0 0.0
    %3717 = vmatpush.xpose.msra.mxu0 0.0
    %3718 = vmatpush.xpose.msra.mxu0 0.0
    %3719 = vmatpush.xpose.msra.mxu0 0.0
    %3720 = vmatpush.xpose.msra.mxu0 0.0
    %3721 = vmatpush.xpose.msra.mxu0 0.0
    %3722 = vmatpush.xpose.msra.mxu0 0.0
    %3723 = vmatpush.xpose.msra.mxu0 0.0
    %3724 = vmatpush.xpose.msra.mxu0 0.0
    %3725 = vmatpush.xpose.msra.mxu0 0.0
    %3726 = vmatpush.xpose.msra.mxu0 0.0
    %3727 = vmatpush.xpose.msra.mxu0 0.0
    %3728 = vmatpush.xpose.msra.mxu0 0.0
    %3729 = vmatpush.xpose.msra.mxu0 0.0
    %3730 = vmatpush.xpose.msra.mxu0 %v3714
    %3731 = vmatmul.f32.gmra.mxu0 %v37
    %v3732 = vpop.f32.mrf.mxu0
    %v3733 = vadd.f32 0.0, %v3732
    %3734 = vmatmul.f32.gmra.mxu0 %v38
    %v3735 = vpop.f32.mrf.mxu0
    %v3736 = vadd.f32 0.0, %v3735
    %3737 = vmatmul.f32.gmra.mxu0 %v39
    %v3738 = vpop.f32.mrf.mxu0
    %v3739 = vadd.f32 0.0, %v3738
    %3740 = vmatmul.f32.gmra.mxu0 %v40
    %v3741 = vpop.f32.mrf.mxu0
    %v3742 = vadd.f32 0.0, %v3741
    %3743 = vmatmul.f32.gmra.mxu0 %v41
    %v3744 = vpop.f32.mrf.mxu0
    %v3745 = vadd.f32 0.0, %v3744
    %3746 = vmatmul.f32.gmra.mxu0 %v42
    %v3747 = vpop.f32.mrf.mxu0
    %v3748 = vadd.f32 0.0, %v3747
    %3749 = vmatmul.f32.gmra.mxu0 %v43
    %v3750 = vpop.f32.mrf.mxu0
    %v3751 = vadd.f32 0.0, %v3750
    %3752 = vmatmul.f32.gmra.mxu0 %v44
    %v3753 = vpop.f32.mrf.mxu0
    %v3754 = vadd.f32 0.0, %v3753
    %3755 = vdwg.mxu0
    %v3757 = vsel %vm106, %v3733, 0
    %v3760 = vsel %vm106, %v3736, 0
    %v3763 = vsel %vm106, %v3739, 0
    %v3766 = vsel %vm106, %v3742, 0
    %v3769 = vsel %vm106, %v3745, 0
    %v3772 = vsel %vm106, %v3748, 0
    %v3775 = vsel %vm106, %v3751, 0
    %v3778 = vsel %vm106, %v3754, 0
    %3780 = vmatpush.xpose.msra.mxu0 %v177
    %3781 = vmatpush.xpose.msra.mxu0 %v174
    %3782 = vmatpush.xpose.msra.mxu0 %v171
    %3783 = vmatpush.xpose.msra.mxu0 %v168
    %3784 = vmatpush.xpose.msra.mxu0 %v165
    %3785 = vmatpush.xpose.msra.mxu0 %v162
    %3786 = vmatpush.xpose.msra.mxu0 %v159
    %3787 = vmatpush.xpose.msra.mxu0 %v156
    %3788 = vmatpush.xpose.msra.mxu0 %v153
    %3789 = vmatpush.xpose.msra.mxu0 %v150
    %3790 = vmatpush.xpose.msra.mxu0 %v147
    %3791 = vmatpush.xpose.msra.mxu0 %v144
    %3792 = vmatpush.xpose.msra.mxu0 %v141
    %3793 = vmatpush.xpose.msra.mxu0 %v138
    %3794 = vmatpush.xpose.msra.mxu0 %v135
    %3795 = vmatpush.xpose.msra.mxu0 %v132
    %3796 = vmatmul.f32.gmra.mxu0 %v3757
    %v3797 = vpop.f32.mrf.mxu0
    %v3798 = vadd.f32 0.0, %v3797
    %3799 = vmatmul.f32.gmra.mxu0 %v3760
    %v3800 = vpop.f32.mrf.mxu0
    %v3801 = vadd.f32 0.0, %v3800
    %3802 = vmatmul.f32.gmra.mxu0 %v3763
    %v3803 = vpop.f32.mrf.mxu0
    %v3804 = vadd.f32 0.0, %v3803
    %3805 = vmatmul.f32.gmra.mxu0 %v3766
    %v3806 = vpop.f32.mrf.mxu0
    %v3807 = vadd.f32 0.0, %v3806
    %3808 = vmatmul.f32.gmra.mxu0 %v3769
    %v3809 = vpop.f32.mrf.mxu0
    %v3810 = vadd.f32 0.0, %v3809
    %3811 = vmatmul.f32.gmra.mxu0 %v3772
    %v3812 = vpop.f32.mrf.mxu0
    %v3813 = vadd.f32 0.0, %v3812
    %3814 = vmatmul.f32.gmra.mxu0 %v3775
    %v3815 = vpop.f32.mrf.mxu0
    %v3816 = vadd.f32 0.0, %v3815
    %3817 = vmatmul.f32.gmra.mxu0 %v3778
    %v3818 = vpop.f32.mrf.mxu0
    %v3819 = vadd.f32 0.0, %v3818
    %3820 = vdwg.mxu0
    %v3821 = vmul.f32 %v3798, 2.0
    %v3822 = vmul.f32 %v3801, 2.0
    %v3823 = vmul.f32 %v3804, 2.0
    %v3824 = vmul.f32 %v3807, 2.0
    %v3825 = vmul.f32 %v3810, 2.0
    %v3826 = vmul.f32 %v3813, 2.0
    %v3827 = vmul.f32 %v3816, 2.0
    %v3828 = vmul.f32 %v3819, 2.0
    %v3829 = vsub.f32 %v229, %v3821
    %v3830 = vsub.f32 %v229, %v3822
    %v3831 = vsub.f32 %v229, %v3823
    %v3832 = vsub.f32 %v229, %v3824
    %v3833 = vsub.f32 %v229, %v3825
    %v3834 = vsub.f32 %v229, %v3826
    %v3835 = vsub.f32 %v229, %v3827
    %v3836 = vsub.f32 %v229, %v3828
    %3837 = vmin.index.xlane.f32.xlu0 %v3829
    %v3838 = vpop.xlane.xlu0 %3837
    %3839 = vmin.index.xlane.f32.xlu0 %v3830
    %v3840 = vpop.xlane.xlu0 %3839
    %3841 = vmin.index.xlane.f32.xlu0 %v3831
    %v3842 = vpop.xlane.xlu0 %3841
    %3843 = vmin.index.xlane.f32.xlu0 %v3832
    %v3844 = vpop.xlane.xlu0 %3843
    %3845 = vmin.index.xlane.f32.xlu0 %v3833
    %v3846 = vpop.xlane.xlu0 %3845
    %3847 = vmin.index.xlane.f32.xlu0 %v3834
    %v3848 = vpop.xlane.xlu0 %3847
    %3849 = vmin.index.xlane.f32.xlu0 %v3835
    %v3850 = vpop.xlane.xlu0 %3849
    %3851 = vmin.index.xlane.f32.xlu0 %v3836
    %v3852 = vpop.xlane.xlu0 %3851
    %vm3853 = vcmp.eq.s32.totalorder %v63, %v3838
    %vm3854 = vcmp.eq.s32.totalorder %v63, %v3840
    %vm3855 = vcmp.eq.s32.totalorder %v63, %v3842
    %vm3856 = vcmp.eq.s32.totalorder %v63, %v3844
    %vm3857 = vcmp.eq.s32.totalorder %v63, %v3846
    %vm3858 = vcmp.eq.s32.totalorder %v63, %v3848
    %vm3859 = vcmp.eq.s32.totalorder %v63, %v3850
    %vm3860 = vcmp.eq.s32.totalorder %v63, %v3852
    %v3861 = vsel %vm3853, 1, 0
    %v3862 = vsel %vm3854, 1, 0
    %v3863 = vsel %vm3855, 1, 0
    %v3864 = vsel %vm3856, 1, 0
    %v3865 = vsel %vm3857, 1, 0
    %v3866 = vsel %vm3858, 1, 0
    %v3867 = vsel %vm3859, 1, 0
    %v3868 = vsel %vm3860, 1, 0
    %v3869 = vcvt.s32.f32 %v3861
    %v3870 = vcvt.s32.f32 %v3862
    %v3871 = vcvt.s32.f32 %v3863
    %v3872 = vcvt.s32.f32 %v3864
    %v3873 = vcvt.s32.f32 %v3865
    %v3874 = vcvt.s32.f32 %v3866
    %v3875 = vcvt.s32.f32 %v3867
    %v3876 = vcvt.s32.f32 %v3868
    %3877 = vmatpush.msra.mxu0 %v60
    %3878 = vmatpush.msra.mxu0 %v59
    %3879 = vmatpush.msra.mxu0 %v58
    %3880 = vmatpush.msra.mxu0 %v57
    %3881 = vmatpush.msra.mxu0 %v56
    %3882 = vmatpush.msra.mxu0 %v55
    %3883 = vmatpush.msra.mxu0 %v54
    %3884 = vmatpush.msra.mxu0 %v53
    %3885 = vmatpush.msra.mxu0 %v52
    %3886 = vmatpush.msra.mxu0 %v51
    %3887 = vmatpush.msra.mxu0 %v50
    %3888 = vmatpush.msra.mxu0 %v49
    %3889 = vmatpush.msra.mxu0 %v48
    %3890 = vmatpush.msra.mxu0 %v47
    %3891 = vmatpush.msra.mxu0 %v46
    %3892 = vmatpush.msra.mxu0 %v45
    %3893 = vmatmul.f32.gmra.mxu0 %v3869
    %v3894 = vpop.f32.mrf.mxu0
    %v3895 = vadd.f32 0.0, %v3894
    %3896 = vmatmul.f32.gmra.mxu0 %v3870
    %v3897 = vpop.f32.mrf.mxu0
    %v3898 = vadd.f32 0.0, %v3897
    %3899 = vmatmul.f32.gmra.mxu0 %v3871
    %v3900 = vpop.f32.mrf.mxu0
    %v3901 = vadd.f32 0.0, %v3900
    %3902 = vmatmul.f32.gmra.mxu0 %v3872
    %v3903 = vpop.f32.mrf.mxu0
    %v3904 = vadd.f32 0.0, %v3903
    %3905 = vmatmul.f32.gmra.mxu0 %v3873
    %v3906 = vpop.f32.mrf.mxu0
    %v3907 = vadd.f32 0.0, %v3906
    %3908 = vmatmul.f32.gmra.mxu0 %v3874
    %v3909 = vpop.f32.mrf.mxu0
    %v3910 = vadd.f32 0.0, %v3909
    %3911 = vmatmul.f32.gmra.mxu0 %v3875
    %v3912 = vpop.f32.mrf.mxu0
    %v3913 = vadd.f32 0.0, %v3912
    %3914 = vmatmul.f32.gmra.mxu0 %v3876
    %v3915 = vpop.f32.mrf.mxu0
    %v3916 = vadd.f32 0.0, %v3915
    %3917 = vdwg.mxu0
    %v3919 = vsel %vm106, %v3895, 0
    %v3922 = vsel %vm106, %v3898, 0
    %v3925 = vsel %vm106, %v3901, 0
    %v3928 = vsel %vm106, %v3904, 0
    %v3931 = vsel %vm106, %v3907, 0
    %v3934 = vsel %vm106, %v3910, 0
    %v3937 = vsel %vm106, %v3913, 0
    %v3940 = vsel %vm106, %v3916, 0
    %3942 = vmatpush.msra.mxu0 0.0
    %3943 = vmatpush.msra.mxu0 0.0
    %3944 = vmatpush.msra.mxu0 0.0
    %3945 = vmatpush.msra.mxu0 0.0
    %3946 = vmatpush.msra.mxu0 0.0
    %3947 = vmatpush.msra.mxu0 0.0
    %3948 = vmatpush.msra.mxu0 0.0
    %3949 = vmatpush.msra.mxu0 0.0
    %3950 = vmatpush.msra.mxu0 0.0
    %3951 = vmatpush.msra.mxu0 0.0
    %3952 = vmatpush.msra.mxu0 0.0
    %3953 = vmatpush.msra.mxu0 0.0
    %3954 = vmatpush.msra.mxu0 0.0
    %3955 = vmatpush.msra.mxu0 0.0
    %3956 = vmatpush.msra.mxu0 0.0
    %3957 = vmatpush.msra.mxu0 %v3714
    %3958 = vmatmul.f32.gmra.mxu0 %v3919
    %v3959 = vpop.f32.mrf.mxu0
    %v3960 = vadd.f32 0.0, %v3959
    %3961 = vmatmul.f32.gmra.mxu0 %v3922
    %v3962 = vpop.f32.mrf.mxu0
    %v3963 = vadd.f32 0.0, %v3962
    %3964 = vmatmul.f32.gmra.mxu0 %v3925
    %v3965 = vpop.f32.mrf.mxu0
    %v3966 = vadd.f32 0.0, %v3965
    %3967 = vmatmul.f32.gmra.mxu0 %v3928
    %v3968 = vpop.f32.mrf.mxu0
    %v3969 = vadd.f32 0.0, %v3968
    %3970 = vmatmul.f32.gmra.mxu0 %v3931
    %v3971 = vpop.f32.mrf.mxu0
    %v3972 = vadd.f32 0.0, %v3971
    %3973 = vmatmul.f32.gmra.mxu0 %v3934
    %v3974 = vpop.f32.mrf.mxu0
    %v3975 = vadd.f32 0.0, %v3974
    %3976 = vmatmul.f32.gmra.mxu0 %v3937
    %v3977 = vpop.f32.mrf.mxu0
    %v3978 = vadd.f32 0.0, %v3977
    %3979 = vmatmul.f32.gmra.mxu0 %v3940
    %v3980 = vpop.f32.mrf.mxu0
    %v3981 = vadd.f32 0.0, %v3980
    %3982 = vdwg.mxu0
    %v3983 = vadd.f32 %v3705, %v3960
    %v3984 = vadd.f32 %v3706, %v3963
    %v3985 = vadd.f32 %v3707, %v3966
    %v3986 = vadd.f32 %v3708, %v3969
    %v3987 = vadd.f32 %v3709, %v3972
    %v3988 = vadd.f32 %v3710, %v3975
    %v3989 = vadd.f32 %v3711, %v3978
    %v3990 = vadd.f32 %v3712, %v3981
    %s3991 = scalar_lea.vmem %s3, 112
    %v3992 = vld [vmem:[%s3991] sm:$0xff]
    %3993 = vmatpush.xpose.msra.mxu0 0.0
    %3994 = vmatpush.xpose.msra.mxu0 0.0
    %3995 = vmatpush.xpose.msra.mxu0 0.0
    %3996 = vmatpush.xpose.msra.mxu0 0.0
    %3997 = vmatpush.xpose.msra.mxu0 0.0
    %3998 = vmatpush.xpose.msra.mxu0 0.0
    %3999 = vmatpush.xpose.msra.mxu0 0.0
    %4000 = vmatpush.xpose.msra.mxu0 0.0
    %4001 = vmatpush.xpose.msra.mxu0 0.0
    %4002 = vmatpush.xpose.msra.mxu0 0.0
    %4003 = vmatpush.xpose.msra.mxu0 0.0
    %4004 = vmatpush.xpose.msra.mxu0 0.0
    %4005 = vmatpush.xpose.msra.mxu0 0.0
    %4006 = vmatpush.xpose.msra.mxu0 0.0
    %4007 = vmatpush.xpose.msra.mxu0 0.0
    %4008 = vmatpush.xpose.msra.mxu0 %v3992
    %4009 = vmatmul.f32.gmra.mxu0 %v37
    %v4010 = vpop.f32.mrf.mxu0
    %v4011 = vadd.f32 0.0, %v4010
    %4012 = vmatmul.f32.gmra.mxu0 %v38
    %v4013 = vpop.f32.mrf.mxu0
    %v4014 = vadd.f32 0.0, %v4013
    %4015 = vmatmul.f32.gmra.mxu0 %v39
    %v4016 = vpop.f32.mrf.mxu0
    %v4017 = vadd.f32 0.0, %v4016
    %4018 = vmatmul.f32.gmra.mxu0 %v40
    %v4019 = vpop.f32.mrf.mxu0
    %v4020 = vadd.f32 0.0, %v4019
    %4021 = vmatmul.f32.gmra.mxu0 %v41
    %v4022 = vpop.f32.mrf.mxu0
    %v4023 = vadd.f32 0.0, %v4022
    %4024 = vmatmul.f32.gmra.mxu0 %v42
    %v4025 = vpop.f32.mrf.mxu0
    %v4026 = vadd.f32 0.0, %v4025
    %4027 = vmatmul.f32.gmra.mxu0 %v43
    %v4028 = vpop.f32.mrf.mxu0
    %v4029 = vadd.f32 0.0, %v4028
    %4030 = vmatmul.f32.gmra.mxu0 %v44
    %v4031 = vpop.f32.mrf.mxu0
    %v4032 = vadd.f32 0.0, %v4031
    %4033 = vdwg.mxu0
    %v4035 = vsel %vm106, %v4011, 0
    %v4038 = vsel %vm106, %v4014, 0
    %v4041 = vsel %vm106, %v4017, 0
    %v4044 = vsel %vm106, %v4020, 0
    %v4047 = vsel %vm106, %v4023, 0
    %v4050 = vsel %vm106, %v4026, 0
    %v4053 = vsel %vm106, %v4029, 0
    %v4056 = vsel %vm106, %v4032, 0
    %4058 = vmatpush.xpose.msra.mxu0 %v177
    %4059 = vmatpush.xpose.msra.mxu0 %v174
    %4060 = vmatpush.xpose.msra.mxu0 %v171
    %4061 = vmatpush.xpose.msra.mxu0 %v168
    %4062 = vmatpush.xpose.msra.mxu0 %v165
    %4063 = vmatpush.xpose.msra.mxu0 %v162
    %4064 = vmatpush.xpose.msra.mxu0 %v159
    %4065 = vmatpush.xpose.msra.mxu0 %v156
    %4066 = vmatpush.xpose.msra.mxu0 %v153
    %4067 = vmatpush.xpose.msra.mxu0 %v150
    %4068 = vmatpush.xpose.msra.mxu0 %v147
    %4069 = vmatpush.xpose.msra.mxu0 %v144
    %4070 = vmatpush.xpose.msra.mxu0 %v141
    %4071 = vmatpush.xpose.msra.mxu0 %v138
    %4072 = vmatpush.xpose.msra.mxu0 %v135
    %4073 = vmatpush.xpose.msra.mxu0 %v132
    %4074 = vmatmul.f32.gmra.mxu0 %v4035
    %v4075 = vpop.f32.mrf.mxu0
    %v4076 = vadd.f32 0.0, %v4075
    %4077 = vmatmul.f32.gmra.mxu0 %v4038
    %v4078 = vpop.f32.mrf.mxu0
    %v4079 = vadd.f32 0.0, %v4078
    %4080 = vmatmul.f32.gmra.mxu0 %v4041
    %v4081 = vpop.f32.mrf.mxu0
    %v4082 = vadd.f32 0.0, %v4081
    %4083 = vmatmul.f32.gmra.mxu0 %v4044
    %v4084 = vpop.f32.mrf.mxu0
    %v4085 = vadd.f32 0.0, %v4084
    %4086 = vmatmul.f32.gmra.mxu0 %v4047
    %v4087 = vpop.f32.mrf.mxu0
    %v4088 = vadd.f32 0.0, %v4087
    %4089 = vmatmul.f32.gmra.mxu0 %v4050
    %v4090 = vpop.f32.mrf.mxu0
    %v4091 = vadd.f32 0.0, %v4090
    %4092 = vmatmul.f32.gmra.mxu0 %v4053
    %v4093 = vpop.f32.mrf.mxu0
    %v4094 = vadd.f32 0.0, %v4093
    %4095 = vmatmul.f32.gmra.mxu0 %v4056
    %v4096 = vpop.f32.mrf.mxu0
    %v4097 = vadd.f32 0.0, %v4096
    %4098 = vdwg.mxu0
    %v4099 = vmul.f32 %v4076, 2.0
    %v4100 = vmul.f32 %v4079, 2.0
    %v4101 = vmul.f32 %v4082, 2.0
    %v4102 = vmul.f32 %v4085, 2.0
    %v4103 = vmul.f32 %v4088, 2.0
    %v4104 = vmul.f32 %v4091, 2.0
    %v4105 = vmul.f32 %v4094, 2.0
    %v4106 = vmul.f32 %v4097, 2.0
    %v4107 = vsub.f32 %v229, %v4099
    %v4108 = vsub.f32 %v229, %v4100
    %v4109 = vsub.f32 %v229, %v4101
    %v4110 = vsub.f32 %v229, %v4102
    %v4111 = vsub.f32 %v229, %v4103
    %v4112 = vsub.f32 %v229, %v4104
    %v4113 = vsub.f32 %v229, %v4105
    %v4114 = vsub.f32 %v229, %v4106
    %4115 = vmin.index.xlane.f32.xlu0 %v4107
    %v4116 = vpop.xlane.xlu0 %4115
    %4117 = vmin.index.xlane.f32.xlu0 %v4108
    %v4118 = vpop.xlane.xlu0 %4117
    %4119 = vmin.index.xlane.f32.xlu0 %v4109
    %v4120 = vpop.xlane.xlu0 %4119
    %4121 = vmin.index.xlane.f32.xlu0 %v4110
    %v4122 = vpop.xlane.xlu0 %4121
    %4123 = vmin.index.xlane.f32.xlu0 %v4111
    %v4124 = vpop.xlane.xlu0 %4123
    %4125 = vmin.index.xlane.f32.xlu0 %v4112
    %v4126 = vpop.xlane.xlu0 %4125
    %4127 = vmin.index.xlane.f32.xlu0 %v4113
    %v4128 = vpop.xlane.xlu0 %4127
    %4129 = vmin.index.xlane.f32.xlu0 %v4114
    %v4130 = vpop.xlane.xlu0 %4129
    %vm4131 = vcmp.eq.s32.totalorder %v63, %v4116
    %vm4132 = vcmp.eq.s32.totalorder %v63, %v4118
    %vm4133 = vcmp.eq.s32.totalorder %v63, %v4120
    %vm4134 = vcmp.eq.s32.totalorder %v63, %v4122
    %vm4135 = vcmp.eq.s32.totalorder %v63, %v4124
    %vm4136 = vcmp.eq.s32.totalorder %v63, %v4126
    %vm4137 = vcmp.eq.s32.totalorder %v63, %v4128
    %vm4138 = vcmp.eq.s32.totalorder %v63, %v4130
    %v4139 = vsel %vm4131, 1, 0
    %v4140 = vsel %vm4132, 1, 0
    %v4141 = vsel %vm4133, 1, 0
    %v4142 = vsel %vm4134, 1, 0
    %v4143 = vsel %vm4135, 1, 0
    %v4144 = vsel %vm4136, 1, 0
    %v4145 = vsel %vm4137, 1, 0
    %v4146 = vsel %vm4138, 1, 0
    %v4147 = vcvt.s32.f32 %v4139
    %v4148 = vcvt.s32.f32 %v4140
    %v4149 = vcvt.s32.f32 %v4141
    %v4150 = vcvt.s32.f32 %v4142
    %v4151 = vcvt.s32.f32 %v4143
    %v4152 = vcvt.s32.f32 %v4144
    %v4153 = vcvt.s32.f32 %v4145
    %v4154 = vcvt.s32.f32 %v4146
    %4155 = vmatpush.msra.mxu0 %v60
    %4156 = vmatpush.msra.mxu0 %v59
    %4157 = vmatpush.msra.mxu0 %v58
    %4158 = vmatpush.msra.mxu0 %v57
    %4159 = vmatpush.msra.mxu0 %v56
    %4160 = vmatpush.msra.mxu0 %v55
    %4161 = vmatpush.msra.mxu0 %v54
    %4162 = vmatpush.msra.mxu0 %v53
    %4163 = vmatpush.msra.mxu0 %v52
    %4164 = vmatpush.msra.mxu0 %v51
    %4165 = vmatpush.msra.mxu0 %v50
    %4166 = vmatpush.msra.mxu0 %v49
    %4167 = vmatpush.msra.mxu0 %v48
    %4168 = vmatpush.msra.mxu0 %v47
    %4169 = vmatpush.msra.mxu0 %v46
    %4170 = vmatpush.msra.mxu0 %v45
    %4171 = vmatmul.f32.gmra.mxu0 %v4147
    %v4172 = vpop.f32.mrf.mxu0
    %v4173 = vadd.f32 0.0, %v4172
    %4174 = vmatmul.f32.gmra.mxu0 %v4148
    %v4175 = vpop.f32.mrf.mxu0
    %v4176 = vadd.f32 0.0, %v4175
    %4177 = vmatmul.f32.gmra.mxu0 %v4149
    %v4178 = vpop.f32.mrf.mxu0
    %v4179 = vadd.f32 0.0, %v4178
    %4180 = vmatmul.f32.gmra.mxu0 %v4150
    %v4181 = vpop.f32.mrf.mxu0
    %v4182 = vadd.f32 0.0, %v4181
    %4183 = vmatmul.f32.gmra.mxu0 %v4151
    %v4184 = vpop.f32.mrf.mxu0
    %v4185 = vadd.f32 0.0, %v4184
    %4186 = vmatmul.f32.gmra.mxu0 %v4152
    %v4187 = vpop.f32.mrf.mxu0
    %v4188 = vadd.f32 0.0, %v4187
    %4189 = vmatmul.f32.gmra.mxu0 %v4153
    %v4190 = vpop.f32.mrf.mxu0
    %v4191 = vadd.f32 0.0, %v4190
    %4192 = vmatmul.f32.gmra.mxu0 %v4154
    %v4193 = vpop.f32.mrf.mxu0
    %v4194 = vadd.f32 0.0, %v4193
    %4195 = vdwg.mxu0
    %v4197 = vsel %vm106, %v4173, 0
    %v4200 = vsel %vm106, %v4176, 0
    %v4203 = vsel %vm106, %v4179, 0
    %v4206 = vsel %vm106, %v4182, 0
    %v4209 = vsel %vm106, %v4185, 0
    %v4212 = vsel %vm106, %v4188, 0
    %v4215 = vsel %vm106, %v4191, 0
    %v4218 = vsel %vm106, %v4194, 0
    %4220 = vmatpush.msra.mxu0 0.0
    %4221 = vmatpush.msra.mxu0 0.0
    %4222 = vmatpush.msra.mxu0 0.0
    %4223 = vmatpush.msra.mxu0 0.0
    %4224 = vmatpush.msra.mxu0 0.0
    %4225 = vmatpush.msra.mxu0 0.0
    %4226 = vmatpush.msra.mxu0 0.0
    %4227 = vmatpush.msra.mxu0 0.0
    %4228 = vmatpush.msra.mxu0 0.0
    %4229 = vmatpush.msra.mxu0 0.0
    %4230 = vmatpush.msra.mxu0 0.0
    %4231 = vmatpush.msra.mxu0 0.0
    %4232 = vmatpush.msra.mxu0 0.0
    %4233 = vmatpush.msra.mxu0 0.0
    %4234 = vmatpush.msra.mxu0 0.0
    %4235 = vmatpush.msra.mxu0 %v3992
    %4236 = vmatmul.f32.gmra.mxu0 %v4197
    %v4237 = vpop.f32.mrf.mxu0
    %v4238 = vadd.f32 0.0, %v4237
    %4239 = vmatmul.f32.gmra.mxu0 %v4200
    %v4240 = vpop.f32.mrf.mxu0
    %v4241 = vadd.f32 0.0, %v4240
    %4242 = vmatmul.f32.gmra.mxu0 %v4203
    %v4243 = vpop.f32.mrf.mxu0
    %v4244 = vadd.f32 0.0, %v4243
    %4245 = vmatmul.f32.gmra.mxu0 %v4206
    %v4246 = vpop.f32.mrf.mxu0
    %v4247 = vadd.f32 0.0, %v4246
    %4248 = vmatmul.f32.gmra.mxu0 %v4209
    %v4249 = vpop.f32.mrf.mxu0
    %v4250 = vadd.f32 0.0, %v4249
    %4251 = vmatmul.f32.gmra.mxu0 %v4212
    %v4252 = vpop.f32.mrf.mxu0
    %v4253 = vadd.f32 0.0, %v4252
    %4254 = vmatmul.f32.gmra.mxu0 %v4215
    %v4255 = vpop.f32.mrf.mxu0
    %v4256 = vadd.f32 0.0, %v4255
    %4257 = vmatmul.f32.gmra.mxu0 %v4218
    %v4258 = vpop.f32.mrf.mxu0
    %v4259 = vadd.f32 0.0, %v4258
    %4260 = vdwg.mxu0
    %v4261 = vadd.f32 %v3983, %v4238
    %v4262 = vadd.f32 %v3984, %v4241
    %v4263 = vadd.f32 %v3985, %v4244
    %v4264 = vadd.f32 %v3986, %v4247
    %v4265 = vadd.f32 %v3987, %v4250
    %v4266 = vadd.f32 %v3988, %v4253
    %v4267 = vadd.f32 %v3989, %v4256
    %v4268 = vadd.f32 %v3990, %v4259
    %s4269 = scalar_lea.vmem %s3, 120
    %v4270 = vld [vmem:[%s4269] sm:$0xff]
    %4271 = vmatpush.xpose.msra.mxu0 0.0
    %4272 = vmatpush.xpose.msra.mxu0 0.0
    %4273 = vmatpush.xpose.msra.mxu0 0.0
    %4274 = vmatpush.xpose.msra.mxu0 0.0
    %4275 = vmatpush.xpose.msra.mxu0 0.0
    %4276 = vmatpush.xpose.msra.mxu0 0.0
    %4277 = vmatpush.xpose.msra.mxu0 0.0
    %4278 = vmatpush.xpose.msra.mxu0 0.0
    %4279 = vmatpush.xpose.msra.mxu0 0.0
    %4280 = vmatpush.xpose.msra.mxu0 0.0
    %4281 = vmatpush.xpose.msra.mxu0 0.0
    %4282 = vmatpush.xpose.msra.mxu0 0.0
    %4283 = vmatpush.xpose.msra.mxu0 0.0
    %4284 = vmatpush.xpose.msra.mxu0 0.0
    %4285 = vmatpush.xpose.msra.mxu0 0.0
    %4286 = vmatpush.xpose.msra.mxu0 %v4270
    %4287 = vmatmul.f32.gmra.mxu0 %v37
    %v4288 = vpop.f32.mrf.mxu0
    %v4289 = vadd.f32 0.0, %v4288
    %4290 = vmatmul.f32.gmra.mxu0 %v38
    %v4291 = vpop.f32.mrf.mxu0
    %v4292 = vadd.f32 0.0, %v4291
    %4293 = vmatmul.f32.gmra.mxu0 %v39
    %v4294 = vpop.f32.mrf.mxu0
    %v4295 = vadd.f32 0.0, %v4294
    %4296 = vmatmul.f32.gmra.mxu0 %v40
    %v4297 = vpop.f32.mrf.mxu0
    %v4298 = vadd.f32 0.0, %v4297
    %4299 = vmatmul.f32.gmra.mxu0 %v41
    %v4300 = vpop.f32.mrf.mxu0
    %v4301 = vadd.f32 0.0, %v4300
    %4302 = vmatmul.f32.gmra.mxu0 %v42
    %v4303 = vpop.f32.mrf.mxu0
    %v4304 = vadd.f32 0.0, %v4303
    %4305 = vmatmul.f32.gmra.mxu0 %v43
    %v4306 = vpop.f32.mrf.mxu0
    %v4307 = vadd.f32 0.0, %v4306
    %4308 = vmatmul.f32.gmra.mxu0 %v44
    %v4309 = vpop.f32.mrf.mxu0
    %v4310 = vadd.f32 0.0, %v4309
    %4311 = vdwg.mxu0
    %v4313 = vsel %vm106, %v4289, 0
    %v4316 = vsel %vm106, %v4292, 0
    %v4319 = vsel %vm106, %v4295, 0
    %v4322 = vsel %vm106, %v4298, 0
    %v4325 = vsel %vm106, %v4301, 0
    %v4328 = vsel %vm106, %v4304, 0
    %v4331 = vsel %vm106, %v4307, 0
    %v4334 = vsel %vm106, %v4310, 0
    %4336 = vmatpush.xpose.msra.mxu0 %v177
    %4337 = vmatpush.xpose.msra.mxu0 %v174
    %4338 = vmatpush.xpose.msra.mxu0 %v171
    %4339 = vmatpush.xpose.msra.mxu0 %v168
    %4340 = vmatpush.xpose.msra.mxu0 %v165
    %4341 = vmatpush.xpose.msra.mxu0 %v162
    %4342 = vmatpush.xpose.msra.mxu0 %v159
    %4343 = vmatpush.xpose.msra.mxu0 %v156
    %4344 = vmatpush.xpose.msra.mxu0 %v153
    %4345 = vmatpush.xpose.msra.mxu0 %v150
    %4346 = vmatpush.xpose.msra.mxu0 %v147
    %4347 = vmatpush.xpose.msra.mxu0 %v144
    %4348 = vmatpush.xpose.msra.mxu0 %v141
    %4349 = vmatpush.xpose.msra.mxu0 %v138
    %4350 = vmatpush.xpose.msra.mxu0 %v135
    %4351 = vmatpush.xpose.msra.mxu0 %v132
    %4352 = vmatmul.f32.gmra.mxu0 %v4313
    %v4353 = vpop.f32.mrf.mxu0
    %v4354 = vadd.f32 0.0, %v4353
    %4355 = vmatmul.f32.gmra.mxu0 %v4316
    %v4356 = vpop.f32.mrf.mxu0
    %v4357 = vadd.f32 0.0, %v4356
    %4358 = vmatmul.f32.gmra.mxu0 %v4319
    %v4359 = vpop.f32.mrf.mxu0
    %v4360 = vadd.f32 0.0, %v4359
    %4361 = vmatmul.f32.gmra.mxu0 %v4322
    %v4362 = vpop.f32.mrf.mxu0
    %v4363 = vadd.f32 0.0, %v4362
    %4364 = vmatmul.f32.gmra.mxu0 %v4325
    %v4365 = vpop.f32.mrf.mxu0
    %v4366 = vadd.f32 0.0, %v4365
    %4367 = vmatmul.f32.gmra.mxu0 %v4328
    %v4368 = vpop.f32.mrf.mxu0
    %v4369 = vadd.f32 0.0, %v4368
    %4370 = vmatmul.f32.gmra.mxu0 %v4331
    %v4371 = vpop.f32.mrf.mxu0
    %v4372 = vadd.f32 0.0, %v4371
    %4373 = vmatmul.f32.gmra.mxu0 %v4334
    %v4374 = vpop.f32.mrf.mxu0
    %v4375 = vadd.f32 0.0, %v4374
    %4376 = vdwg.mxu0
    %v4377 = vmul.f32 %v4354, 2.0
    %v4378 = vmul.f32 %v4357, 2.0
    %v4379 = vmul.f32 %v4360, 2.0
    %v4380 = vmul.f32 %v4363, 2.0
    %v4381 = vmul.f32 %v4366, 2.0
    %v4382 = vmul.f32 %v4369, 2.0
    %v4383 = vmul.f32 %v4372, 2.0
    %v4384 = vmul.f32 %v4375, 2.0
    %v4385 = vsub.f32 %v229, %v4377
    %v4386 = vsub.f32 %v229, %v4378
    %v4387 = vsub.f32 %v229, %v4379
    %v4388 = vsub.f32 %v229, %v4380
    %v4389 = vsub.f32 %v229, %v4381
    %v4390 = vsub.f32 %v229, %v4382
    %v4391 = vsub.f32 %v229, %v4383
    %v4392 = vsub.f32 %v229, %v4384
    %4393 = vmin.index.xlane.f32.xlu0 %v4385
    %v4394 = vpop.xlane.xlu0 %4393
    %4395 = vmin.index.xlane.f32.xlu0 %v4386
    %v4396 = vpop.xlane.xlu0 %4395
    %4397 = vmin.index.xlane.f32.xlu0 %v4387
    %v4398 = vpop.xlane.xlu0 %4397
    %4399 = vmin.index.xlane.f32.xlu0 %v4388
    %v4400 = vpop.xlane.xlu0 %4399
    %4401 = vmin.index.xlane.f32.xlu0 %v4389
    %v4402 = vpop.xlane.xlu0 %4401
    %4403 = vmin.index.xlane.f32.xlu0 %v4390
    %v4404 = vpop.xlane.xlu0 %4403
    %4405 = vmin.index.xlane.f32.xlu0 %v4391
    %v4406 = vpop.xlane.xlu0 %4405
    %4407 = vmin.index.xlane.f32.xlu0 %v4392
    %v4408 = vpop.xlane.xlu0 %4407
    %vm4409 = vcmp.eq.s32.totalorder %v63, %v4394
    %vm4410 = vcmp.eq.s32.totalorder %v63, %v4396
    %vm4411 = vcmp.eq.s32.totalorder %v63, %v4398
    %vm4412 = vcmp.eq.s32.totalorder %v63, %v4400
    %vm4413 = vcmp.eq.s32.totalorder %v63, %v4402
    %vm4414 = vcmp.eq.s32.totalorder %v63, %v4404
    %vm4415 = vcmp.eq.s32.totalorder %v63, %v4406
    %vm4416 = vcmp.eq.s32.totalorder %v63, %v4408
    %v4417 = vsel %vm4409, 1, 0
    %v4418 = vsel %vm4410, 1, 0
    %v4419 = vsel %vm4411, 1, 0
    %v4420 = vsel %vm4412, 1, 0
    %v4421 = vsel %vm4413, 1, 0
    %v4422 = vsel %vm4414, 1, 0
    %v4423 = vsel %vm4415, 1, 0
    %v4424 = vsel %vm4416, 1, 0
    %v4425 = vcvt.s32.f32 %v4417
    %v4426 = vcvt.s32.f32 %v4418
    %v4427 = vcvt.s32.f32 %v4419
    %v4428 = vcvt.s32.f32 %v4420
    %v4429 = vcvt.s32.f32 %v4421
    %v4430 = vcvt.s32.f32 %v4422
    %v4431 = vcvt.s32.f32 %v4423
    %v4432 = vcvt.s32.f32 %v4424
    %4433 = vmatpush.msra.mxu0 %v60
    %4434 = vmatpush.msra.mxu0 %v59
    %4435 = vmatpush.msra.mxu0 %v58
    %4436 = vmatpush.msra.mxu0 %v57
    %4437 = vmatpush.msra.mxu0 %v56
    %4438 = vmatpush.msra.mxu0 %v55
    %4439 = vmatpush.msra.mxu0 %v54
    %4440 = vmatpush.msra.mxu0 %v53
    %4441 = vmatpush.msra.mxu0 %v52
    %4442 = vmatpush.msra.mxu0 %v51
    %4443 = vmatpush.msra.mxu0 %v50
    %4444 = vmatpush.msra.mxu0 %v49
    %4445 = vmatpush.msra.mxu0 %v48
    %4446 = vmatpush.msra.mxu0 %v47
    %4447 = vmatpush.msra.mxu0 %v46
    %4448 = vmatpush.msra.mxu0 %v45
    %4449 = vmatmul.f32.gmra.mxu0 %v4425
    %v4450 = vpop.f32.mrf.mxu0
    %v4451 = vadd.f32 0.0, %v4450
    %4452 = vmatmul.f32.gmra.mxu0 %v4426
    %v4453 = vpop.f32.mrf.mxu0
    %v4454 = vadd.f32 0.0, %v4453
    %4455 = vmatmul.f32.gmra.mxu0 %v4427
    %v4456 = vpop.f32.mrf.mxu0
    %v4457 = vadd.f32 0.0, %v4456
    %4458 = vmatmul.f32.gmra.mxu0 %v4428
    %v4459 = vpop.f32.mrf.mxu0
    %v4460 = vadd.f32 0.0, %v4459
    %4461 = vmatmul.f32.gmra.mxu0 %v4429
    %v4462 = vpop.f32.mrf.mxu0
    %v4463 = vadd.f32 0.0, %v4462
    %4464 = vmatmul.f32.gmra.mxu0 %v4430
    %v4465 = vpop.f32.mrf.mxu0
    %v4466 = vadd.f32 0.0, %v4465
    %4467 = vmatmul.f32.gmra.mxu0 %v4431
    %v4468 = vpop.f32.mrf.mxu0
    %v4469 = vadd.f32 0.0, %v4468
    %4470 = vmatmul.f32.gmra.mxu0 %v4432
    %v4471 = vpop.f32.mrf.mxu0
    %v4472 = vadd.f32 0.0, %v4471
    %4473 = vdwg.mxu0
    %v4475 = vsel %vm106, %v4451, 0
    %v4478 = vsel %vm106, %v4454, 0
    %v4481 = vsel %vm106, %v4457, 0
    %v4484 = vsel %vm106, %v4460, 0
    %v4487 = vsel %vm106, %v4463, 0
    %v4490 = vsel %vm106, %v4466, 0
    %v4493 = vsel %vm106, %v4469, 0
    %v4496 = vsel %vm106, %v4472, 0
    %4498 = vmatpush.msra.mxu0 0.0
    %4499 = vmatpush.msra.mxu0 0.0
    %4500 = vmatpush.msra.mxu0 0.0
    %4501 = vmatpush.msra.mxu0 0.0
    %4502 = vmatpush.msra.mxu0 0.0
    %4503 = vmatpush.msra.mxu0 0.0
    %4504 = vmatpush.msra.mxu0 0.0
    %4505 = vmatpush.msra.mxu0 0.0
    %4506 = vmatpush.msra.mxu0 0.0
    %4507 = vmatpush.msra.mxu0 0.0
    %4508 = vmatpush.msra.mxu0 0.0
    %4509 = vmatpush.msra.mxu0 0.0
    %4510 = vmatpush.msra.mxu0 0.0
    %4511 = vmatpush.msra.mxu0 0.0
    %4512 = vmatpush.msra.mxu0 0.0
    %4513 = vmatpush.msra.mxu0 %v4270
    %4514 = vmatmul.f32.gmra.mxu0 %v4475
    %v4515 = vpop.f32.mrf.mxu0
    %v4516 = vadd.f32 0.0, %v4515
    %4517 = vmatmul.f32.gmra.mxu0 %v4478
    %v4518 = vpop.f32.mrf.mxu0
    %v4519 = vadd.f32 0.0, %v4518
    %4520 = vmatmul.f32.gmra.mxu0 %v4481
    %v4521 = vpop.f32.mrf.mxu0
    %v4522 = vadd.f32 0.0, %v4521
    %4523 = vmatmul.f32.gmra.mxu0 %v4484
    %v4524 = vpop.f32.mrf.mxu0
    %v4525 = vadd.f32 0.0, %v4524
    %4526 = vmatmul.f32.gmra.mxu0 %v4487
    %v4527 = vpop.f32.mrf.mxu0
    %v4528 = vadd.f32 0.0, %v4527
    %4529 = vmatmul.f32.gmra.mxu0 %v4490
    %v4530 = vpop.f32.mrf.mxu0
    %v4531 = vadd.f32 0.0, %v4530
    %4532 = vmatmul.f32.gmra.mxu0 %v4493
    %v4533 = vpop.f32.mrf.mxu0
    %v4534 = vadd.f32 0.0, %v4533
    %4535 = vmatmul.f32.gmra.mxu0 %v4496
    %v4536 = vpop.f32.mrf.mxu0
    %v4537 = vadd.f32 0.0, %v4536
    %4538 = vdwg.mxu0
    %v4539 = vadd.f32 %v4261, %v4516
    %v4540 = vadd.f32 %v4262, %v4519
    %v4541 = vadd.f32 %v4263, %v4522
    %v4542 = vadd.f32 %v4264, %v4525
    %v4543 = vadd.f32 %v4265, %v4528
    %v4544 = vadd.f32 %v4266, %v4531
    %v4545 = vadd.f32 %v4267, %v4534
    %v4546 = vadd.f32 %v4268, %v4537
    %4547 = vst [vmem:[#allocation5] sm:$0xff] %v4539
    %4548 = vst [vmem:[#allocation5 + $0x8] sm:$0xff] %v4540
    %4549 = vst [vmem:[#allocation5 + $0x10] sm:$0xff] %v4541
    %4550 = vst [vmem:[#allocation5 + $0x18] sm:$0xff] %v4542
    %4551 = vst [vmem:[#allocation5 + $0x20] sm:$0xff] %v4543
    %4552 = vst [vmem:[#allocation5 + $0x28] sm:$0xff] %v4544
    %4553 = vst [vmem:[#allocation5 + $0x30] sm:$0xff] %v4545
    %4554 = vst [vmem:[#allocation5 + $0x38] sm:$0xff] %v4546
    %v4555 = vlaneseq
    %v4556 = vshrl.u32 %v4555, 7
    %v4557 = vadd.s32 %v4556, 8
    %v4558 = vadd.s32 %v4556, 16
    %v4559 = vadd.s32 %v4556, 24
    %v4560 = vadd.s32 %v4556, 32
    %v4561 = vadd.s32 %v4556, 40
    %v4562 = vadd.s32 %v4556, 48
    %v4563 = vadd.s32 %v4556, 56
    %s4564 = smul.u32 0, 64
    %v4565 = vstv %s4564
    %v4566 = vadd.s32 %v4565, %v4556
    %v4567 = vadd.s32 %v4565, %v4557
    %v4568 = vadd.s32 %v4565, %v4558
    %v4569 = vadd.s32 %v4565, %v4559
    %v4570 = vadd.s32 %v4565, %v4560
    %v4571 = vadd.s32 %v4565, %v4561
    %v4572 = vadd.s32 %v4565, %v4562
    %v4573 = vadd.s32 %v4565, %v4563
    %v4574 = vmul.u32 %v4566, 128
    %v4575 = vmul.u32 %v4567, 128
    %v4576 = vmul.u32 %v4568, 128
    %v4577 = vmul.u32 %v4569, 128
    %v4578 = vmul.u32 %v4570, 128
    %v4579 = vmul.u32 %v4571, 128
    %v4580 = vmul.u32 %v4572, 128
    %v4581 = vmul.u32 %v4573, 128
    %v4582 = vadd.s32 %v4574, %v63
    %v4583 = vadd.s32 %v4575, %v63
    %v4584 = vadd.s32 %v4576, %v63
    %v4585 = vadd.s32 %v4577, %v63
    %v4586 = vadd.s32 %v4578, %v63
    %v4587 = vadd.s32 %v4579, %v63
    %v4588 = vadd.s32 %v4580, %v63
    %v4589 = vadd.s32 %v4581, %v63
    %vm4590 = vcmp.lt.s32.totalorder %v4582, 8192
    %vm4591 = vcmp.lt.s32.totalorder %v4583, 8192
    %vm4592 = vcmp.lt.s32.totalorder %v4584, 8192
    %vm4593 = vcmp.lt.s32.totalorder %v4585, 8192
    %vm4594 = vcmp.lt.s32.totalorder %v4586, 8192
    %vm4595 = vcmp.lt.s32.totalorder %v4587, 8192
    %vm4596 = vcmp.lt.s32.totalorder %v4588, 8192
    %vm4597 = vcmp.lt.s32.totalorder %v4589, 8192
    %v4598 = vsel %vm4590, 1, 0
    %v4599 = vsel %vm4591, 1, 0
    %v4600 = vsel %vm4592, 1, 0
    %v4601 = vsel %vm4593, 1, 0
    %v4602 = vsel %vm4594, 1, 0
    %v4603 = vsel %vm4595, 1, 0
    %v4604 = vsel %vm4596, 1, 0
    %v4605 = vsel %vm4597, 1, 0
    %v4606 = vcvt.s32.f32 %v4598
    %v4607 = vcvt.s32.f32 %v4599
    %v4608 = vcvt.s32.f32 %v4600
    %v4609 = vcvt.s32.f32 %v4601
    %v4610 = vcvt.s32.f32 %v4602
    %v4611 = vcvt.s32.f32 %v4603
    %v4612 = vcvt.s32.f32 %v4604
    %v4613 = vcvt.s32.f32 %v4605
    %v4614 = vsub.f32 %v4539, %v37
    %v4615 = vsub.f32 %v4540, %v38
    %v4616 = vsub.f32 %v4541, %v39
    %v4617 = vsub.f32 %v4542, %v40
    %v4618 = vsub.f32 %v4543, %v41
    %v4619 = vsub.f32 %v4544, %v42
    %v4620 = vsub.f32 %v4545, %v43
    %v4621 = vsub.f32 %v4546, %v44
    %v4622 = vmul.f32 %v4614, %v4606
    %v4623 = vmul.f32 %v4615, %v4607
    %v4624 = vmul.f32 %v4616, %v4608
    %v4625 = vmul.f32 %v4617, %v4609
    %v4626 = vmul.f32 %v4618, %v4610
    %v4627 = vmul.f32 %v4619, %v4611
    %v4628 = vmul.f32 %v4620, %v4612
    %v4629 = vmul.f32 %v4621, %v4613
    %v4630 = vmul.f32 %v4622, %v4622
    %v4631 = vmul.f32 %v4623, %v4623
    %v4632 = vmul.f32 %v4624, %v4624
    %v4633 = vmul.f32 %v4625, %v4625
    %v4634 = vmul.f32 %v4626, %v4626
    %v4635 = vmul.f32 %v4627, %v4627
    %v4636 = vmul.f32 %v4628, %v4628
    %v4637 = vmul.f32 %v4629, %v4629
    %v4638 = vadd.f32 %v4630, %v4631
    %v4639 = vadd.f32 %v4638, %v4632
    %v4640 = vadd.f32 %v4639, %v4633
    %v4641 = vadd.f32 %v4640, %v4634
    %v4642 = vadd.f32 %v4641, %v4635
    %v4643 = vadd.f32 %v4642, %v4636
    %v4644 = vadd.f32 %v4643, %v4637
    %4645 = vst [vmem:[#allocation6] sm:$0xff] %v4644
    // Predicated region
    $region22: #{tpu_custom_call.1} parent=1 // pred_check
      _
    $region23: #{tpu_custom_call.1} parent=1 // pred_check_branch
      %4647 = sbr.rel (0) target = $region25
    $region24: #{tpu_custom_call.1} parent=1 // pred_region
      %4649 = vsyncadd [#allocation4], 0
      %s4650 = sshll.u32 [#allocation5], 4
      %s4651 = int_to_ptr.vmem [resolvable:$true] %s4650
      %s4652 = sshll.u32 %s4, 4
      %s4653 = int_to_ptr.hbm [resolvable:$true] %s4652
      %4658 = dma.vmem_to_hbm [thread:$0]  %s4651, 1024, %s4653, [#allocation4], 128, 128, 8
    $region25: #{tpu_custom_call.1} parent=1 // pred_fallthru
      _
    // Predicated region
    $region26: #{tpu_custom_call.1} parent=1 // pred_check
      _
    $region27: #{tpu_custom_call.1} parent=1 // pred_check_branch
      %4660 = sbr.rel (0) target = $region29
    $region28: #{tpu_custom_call.1} parent=1 // pred_region
      %4662 = vsyncadd [#allocation7], 0
      %s4664 = sshll.u32 [#allocation6], 4
      %s4665 = int_to_ptr.vmem [resolvable:$true] %s4664
      %s4666 = sshll.u32 %s5, 4
      %s4667 = int_to_ptr.hbm [resolvable:$true] %s4666
      %4669 = dma.vmem_to_hbm [thread:$0]  %s4665, 128, %s4667, [#allocation7]
    $region29: #{tpu_custom_call.1} parent=1 // pred_fallthru
      _
    // Predicated region
    $region30: #{tpu_custom_call.1} parent=1 // pred_check
      _
    $region31: #{tpu_custom_call.1} parent=1 // pred_check_branch
      %4671 = sbr.rel (0) target = $region33
    $region32: #{tpu_custom_call.1} parent=1 // pred_region
      %4673 = dma.done [#allocation4], 1024
    $region33: #{tpu_custom_call.1} parent=1 // pred_fallthru
      _
    // Predicated region
    $region34: #{tpu_custom_call.1} parent=1 // pred_check
      _
    $region35: #{tpu_custom_call.1} parent=1 // pred_check_branch
      %4675 = sbr.rel (0) target = $region37
    $region36: #{tpu_custom_call.1} parent=1 // pred_region
      %4677 = dma.done [#allocation7], 128
    $region37: #{tpu_custom_call.1} parent=1 // pred_fallthru
      _
    %4678 = vsyncpa [#allocation3], 1
    %4679 = vsyncpa [#allocation4], 1
    %4680 = vsyncpa [#allocation7], 1

</llo_original>
